<compile_context>
chip_gen: v6e
topology: v6e:2x2x1
jax: 0.10.0
libtpu: 0.0.40
codegen_flags: <defaults>
</compile_context>

<pallas_src>
import numpy as np

import jax
import jax.numpy as jnp
from jax.experimental import pallas as pl
from jax.experimental.pallas import tpu as pltpu

_HI = jax.lax.Precision.HIGHEST


# ----------------------------------------------------------------------------
# Init-time weight packing: (de)conv weights -> dense per-kernel-row operators
# ----------------------------------------------------------------------------
def _conv_row_ops(w, w_in, ow_out, stride=2, pad=1):
    """Conv2d weight (Cout, Cin, KH, KW) -> R (KH, Cin*w_in, Cout*ow_out) with
    out_row[oh] = sum_i in_row[stride*oh + i - pad] @ R[i] (out-of-range rows = 0)."""
    w = np.asarray(w, np.float32)
    cout, cin, kh, kw = w.shape
    R = np.zeros((kh, cin * w_in, cout * ow_out), np.float32)
    rows = np.arange(cin) * w_in
    cols = np.arange(cout) * ow_out
    for i in range(kh):
        for j in range(kw):
            for ow in range(ow_out):
                wcol = stride * ow + j - pad
                if 0 <= wcol < w_in:
                    R[i][np.ix_(rows + wcol, cols + ow)] = w[:, :, i, j].T
    return R


def _deconv_row_ops(w, w_in, ow_out, stride=2, pad=1):
    """ConvTranspose2d weight (Cin, Cout, KH, KW) -> T (KH, Cin*w_in, Cout*ow_out)
    with out_row[orow] = sum over (row, i) s.t. orow == stride*row + i - pad of
    in_row[row] @ T[i]."""
    w = np.asarray(w, np.float32)
    cin, cout, kh, kw = w.shape
    T = np.zeros((kh, cin * w_in, cout * ow_out), np.float32)
    rows = np.arange(cin) * w_in
    cols = np.arange(cout) * ow_out
    for i in range(kh):
        for j in range(kw):
            for x in range(w_in):
                ox = stride * x + j - pad
                if 0 <= ox < ow_out:
                    T[i][np.ix_(rows + x, cols + ox)] = w[:, :, i, j]
    return T


def pack_params(params, operand_dtype=jnp.float32):
    """One-time transform of raw (PyTorch-layout) params into kernel operands."""
    p = {k: np.asarray(v, np.float32) for k, v in params.items()}
    hidden = p["fc1_w"].shape[0]

    R1 = _conv_row_ops(p["conv1_w"], 28, 14)       # (4,  28, 224)
    R2 = _conv_row_ops(p["conv2_w"], 14, 7)        # (4, 224, 224)
    T1 = _deconv_row_ops(p["deconv1_w"], 7, 14)    # (4, 224, 224)
    T2 = _deconv_row_ops(p["deconv2_w"], 14, 28)   # (4, 224,  28)

    # conv1 consumes the four (h mod 4) input planes; columns 0:224 build the
    # even output rows, columns 224:448 the odd output rows.
    G1 = np.stack([np.concatenate([R1[1], R1[3]], 1),
                   np.concatenate([R1[2], R1[0]], 1),
                   np.concatenate([R1[3], R1[1]], 1),
                   np.concatenate([R1[0], R1[2]], 1)])            # (4, 28, 448)
    # conv2 consumes (even rows, odd rows) of conv1's output.
    G2 = np.stack([np.concatenate([R2[1], R2[3]], 1),
                   np.concatenate([R2[2], R2[0]], 1)])            # (2, 224, 448)
    # deconv1: single matmul, four row-operators concatenated along N.
    TD1 = np.concatenate([T1[0], T1[1], T1[2], T1[3]], 1)         # (224, 896)
    # deconv2: one operator bundle per input-row parity; output grouped by row mod 4.
    TD2 = np.stack([np.concatenate([T2[1], T2[2], T2[3], T2[0]], 1),
                    np.concatenate([T2[3], T2[0], T2[1], T2[2]], 1)])  # (2, 224, 112)

    # fc1: permute input index (c*49 + h*7 + w) -> [h][c*7 + w] (matches conv2 layout).
    W1p = p["fc1_w"].reshape(hidden, 32, 7, 7).transpose(2, 1, 3, 0).reshape(7, 224, hidden)
    # fc4: permute output index (c*49 + h*7 + w) so lanes are ordered (w, c, h),
    # i.e. the decoder rearrange 'b (c h w) -> b c w h' is folded into the weight.
    W4p = p["fc4_w"].reshape(32, 7, 7, hidden).transpose(2, 0, 1, 3).reshape(1568, hidden).T
    b4p = p["fc4_b"].reshape(32, 7, 7).transpose(2, 0, 1).reshape(1, 1568)

    big = lambda a: jnp.asarray(a, operand_dtype)     # matmul operands
    f32 = lambda a: jnp.asarray(a, jnp.float32)       # epilogue stays f32
    return dict(
        G1=big(G1), cb1=f32(np.repeat(p["conv1_b"], 14)[None, :]),
        G2=big(G2), cb2=f32(np.repeat(p["conv2_b"], 7)[None, :]),
        W1p=big(W1p), fb1=f32(p["fc1_b"][None, :]),
        W2=big(p["fc2_w"].T), fb2=f32(p["fc2_b"][None, :]),
        W3=big(p["fc3_w"].T), fb3=f32(p["fc3_b"][None, :]),
        W4p=big(W4p), fb4=f32(b4p),
        TD1=big(TD1), db1=f32(np.repeat(p["deconv1_b"], 14)[None, :]),
        TD2=big(TD2), db2=f32(np.full((1, 28), p["deconv2_b"][0], np.float32)),
    )


# ----------------------------------------------------------------------------
# The fused Pallas kernel (one grid step == one image)
# ----------------------------------------------------------------------------
def _vae_fused_kernel(xq_ref, eps_ref,
                      g1_ref, cb1_ref, g2_ref, cb2_ref,
                      w1_ref, fb1_ref, w2_ref, fb2_ref,
                      w3_ref, fb3_ref, w4_ref, fb4_ref,
                      td1_ref, db1_ref, td2_ref, db2_ref,
                      out_ref, mu_ref, ls_ref, z_ref):
    f32 = jnp.float32

    def mm(a, w):
        return jnp.dot(a.astype(w.dtype), w, preferred_element_type=f32)

    def shift_down(y):   # row t <- row t-1, top row <- 0
        zero = jnp.zeros((1, y.shape[1]), y.dtype)
        return jnp.concatenate([zero, y[:-1, :]], axis=0)

    def shift_up(y):     # row t <- row t+1, bottom row <- 0
        zero = jnp.zeros((1, y.shape[1]), y.dtype)
        return jnp.concatenate([y[1:, :], zero], axis=0)

    N1 = 16 * 14   # conv1 / deconv1 output lane width (Cout * OW)
    N2 = 32 * 7    # conv2 output / deconv1 input lane width
    NO = 28        # deconv2 output lane width

    # ------------------------------ encoder ------------------------------
    # conv1: 1x28x28 -> 16x14x14; output kept split by output-row parity.
    s0 = mm(xq_ref[0, 0, :, :], g1_ref[0, :, :])
    s1 = mm(xq_ref[0, 1, :, :], g1_ref[1, :, :])
    s2 = mm(xq_ref[0, 2, :, :], g1_ref[2, :, :])
    s3 = mm(xq_ref[0, 3, :, :], g1_ref[3, :, :])
    cb1 = cb1_ref[...]
    a_even = s0[:, :N1] + s1[:, :N1] + s2[:, :N1] + shift_down(s3[:, :N1]) + cb1
    a_odd = shift_up(s0[:, N1:]) + s1[:, N1:] + s2[:, N1:] + s3[:, N1:] + cb1
    a_even = jnp.maximum(a_even, 0.0)
    a_odd = jnp.maximum(a_odd, 0.0)

    # conv2: 16x14x14 -> 32x7x7 (natural row order).
    u0 = mm(a_even, g2_ref[0, :, :])
    u1 = mm(a_odd, g2_ref[1, :, :])
    h2 = u0[:, :N2] + u1[:, :N2] + shift_up(u0[:, N2:]) + shift_down(u1[:, N2:])
    h2 = jnp.maximum(h2 + cb2_ref[...], 0.0)                     # (7, 224)

    # fc1: contract over (row, lane) of h2 with the row-permuted weight.
    y1 = fb1_ref[...]                                            # (1, hidden)
    for h in range(7):
        y1 = y1 + mm(h2[h:h + 1, :], w1_ref[h, :, :])
    y1 = jnp.maximum(y1, 0.0)

    # fc2 -> (mu | logsigma); reparameterize in-kernel.
    ms = mm(y1, w2_ref[...]) + fb2_ref[...]                      # (1, 2*latent)
    latent = ms.shape[1] // 2
    mu = ms[:, :latent]
    logsigma = ms[:, latent:]
    z = mu + jnp.exp(logsigma) * eps_ref[0, :, :]
    mu_ref[0, :, :] = mu
    ls_ref[0, :, :] = logsigma
    z_ref[0, :, :] = z

    # ------------------------------ decoder ------------------------------
    y3 = jnp.maximum(mm(z, w3_ref[...]) + fb3_ref[...], 0.0)     # (1, hidden)
    v4 = jnp.maximum(mm(y3, w4_ref[...]) + fb4_ref[...], 0.0)    # (1, 1568)
    # fc4 lanes are pre-permuted to (row, channel, col): build the 7x224 map.
    din = jnp.concatenate([v4[:, N2 * r:N2 * (r + 1)] for r in range(7)], axis=0)

    # deconv1: 32x7x7 -> 16x14x14 (one matmul); output split by row parity.
    v = mm(din, td1_ref[...])                                    # (7, 896)
    d_even = v[:, N1:2 * N1] + shift_down(v[:, 3 * N1:4 * N1]) + db1_ref[...]
    d_odd = shift_up(v[:, 0:N1]) + v[:, 2 * N1:3 * N1] + db1_ref[...]
    d_even = jnp.maximum(d_even, 0.0)
    d_odd = jnp.maximum(d_odd, 0.0)

    # deconv2: 16x14x14 -> 1x28x28; output rows grouped by (row mod 4).
    ve = mm(d_even, td2_ref[0, :, :])                            # (7, 112)
    vo = mm(d_odd, td2_ref[1, :, :])                             # (7, 112)
    db2 = db2_ref[...]                                           # (1, 28)
    out_ref[0, 0, :, :] = ve[:, 0 * NO:1 * NO] + shift_down(vo[:, 0 * NO:1 * NO]) + db2
    out_ref[0, 1, :, :] = ve[:, 1 * NO:2 * NO] + vo[:, 1 * NO:2 * NO] + db2
    out_ref[0, 2, :, :] = ve[:, 2 * NO:3 * NO] + vo[:, 2 * NO:3 * NO] + db2
    out_ref[0, 3, :, :] = shift_up(ve[:, 3 * NO:4 * NO]) + vo[:, 3 * NO:4 * NO] + db2


# ----------------------------------------------------------------------------
# Wrapper
# ----------------------------------------------------------------------------
def vae_forward(packed, x, eps):
    """x: (B, 1, 28, 28) f32, eps: (B, latent) f32 (stand-in for torch.randn_like)."""
    B = x.shape[0]
    L = eps.shape[1]

    # Split the 28 input rows by (h mod 4) so the kernel only ever needs
    # contiguous row windows (free reshape + one tiny transpose).
    xq = x.reshape(B, 7, 4, 28).transpose(0, 2, 1, 3)            # [b, h%4, h//4, w]
    eps3 = eps.reshape(B, 1, L)

    worder = ["G1", "cb1", "G2", "cb2", "W1p", "fb1", "W2", "fb2",
              "W3", "fb3", "W4p", "fb4", "TD1", "db1", "TD2", "db2"]
    weights = [packed[k] for k in worder]

    in_specs = [
        pl.BlockSpec((1, 4, 7, 28), lambda b: (b, 0, 0, 0)),
        pl.BlockSpec((1, 1, L), lambda b: (b, 0, 0)),
    ]
    for w in weights:  # whole-array, VMEM-resident weight blocks (constant index map)
        in_specs.append(pl.BlockSpec(w.shape, lambda b, n=w.ndim: (0,) * n))

    out_shape = (
        jax.ShapeDtypeStruct((B, 4, 7, 28), jnp.float32),        # image rows grouped by row%4
        jax.ShapeDtypeStruct((B, 1, L), jnp.float32),            # mu
        jax.ShapeDtypeStruct((B, 1, L), jnp.float32),            # logsigma
        jax.ShapeDtypeStruct((B, 1, L), jnp.float32),            # z
    )
    out_specs = (
        pl.BlockSpec((1, 4, 7, 28), lambda b: (b, 0, 0, 0)),
        pl.BlockSpec((1, 1, L), lambda b: (b, 0, 0)),
        pl.BlockSpec((1, 1, L), lambda b: (b, 0, 0)),
        pl.BlockSpec((1, 1, L), lambda b: (b, 0, 0)),
    )

    outq, mu, logsigma, z = pl.pallas_call(
        _vae_fused_kernel,
        out_shape=out_shape,
        grid=(B,),
        in_specs=in_specs,
        out_specs=out_specs,
        compiler_params=pltpu.CompilerParams(
            dimension_semantics=("parallel",)),                  # shard batch across TCs (v7x)
    )(xq, eps3, *weights)

    # interleave the (row mod 4) groups back into 28 rows (free reshape + tiny transpose)
    x_prime = outq.transpose(0, 2, 1, 3).reshape(B, 1, 28, 28)
    return x_prime, mu[:, 0, :], logsigma[:, 0, :], z[:, 0, :]


# ----------------------------------------------------------------------------
# Parameters (deterministic, PyTorch-style uniform ranges)
# ----------------------------------------------------------------------------
def init_params(key, latent_dim, hidden_dim):
    def uinit(k, shape, fan_in):
        bound = 1.0 / float(fan_in) ** 0.5
        return jax.random.uniform(k, shape, jnp.float32, -bound, bound)

    ks = jax.random.split(key, 16)
    p = {}
    p["conv1_w"] = uinit(ks[0], (16, 1, 4, 4), 1 * 4 * 4)
    p["conv1_b"] = uinit(ks[1], (16,), 1 * 4 * 4)
    p["conv2_w"] = uinit(ks[2], (32, 16, 4, 4), 16 * 4 * 4)
    p["conv2_b"] = uinit(ks[3], (32,), 16 * 4 * 4)
    p["fc1_w"] = uinit(ks[4], (hidden_dim, 7 * 7 * 32), 7 * 7 * 32)   # (out, in)
    p["fc1_b"] = uinit(ks[5], (hidden_dim,), 7 * 7 * 32)
    p["fc2_w"] = uinit(ks[6], (2 * latent_dim, hidden_dim), hidden_dim)
    p["fc2_b"] = uinit(ks[7], (2 * latent_dim,), hidden_dim)
    p["fc3_w"] = uinit(ks[8], (hidden_dim, latent_dim), latent_dim)
    p["fc3_b"] = uinit(ks[9], (hidden_dim,), latent_dim)
    p["fc4_w"] = uinit(ks[10], (7 * 7 * 32, hidden_dim), hidden_dim)
    p["fc4_b"] = uinit(ks[11], (7 * 7 * 32,), hidden_dim)
    p["deconv1_w"] = uinit(ks[12], (32, 16, 4, 4), 32 * 4 * 4)        # (Cin, Cout, kh, kw)
    p["deconv1_b"] = uinit(ks[13], (16,), 32 * 4 * 4)
    p["deconv2_w"] = uinit(ks[14], (16, 1, 4, 4), 16 * 4 * 4)
    p["deconv2_b"] = uinit(ks[15], (1,), 16 * 4 * 4)
    return p


# ----------------------------------------------------------------------------
# Plain-JAX (XLA) reference of the PyTorch module, used only for self-checking
# ----------------------------------------------------------------------------
def _conv2d_ref(x, w, b, stride, pad):
    out = jax.lax.conv_general_dilated(
        x, w, window_strides=(stride, stride),
        padding=((pad, pad), (pad, pad)),
        dimension_numbers=("NCHW", "OIHW", "NCHW"), precision=_HI)
    return out + b.reshape(1, -1, 1, 1)


def _conv_transpose2d_ref(x, w, b, stride, pad):
    k = w.shape[2]
    wf = jnp.flip(w, axis=(2, 3)).transpose(1, 0, 2, 3)          # (Cout, Cin, kh, kw)
    out = jax.lax.conv_general_dilated(
        x, wf, window_strides=(1, 1),
        padding=((k - 1 - pad,) * 2, (k - 1 - pad,) * 2),
        lhs_dilation=(stride, stride),
        dimension_numbers=("NCHW", "OIHW", "NCHW"), precision=_HI)
    return out + b.reshape(1, -1, 1, 1)


def vae_reference(params, x, eps):
    B = x.shape[0]
    h = jnp.maximum(_conv2d_ref(x, params["conv1_w"], params["conv1_b"], 2, 1), 0.0)
    h = jnp.maximum(_conv2d_ref(h, params["conv2_w"], params["conv2_b"], 2, 1), 0.0)
    h = h.reshape(B, -1)
    h = jnp.maximum(jnp.dot(h, params["fc1_w"].T, precision=_HI) + params["fc1_b"], 0.0)
    ms = jnp.dot(h, params["fc2_w"].T, precision=_HI) + params["fc2_b"]
    L = ms.shape[1] // 2
    mu, logsigma = ms[:, :L], ms[:, L:]
    z = mu + jnp.exp(logsigma) * eps
    d = jnp.maximum(jnp.dot(z, params["fc3_w"].T, precision=_HI) + params["fc3_b"], 0.0)
    d = jnp.maximum(jnp.dot(d, params["fc4_w"].T, precision=_HI) + params["fc4_b"], 0.0)
    d = d.reshape(B, 32, 7, 7).transpose(0, 1, 3, 2)             # 'b (c h w) -> b c w h'
    d = jnp.maximum(_conv_transpose2d_ref(d, params["deconv1_w"], params["deconv1_b"], 2, 1), 0.0)
    xp = _conv_transpose2d_ref(d, params["deconv2_w"], params["deconv2_b"], 2, 1)
    return xp, mu, logsigma, z


if __name__ == "__main__":
    latent_dim, hidden_dim, batch = 8, 32, 2

    key = jax.random.PRNGKey(0)
    k_params, k_x, k_eps = jax.random.split(key, 3)

    params = init_params(k_params, latent_dim, hidden_dim)
    packed = pack_params(params)          # one-time weight preprocessing (f32 operands)

    x = jax.random.normal(k_x, (batch, 1, 28, 28), jnp.float32)
    eps = jax.random.normal(k_eps, (batch, latent_dim), jnp.float32)

    fwd = jax.jit(vae_forward)
    x_prime, mu, logsigma, z = fwd(packed, x, eps)
    jax.block_until_ready((x_prime, mu, logsigma, z))

    assert x_prime.shape == (batch, 1, 28, 28)
    assert mu.shape == (batch, latent_dim)
    assert logsigma.shape == (batch, latent_dim)
    assert z.shape == (batch, latent_dim)

    # numerical self-check of the fused kernel against the plain-JAX reference
    xr, mur, lsr, zr = vae_reference(params, x, eps)
    np.testing.assert_allclose(np.asarray(mu), np.asarray(mur), atol=1e-2, rtol=1e-2)
    np.testing.assert_allclose(np.asarray(logsigma), np.asarray(lsr), atol=1e-2, rtol=1e-2)
    np.testing.assert_allclose(np.asarray(z), np.asarray(zr), atol=1e-2, rtol=1e-2)
    np.testing.assert_allclose(np.asarray(x_prime), np.asarray(xr), atol=1e-2, rtol=1e-2)

    print("KERNEL_OK")
</pallas_src>

<mosaic_0001>
module attributes {stable_mosaic.version = 11 : i64} {
  func.func @_vae_fused_kernel(%arg0: i32, %arg1: memref<1x4x7x28xf32, #tpu.memory_space<vmem>>, %arg2: memref<1x1x8xf32, #tpu.memory_space<vmem>>, %arg3: memref<4x28x448xf32, #tpu.memory_space<vmem>>, %arg4: memref<1x224xf32, #tpu.memory_space<vmem>>, %arg5: memref<2x224x448xf32, #tpu.memory_space<vmem>>, %arg6: memref<1x224xf32, #tpu.memory_space<vmem>>, %arg7: memref<7x224x32xf32, #tpu.memory_space<vmem>>, %arg8: memref<1x32xf32, #tpu.memory_space<vmem>>, %arg9: memref<32x16xf32, #tpu.memory_space<vmem>>, %arg10: memref<1x16xf32, #tpu.memory_space<vmem>>, %arg11: memref<8x32xf32, #tpu.memory_space<vmem>>, %arg12: memref<1x32xf32, #tpu.memory_space<vmem>>, %arg13: memref<32x1568xf32, #tpu.memory_space<vmem>>, %arg14: memref<1x1568xf32, #tpu.memory_space<vmem>>, %arg15: memref<224x896xf32, #tpu.memory_space<vmem>>, %arg16: memref<1x224xf32, #tpu.memory_space<vmem>>, %arg17: memref<2x224x112xf32, #tpu.memory_space<vmem>>, %arg18: memref<1x28xf32, #tpu.memory_space<vmem>>, %arg19: memref<1x4x7x28xf32, #tpu.memory_space<vmem>>, %arg20: memref<1x1x8xf32, #tpu.memory_space<vmem>>, %arg21: memref<1x1x8xf32, #tpu.memory_space<vmem>>, %arg22: memref<1x1x8xf32, #tpu.memory_space<vmem>>) attributes {dimension_semantics = [#tpu.dimension_semantics<parallel>], iteration_bounds = array<i64: 2>, scalar_prefetch = 0 : i64, scratch_operands = 0 : i64, tpu.core_type = #tpu.core_type<tc>, window_params = [{transform_indices = @transform_0, window_bounds = array<i64: 1, 4, 7, 28>}, {transform_indices = @transform_1, window_bounds = array<i64: 1, 1, 8>}, {pipeline_mode = #tpu.pipeline_mode<synchronous>, transform_indices = @transform_2, window_bounds = array<i64: 4, 28, 448>}, {pipeline_mode = #tpu.pipeline_mode<synchronous>, transform_indices = @transform_3, window_bounds = array<i64: 1, 224>}, {pipeline_mode = #tpu.pipeline_mode<synchronous>, transform_indices = @transform_4, window_bounds = array<i64: 2, 224, 448>}, {pipeline_mode = #tpu.pipeline_mode<synchronous>, transform_indices = @transform_5, window_bounds = array<i64: 1, 224>}, {pipeline_mode = #tpu.pipeline_mode<synchronous>, transform_indices = @transform_6, window_bounds = array<i64: 7, 224, 32>}, {pipeline_mode = #tpu.pipeline_mode<synchronous>, transform_indices = @transform_7, window_bounds = array<i64: 1, 32>}, {pipeline_mode = #tpu.pipeline_mode<synchronous>, transform_indices = @transform_8, window_bounds = array<i64: 32, 16>}, {pipeline_mode = #tpu.pipeline_mode<synchronous>, transform_indices = @transform_9, window_bounds = array<i64: 1, 16>}, {pipeline_mode = #tpu.pipeline_mode<synchronous>, transform_indices = @transform_10, window_bounds = array<i64: 8, 32>}, {pipeline_mode = #tpu.pipeline_mode<synchronous>, transform_indices = @transform_11, window_bounds = array<i64: 1, 32>}, {pipeline_mode = #tpu.pipeline_mode<synchronous>, transform_indices = @transform_12, window_bounds = array<i64: 32, 1568>}, {pipeline_mode = #tpu.pipeline_mode<synchronous>, transform_indices = @transform_13, window_bounds = array<i64: 1, 1568>}, {pipeline_mode = #tpu.pipeline_mode<synchronous>, transform_indices = @transform_14, window_bounds = array<i64: 224, 896>}, {pipeline_mode = #tpu.pipeline_mode<synchronous>, transform_indices = @transform_15, window_bounds = array<i64: 1, 224>}, {pipeline_mode = #tpu.pipeline_mode<synchronous>, transform_indices = @transform_16, window_bounds = array<i64: 2, 224, 112>}, {pipeline_mode = #tpu.pipeline_mode<synchronous>, transform_indices = @transform_17, window_bounds = array<i64: 1, 28>}, {transform_indices = @transform_18, window_bounds = array<i64: 1, 4, 7, 28>}, {transform_indices = @transform_19, window_bounds = array<i64: 1, 1, 8>}, {transform_indices = @transform_20, window_bounds = array<i64: 1, 1, 8>}, {transform_indices = @transform_21, window_bounds = array<i64: 1, 1, 8>}]} {
    %c0 = arith.constant 0 : index
    %c0_0 = arith.constant 0 : index
    %c0_1 = arith.constant 0 : index
    %c0_2 = arith.constant 0 : index
    %0 = vector.load %arg1[%c0, %c0_0, %c0_1, %c0_2] : memref<1x4x7x28xf32, #tpu.memory_space<vmem>>, vector<1x1x7x28xf32>
    %1 = vector.shape_cast %0 : vector<1x1x7x28xf32> to vector<7x28xf32>
    %c0_3 = arith.constant 0 : index
    %c0_4 = arith.constant 0 : index
    %c0_5 = arith.constant 0 : index
    %2 = vector.load %arg3[%c0_3, %c0_4, %c0_5] : memref<4x28x448xf32, #tpu.memory_space<vmem>>, vector<1x28x448xf32>
    %3 = vector.shape_cast %2 : vector<1x28x448xf32> to vector<28x448xf32>
    %cst = arith.constant dense<0.000000e+00> : vector<7x448xf32>
    %4 = tpu.matmul %1, %3, %cst {dimension_numbers = #tpu.dot_dimension_numbers<[1], [0], [0], [1], [0, 0, 1, 1], [], []>} : vector<7x28xf32>, vector<28x448xf32>, vector<7x448xf32> -> vector<7x448xf32>
    %c0_6 = arith.constant 0 : index
    %c1 = arith.constant 1 : index
    %c0_7 = arith.constant 0 : index
    %c0_8 = arith.constant 0 : index
    %5 = vector.load %arg1[%c0_6, %c1, %c0_7, %c0_8] : memref<1x4x7x28xf32, #tpu.memory_space<vmem>>, vector<1x1x7x28xf32>
    %6 = vector.shape_cast %5 : vector<1x1x7x28xf32> to vector<7x28xf32>
    %c1_9 = arith.constant 1 : index
    %c0_10 = arith.constant 0 : index
    %c0_11 = arith.constant 0 : index
    %7 = vector.load %arg3[%c1_9, %c0_10, %c0_11] : memref<4x28x448xf32, #tpu.memory_space<vmem>>, vector<1x28x448xf32>
    %8 = vector.shape_cast %7 : vector<1x28x448xf32> to vector<28x448xf32>
    %cst_12 = arith.constant dense<0.000000e+00> : vector<7x448xf32>
    %9 = tpu.matmul %6, %8, %cst_12 {dimension_numbers = #tpu.dot_dimension_numbers<[1], [0], [0], [1], [0, 0, 1, 1], [], []>} : vector<7x28xf32>, vector<28x448xf32>, vector<7x448xf32> -> vector<7x448xf32>
    %c0_13 = arith.constant 0 : index
    %c2 = arith.constant 2 : index
    %c0_14 = arith.constant 0 : index
    %c0_15 = arith.constant 0 : index
    %10 = vector.load %arg1[%c0_13, %c2, %c0_14, %c0_15] : memref<1x4x7x28xf32, #tpu.memory_space<vmem>>, vector<1x1x7x28xf32>
    %11 = vector.shape_cast %10 : vector<1x1x7x28xf32> to vector<7x28xf32>
    %c2_16 = arith.constant 2 : index
    %c0_17 = arith.constant 0 : index
    %c0_18 = arith.constant 0 : index
    %12 = vector.load %arg3[%c2_16, %c0_17, %c0_18] : memref<4x28x448xf32, #tpu.memory_space<vmem>>, vector<1x28x448xf32>
    %13 = vector.shape_cast %12 : vector<1x28x448xf32> to vector<28x448xf32>
    %cst_19 = arith.constant dense<0.000000e+00> : vector<7x448xf32>
    %14 = tpu.matmul %11, %13, %cst_19 {dimension_numbers = #tpu.dot_dimension_numbers<[1], [0], [0], [1], [0, 0, 1, 1], [], []>} : vector<7x28xf32>, vector<28x448xf32>, vector<7x448xf32> -> vector<7x448xf32>
    %c0_20 = arith.constant 0 : index
    %c3 = arith.constant 3 : index
    %c0_21 = arith.constant 0 : index
    %c0_22 = arith.constant 0 : index
    %15 = vector.load %arg1[%c0_20, %c3, %c0_21, %c0_22] : memref<1x4x7x28xf32, #tpu.memory_space<vmem>>, vector<1x1x7x28xf32>
    %16 = vector.shape_cast %15 : vector<1x1x7x28xf32> to vector<7x28xf32>
    %c3_23 = arith.constant 3 : index
    %c0_24 = arith.constant 0 : index
    %c0_25 = arith.constant 0 : index
    %17 = vector.load %arg3[%c3_23, %c0_24, %c0_25] : memref<4x28x448xf32, #tpu.memory_space<vmem>>, vector<1x28x448xf32>
    %18 = vector.shape_cast %17 : vector<1x28x448xf32> to vector<28x448xf32>
    %cst_26 = arith.constant dense<0.000000e+00> : vector<7x448xf32>
    %19 = tpu.matmul %16, %18, %cst_26 {dimension_numbers = #tpu.dot_dimension_numbers<[1], [0], [0], [1], [0, 0, 1, 1], [], []>} : vector<7x28xf32>, vector<28x448xf32>, vector<7x448xf32> -> vector<7x448xf32>
    %c0_27 = arith.constant 0 : index
    %c0_28 = arith.constant 0 : index
    %20 = vector.load %arg4[%c0_27, %c0_28] : memref<1x224xf32, #tpu.memory_space<vmem>>, vector<1x224xf32>
    %21 = vector.extract_strided_slice %4 {offsets = [0, 0], sizes = [7, 224], strides = [1, 1]} : vector<7x448xf32> to vector<7x224xf32>
    %22 = vector.extract_strided_slice %9 {offsets = [0, 0], sizes = [7, 224], strides = [1, 1]} : vector<7x448xf32> to vector<7x224xf32>
    %23 = arith.addf %21, %22 : vector<7x224xf32>
    %24 = vector.extract_strided_slice %14 {offsets = [0, 0], sizes = [7, 224], strides = [1, 1]} : vector<7x448xf32> to vector<7x224xf32>
    %25 = arith.addf %23, %24 : vector<7x224xf32>
    %26 = vector.extract_strided_slice %19 {offsets = [0, 0], sizes = [7, 224], strides = [1, 1]} : vector<7x448xf32> to vector<7x224xf32>
    %cst_29 = arith.constant 0.000000e+00 : f32
    %27 = vector.broadcast %cst_29 : f32 to vector<1x224xf32>
    %28 = vector.extract_strided_slice %26 {offsets = [0, 0], sizes = [6, 224], strides = [1, 1]} : vector<7x224xf32> to vector<6x224xf32>
    %29 = tpu.concatenate %27, %28 in 0 : vector<1x224xf32>, vector<6x224xf32> -> vector<7x224xf32>
    %30 = arith.addf %25, %29 : vector<7x224xf32>
    %31 = vector.broadcast %20 : vector<1x224xf32> to vector<7x224xf32>
    %32 = arith.addf %30, %31 : vector<7x224xf32>
    %33 = vector.extract_strided_slice %4 {offsets = [0, 224], sizes = [7, 224], strides = [1, 1]} : vector<7x448xf32> to vector<7x224xf32>
    %cst_30 = arith.constant 0.000000e+00 : f32
    %34 = vector.broadcast %cst_30 : f32 to vector<1x224xf32>
    %35 = vector.extract_strided_slice %33 {offsets = [1, 0], sizes = [6, 224], strides = [1, 1]} : vector<7x224xf32> to vector<6x224xf32>
    %36 = tpu.concatenate %35, %34 in 0 : vector<6x224xf32>, vector<1x224xf32> -> vector<7x224xf32>
    %37 = vector.extract_strided_slice %9 {offsets = [0, 224], sizes = [7, 224], strides = [1, 1]} : vector<7x448xf32> to vector<7x224xf32>
    %38 = arith.addf %36, %37 : vector<7x224xf32>
    %39 = vector.extract_strided_slice %14 {offsets = [0, 224], sizes = [7, 224], strides = [1, 1]} : vector<7x448xf32> to vector<7x224xf32>
    %40 = arith.addf %38, %39 : vector<7x224xf32>
    %41 = vector.extract_strided_slice %19 {offsets = [0, 224], sizes = [7, 224], strides = [1, 1]} : vector<7x448xf32> to vector<7x224xf32>
    %42 = arith.addf %40, %41 : vector<7x224xf32>
    %43 = vector.broadcast %20 : vector<1x224xf32> to vector<7x224xf32>
    %44 = arith.addf %42, %43 : vector<7x224xf32>
    %cst_31 = arith.constant 0.000000e+00 : f32
    %45 = vector.broadcast %cst_31 : f32 to vector<7x224xf32>
    %46 = arith.maximumf %32, %45 : vector<7x224xf32>
    %cst_32 = arith.constant 0.000000e+00 : f32
    %47 = vector.broadcast %cst_32 : f32 to vector<7x224xf32>
    %48 = arith.maximumf %44, %47 : vector<7x224xf32>
    %c0_33 = arith.constant 0 : index
    %c0_34 = arith.constant 0 : index
    %c0_35 = arith.constant 0 : index
    %49 = vector.load %arg5[%c0_33, %c0_34, %c0_35] : memref<2x224x448xf32, #tpu.memory_space<vmem>>, vector<1x224x448xf32>
    %50 = vector.shape_cast %49 : vector<1x224x448xf32> to vector<224x448xf32>
    %cst_36 = arith.constant dense<0.000000e+00> : vector<7x448xf32>
    %51 = tpu.matmul %46, %50, %cst_36 {dimension_numbers = #tpu.dot_dimension_numbers<[1], [0], [0], [1], [0, 0, 1, 1], [], []>} : vector<7x224xf32>, vector<224x448xf32>, vector<7x448xf32> -> vector<7x448xf32>
    %c1_37 = arith.constant 1 : index
    %c0_38 = arith.constant 0 : index
    %c0_39 = arith.constant 0 : index
    %52 = vector.load %arg5[%c1_37, %c0_38, %c0_39] : memref<2x224x448xf32, #tpu.memory_space<vmem>>, vector<1x224x448xf32>
    %53 = vector.shape_cast %52 : vector<1x224x448xf32> to vector<224x448xf32>
    %cst_40 = arith.constant dense<0.000000e+00> : vector<7x448xf32>
    %54 = tpu.matmul %48, %53, %cst_40 {dimension_numbers = #tpu.dot_dimension_numbers<[1], [0], [0], [1], [0, 0, 1, 1], [], []>} : vector<7x224xf32>, vector<224x448xf32>, vector<7x448xf32> -> vector<7x448xf32>
    %55 = vector.extract_strided_slice %51 {offsets = [0, 0], sizes = [7, 224], strides = [1, 1]} : vector<7x448xf32> to vector<7x224xf32>
    %56 = vector.extract_strided_slice %54 {offsets = [0, 0], sizes = [7, 224], strides = [1, 1]} : vector<7x448xf32> to vector<7x224xf32>
    %57 = arith.addf %55, %56 : vector<7x224xf32>
    %58 = vector.extract_strided_slice %51 {offsets = [0, 224], sizes = [7, 224], strides = [1, 1]} : vector<7x448xf32> to vector<7x224xf32>
    %cst_41 = arith.constant 0.000000e+00 : f32
    %59 = vector.broadcast %cst_41 : f32 to vector<1x224xf32>
    %60 = vector.extract_strided_slice %58 {offsets = [1, 0], sizes = [6, 224], strides = [1, 1]} : vector<7x224xf32> to vector<6x224xf32>
    %61 = tpu.concatenate %60, %59 in 0 : vector<6x224xf32>, vector<1x224xf32> -> vector<7x224xf32>
    %62 = arith.addf %57, %61 : vector<7x224xf32>
    %63 = vector.extract_strided_slice %54 {offsets = [0, 224], sizes = [7, 224], strides = [1, 1]} : vector<7x448xf32> to vector<7x224xf32>
    %cst_42 = arith.constant 0.000000e+00 : f32
    %64 = vector.broadcast %cst_42 : f32 to vector<1x224xf32>
    %65 = vector.extract_strided_slice %63 {offsets = [0, 0], sizes = [6, 224], strides = [1, 1]} : vector<7x224xf32> to vector<6x224xf32>
    %66 = tpu.concatenate %64, %65 in 0 : vector<1x224xf32>, vector<6x224xf32> -> vector<7x224xf32>
    %67 = arith.addf %62, %66 : vector<7x224xf32>
    %c0_43 = arith.constant 0 : index
    %c0_44 = arith.constant 0 : index
    %68 = vector.load %arg6[%c0_43, %c0_44] : memref<1x224xf32, #tpu.memory_space<vmem>>, vector<1x224xf32>
    %69 = vector.broadcast %68 : vector<1x224xf32> to vector<7x224xf32>
    %70 = arith.addf %67, %69 : vector<7x224xf32>
    %cst_45 = arith.constant 0.000000e+00 : f32
    %71 = vector.broadcast %cst_45 : f32 to vector<7x224xf32>
    %72 = arith.maximumf %70, %71 : vector<7x224xf32>
    %c0_46 = arith.constant 0 : index
    %c0_47 = arith.constant 0 : index
    %73 = vector.load %arg8[%c0_46, %c0_47] : memref<1x32xf32, #tpu.memory_space<vmem>>, vector<1x32xf32>
    %74 = vector.extract_strided_slice %72 {offsets = [0, 0], sizes = [1, 224], strides = [1, 1]} : vector<7x224xf32> to vector<1x224xf32>
    %c0_48 = arith.constant 0 : index
    %c0_49 = arith.constant 0 : index
    %c0_50 = arith.constant 0 : index
    %75 = vector.load %arg7[%c0_48, %c0_49, %c0_50] : memref<7x224x32xf32, #tpu.memory_space<vmem>>, vector<1x224x32xf32>
    %76 = vector.shape_cast %75 : vector<1x224x32xf32> to vector<224x32xf32>
    %cst_51 = arith.constant dense<0.000000e+00> : vector<1x32xf32>
    %77 = tpu.matmul %74, %76, %cst_51 {dimension_numbers = #tpu.dot_dimension_numbers<[1], [0], [0], [1], [0, 0, 1, 1], [], []>} : vector<1x224xf32>, vector<224x32xf32>, vector<1x32xf32> -> vector<1x32xf32>
    %78 = arith.addf %73, %77 : vector<1x32xf32>
    %79 = vector.extract_strided_slice %72 {offsets = [1, 0], sizes = [1, 224], strides = [1, 1]} : vector<7x224xf32> to vector<1x224xf32>
    %c1_52 = arith.constant 1 : index
    %c0_53 = arith.constant 0 : index
    %c0_54 = arith.constant 0 : index
    %80 = vector.load %arg7[%c1_52, %c0_53, %c0_54] : memref<7x224x32xf32, #tpu.memory_space<vmem>>, vector<1x224x32xf32>
    %81 = vector.shape_cast %80 : vector<1x224x32xf32> to vector<224x32xf32>
    %cst_55 = arith.constant dense<0.000000e+00> : vector<1x32xf32>
    %82 = tpu.matmul %79, %81, %cst_55 {dimension_numbers = #tpu.dot_dimension_numbers<[1], [0], [0], [1], [0, 0, 1, 1], [], []>} : vector<1x224xf32>, vector<224x32xf32>, vector<1x32xf32> -> vector<1x32xf32>
    %83 = arith.addf %78, %82 : vector<1x32xf32>
    %84 = vector.extract_strided_slice %72 {offsets = [2, 0], sizes = [1, 224], strides = [1, 1]} : vector<7x224xf32> to vector<1x224xf32>
    %c2_56 = arith.constant 2 : index
    %c0_57 = arith.constant 0 : index
    %c0_58 = arith.constant 0 : index
    %85 = vector.load %arg7[%c2_56, %c0_57, %c0_58] : memref<7x224x32xf32, #tpu.memory_space<vmem>>, vector<1x224x32xf32>
    %86 = vector.shape_cast %85 : vector<1x224x32xf32> to vector<224x32xf32>
    %cst_59 = arith.constant dense<0.000000e+00> : vector<1x32xf32>
    %87 = tpu.matmul %84, %86, %cst_59 {dimension_numbers = #tpu.dot_dimension_numbers<[1], [0], [0], [1], [0, 0, 1, 1], [], []>} : vector<1x224xf32>, vector<224x32xf32>, vector<1x32xf32> -> vector<1x32xf32>
    %88 = arith.addf %83, %87 : vector<1x32xf32>
    %89 = vector.extract_strided_slice %72 {offsets = [3, 0], sizes = [1, 224], strides = [1, 1]} : vector<7x224xf32> to vector<1x224xf32>
    %c3_60 = arith.constant 3 : index
    %c0_61 = arith.constant 0 : index
    %c0_62 = arith.constant 0 : index
    %90 = vector.load %arg7[%c3_60, %c0_61, %c0_62] : memref<7x224x32xf32, #tpu.memory_space<vmem>>, vector<1x224x32xf32>
    %91 = vector.shape_cast %90 : vector<1x224x32xf32> to vector<224x32xf32>
    %cst_63 = arith.constant dense<0.000000e+00> : vector<1x32xf32>
    %92 = tpu.matmul %89, %91, %cst_63 {dimension_numbers = #tpu.dot_dimension_numbers<[1], [0], [0], [1], [0, 0, 1, 1], [], []>} : vector<1x224xf32>, vector<224x32xf32>, vector<1x32xf32> -> vector<1x32xf32>
    %93 = arith.addf %88, %92 : vector<1x32xf32>
    %94 = vector.extract_strided_slice %72 {offsets = [4, 0], sizes = [1, 224], strides = [1, 1]} : vector<7x224xf32> to vector<1x224xf32>
    %c4 = arith.constant 4 : index
    %c0_64 = arith.constant 0 : index
    %c0_65 = arith.constant 0 : index
    %95 = vector.load %arg7[%c4, %c0_64, %c0_65] : memref<7x224x32xf32, #tpu.memory_space<vmem>>, vector<1x224x32xf32>
    %96 = vector.shape_cast %95 : vector<1x224x32xf32> to vector<224x32xf32>
    %cst_66 = arith.constant dense<0.000000e+00> : vector<1x32xf32>
    %97 = tpu.matmul %94, %96, %cst_66 {dimension_numbers = #tpu.dot_dimension_numbers<[1], [0], [0], [1], [0, 0, 1, 1], [], []>} : vector<1x224xf32>, vector<224x32xf32>, vector<1x32xf32> -> vector<1x32xf32>
    %98 = arith.addf %93, %97 : vector<1x32xf32>
    %99 = vector.extract_strided_slice %72 {offsets = [5, 0], sizes = [1, 224], strides = [1, 1]} : vector<7x224xf32> to vector<1x224xf32>
    %c5 = arith.constant 5 : index
    %c0_67 = arith.constant 0 : index
    %c0_68 = arith.constant 0 : index
    %100 = vector.load %arg7[%c5, %c0_67, %c0_68] : memref<7x224x32xf32, #tpu.memory_space<vmem>>, vector<1x224x32xf32>
    %101 = vector.shape_cast %100 : vector<1x224x32xf32> to vector<224x32xf32>
    %cst_69 = arith.constant dense<0.000000e+00> : vector<1x32xf32>
    %102 = tpu.matmul %99, %101, %cst_69 {dimension_numbers = #tpu.dot_dimension_numbers<[1], [0], [0], [1], [0, 0, 1, 1], [], []>} : vector<1x224xf32>, vector<224x32xf32>, vector<1x32xf32> -> vector<1x32xf32>
    %103 = arith.addf %98, %102 : vector<1x32xf32>
    %104 = vector.extract_strided_slice %72 {offsets = [6, 0], sizes = [1, 224], strides = [1, 1]} : vector<7x224xf32> to vector<1x224xf32>
    %c6 = arith.constant 6 : index
    %c0_70 = arith.constant 0 : index
    %c0_71 = arith.constant 0 : index
    %105 = vector.load %arg7[%c6, %c0_70, %c0_71] : memref<7x224x32xf32, #tpu.memory_space<vmem>>, vector<1x224x32xf32>
    %106 = vector.shape_cast %105 : vector<1x224x32xf32> to vector<224x32xf32>
    %cst_72 = arith.constant dense<0.000000e+00> : vector<1x32xf32>
    %107 = tpu.matmul %104, %106, %cst_72 {dimension_numbers = #tpu.dot_dimension_numbers<[1], [0], [0], [1], [0, 0, 1, 1], [], []>} : vector<1x224xf32>, vector<224x32xf32>, vector<1x32xf32> -> vector<1x32xf32>
    %108 = arith.addf %103, %107 : vector<1x32xf32>
    %cst_73 = arith.constant 0.000000e+00 : f32
    %109 = vector.broadcast %cst_73 : f32 to vector<1x32xf32>
    %110 = arith.maximumf %108, %109 : vector<1x32xf32>
    %c0_74 = arith.constant 0 : index
    %c0_75 = arith.constant 0 : index
    %111 = vector.load %arg9[%c0_74, %c0_75] : memref<32x16xf32, #tpu.memory_space<vmem>>, vector<32x16xf32>
    %cst_76 = arith.constant dense<0.000000e+00> : vector<1x16xf32>
    %112 = tpu.matmul %110, %111, %cst_76 {dimension_numbers = #tpu.dot_dimension_numbers<[1], [0], [0], [1], [0, 0, 1, 1], [], []>} : vector<1x32xf32>, vector<32x16xf32>, vector<1x16xf32> -> vector<1x16xf32>
    %c0_77 = arith.constant 0 : index
    %c0_78 = arith.constant 0 : index
    %113 = vector.load %arg10[%c0_77, %c0_78] : memref<1x16xf32, #tpu.memory_space<vmem>>, vector<1x16xf32>
    %114 = arith.addf %112, %113 : vector<1x16xf32>
    %115 = vector.extract_strided_slice %114 {offsets = [0, 0], sizes = [1, 8], strides = [1, 1]} : vector<1x16xf32> to vector<1x8xf32>
    %116 = vector.extract_strided_slice %114 {offsets = [0, 8], sizes = [1, 8], strides = [1, 1]} : vector<1x16xf32> to vector<1x8xf32>
    %117 = math.exp %116 : vector<1x8xf32>
    %c0_79 = arith.constant 0 : index
    %c0_80 = arith.constant 0 : index
    %c0_81 = arith.constant 0 : index
    %118 = vector.load %arg2[%c0_79, %c0_80, %c0_81] : memref<1x1x8xf32, #tpu.memory_space<vmem>>, vector<1x1x8xf32>
    %119 = vector.shape_cast %118 : vector<1x1x8xf32> to vector<1x8xf32>
    %120 = arith.mulf %117, %119 : vector<1x8xf32>
    %121 = arith.addf %115, %120 : vector<1x8xf32>
    %c0_82 = arith.constant 0 : index
    %c0_83 = arith.constant 0 : index
    %c0_84 = arith.constant 0 : index
    %122 = vector.load %arg20[%c0_82, %c0_83, %c0_84] : memref<1x1x8xf32, #tpu.memory_space<vmem>>, vector<1x1x8xf32>
    %123 = vector.shape_cast %122 : vector<1x1x8xf32> to vector<1x8xf32>
    %124 = vector.shape_cast %115 : vector<1x8xf32> to vector<1x1x8xf32>
    tpu.vector_store %arg20[%c0_82, %c0_83, %c0_84], %124 {strides = array<i32>} : memref<1x1x8xf32, #tpu.memory_space<vmem>>, vector<1x1x8xf32>,
    %c0_85 = arith.constant 0 : index
    %c0_86 = arith.constant 0 : index
    %c0_87 = arith.constant 0 : index
    %125 = vector.load %arg21[%c0_85, %c0_86, %c0_87] : memref<1x1x8xf32, #tpu.memory_space<vmem>>, vector<1x1x8xf32>
    %126 = vector.shape_cast %125 : vector<1x1x8xf32> to vector<1x8xf32>
    %127 = vector.shape_cast %116 : vector<1x8xf32> to vector<1x1x8xf32>
    tpu.vector_store %arg21[%c0_85, %c0_86, %c0_87], %127 {strides = array<i32>} : memref<1x1x8xf32, #tpu.memory_space<vmem>>, vector<1x1x8xf32>,
    %c0_88 = arith.constant 0 : index
    %c0_89 = arith.constant 0 : index
    %c0_90 = arith.constant 0 : index
    %128 = vector.load %arg22[%c0_88, %c0_89, %c0_90] : memref<1x1x8xf32, #tpu.memory_space<vmem>>, vector<1x1x8xf32>
    %129 = vector.shape_cast %128 : vector<1x1x8xf32> to vector<1x8xf32>
    %130 = vector.shape_cast %121 : vector<1x8xf32> to vector<1x1x8xf32>
    tpu.vector_store %arg22[%c0_88, %c0_89, %c0_90], %130 {strides = array<i32>} : memref<1x1x8xf32, #tpu.memory_space<vmem>>, vector<1x1x8xf32>,
    %c0_91 = arith.constant 0 : index
    %c0_92 = arith.constant 0 : index
    %131 = vector.load %arg11[%c0_91, %c0_92] : memref<8x32xf32, #tpu.memory_space<vmem>>, vector<8x32xf32>
    %cst_93 = arith.constant dense<0.000000e+00> : vector<1x32xf32>
    %132 = tpu.matmul %121, %131, %cst_93 {dimension_numbers = #tpu.dot_dimension_numbers<[1], [0], [0], [1], [0, 0, 1, 1], [], []>} : vector<1x8xf32>, vector<8x32xf32>, vector<1x32xf32> -> vector<1x32xf32>
    %c0_94 = arith.constant 0 : index
    %c0_95 = arith.constant 0 : index
    %133 = vector.load %arg12[%c0_94, %c0_95] : memref<1x32xf32, #tpu.memory_space<vmem>>, vector<1x32xf32>
    %134 = arith.addf %132, %133 : vector<1x32xf32>
    %cst_96 = arith.constant 0.000000e+00 : f32
    %135 = vector.broadcast %cst_96 : f32 to vector<1x32xf32>
    %136 = arith.maximumf %134, %135 : vector<1x32xf32>
    %c0_97 = arith.constant 0 : index
    %c0_98 = arith.constant 0 : index
    %137 = vector.load %arg13[%c0_97, %c0_98] : memref<32x1568xf32, #tpu.memory_space<vmem>>, vector<32x1568xf32>
    %cst_99 = arith.constant dense<0.000000e+00> : vector<1x1568xf32>
    %138 = tpu.matmul %136, %137, %cst_99 {dimension_numbers = #tpu.dot_dimension_numbers<[1], [0], [0], [1], [0, 0, 1, 1], [], []>} : vector<1x32xf32>, vector<32x1568xf32>, vector<1x1568xf32> -> vector<1x1568xf32>
    %c0_100 = arith.constant 0 : index
    %c0_101 = arith.constant 0 : index
    %139 = vector.load %arg14[%c0_100, %c0_101] : memref<1x1568xf32, #tpu.memory_space<vmem>>, vector<1x1568xf32>
    %140 = arith.addf %138, %139 : vector<1x1568xf32>
    %cst_102 = arith.constant 0.000000e+00 : f32
    %141 = vector.broadcast %cst_102 : f32 to vector<1x1568xf32>
    %142 = arith.maximumf %140, %141 : vector<1x1568xf32>
    %143 = vector.extract_strided_slice %142 {offsets = [0, 0], sizes = [1, 224], strides = [1, 1]} : vector<1x1568xf32> to vector<1x224xf32>
    %144 = vector.extract_strided_slice %142 {offsets = [0, 224], sizes = [1, 224], strides = [1, 1]} : vector<1x1568xf32> to vector<1x224xf32>
    %145 = vector.extract_strided_slice %142 {offsets = [0, 448], sizes = [1, 224], strides = [1, 1]} : vector<1x1568xf32> to vector<1x224xf32>
    %146 = vector.extract_strided_slice %142 {offsets = [0, 672], sizes = [1, 224], strides = [1, 1]} : vector<1x1568xf32> to vector<1x224xf32>
    %147 = vector.extract_strided_slice %142 {offsets = [0, 896], sizes = [1, 224], strides = [1, 1]} : vector<1x1568xf32> to vector<1x224xf32>
    %148 = vector.extract_strided_slice %142 {offsets = [0, 1120], sizes = [1, 224], strides = [1, 1]} : vector<1x1568xf32> to vector<1x224xf32>
    %149 = vector.extract_strided_slice %142 {offsets = [0, 1344], sizes = [1, 224], strides = [1, 1]} : vector<1x1568xf32> to vector<1x224xf32>
    %150 = tpu.concatenate %143, %144, %145, %146, %147, %148, %149 in 0 : vector<1x224xf32>, vector<1x224xf32>, vector<1x224xf32>, vector<1x224xf32>, vector<1x224xf32>, vector<1x224xf32>, vector<1x224xf32> -> vector<7x224xf32>
    %c0_103 = arith.constant 0 : index
    %c0_104 = arith.constant 0 : index
    %151 = vector.load %arg15[%c0_103, %c0_104] : memref<224x896xf32, #tpu.memory_space<vmem>>, vector<224x896xf32>
    %cst_105 = arith.constant dense<0.000000e+00> : vector<7x896xf32>
    %152 = tpu.matmul %150, %151, %cst_105 {dimension_numbers = #tpu.dot_dimension_numbers<[1], [0], [0], [1], [0, 0, 1, 1], [], []>} : vector<7x224xf32>, vector<224x896xf32>, vector<7x896xf32> -> vector<7x896xf32>
    %153 = vector.extract_strided_slice %152 {offsets = [0, 224], sizes = [7, 224], strides = [1, 1]} : vector<7x896xf32> to vector<7x224xf32>
    %154 = vector.extract_strided_slice %152 {offsets = [0, 672], sizes = [7, 224], strides = [1, 1]} : vector<7x896xf32> to vector<7x224xf32>
    %cst_106 = arith.constant 0.000000e+00 : f32
    %155 = vector.broadcast %cst_106 : f32 to vector<1x224xf32>
    %156 = vector.extract_strided_slice %154 {offsets = [0, 0], sizes = [6, 224], strides = [1, 1]} : vector<7x224xf32> to vector<6x224xf32>
    %157 = tpu.concatenate %155, %156 in 0 : vector<1x224xf32>, vector<6x224xf32> -> vector<7x224xf32>
    %158 = arith.addf %153, %157 : vector<7x224xf32>
    %c0_107 = arith.constant 0 : index
    %c0_108 = arith.constant 0 : index
    %159 = vector.load %arg16[%c0_107, %c0_108] : memref<1x224xf32, #tpu.memory_space<vmem>>, vector<1x224xf32>
    %160 = vector.broadcast %159 : vector<1x224xf32> to vector<7x224xf32>
    %161 = arith.addf %158, %160 : vector<7x224xf32>
    %162 = vector.extract_strided_slice %152 {offsets = [0, 0], sizes = [7, 224], strides = [1, 1]} : vector<7x896xf32> to vector<7x224xf32>
    %cst_109 = arith.constant 0.000000e+00 : f32
    %163 = vector.broadcast %cst_109 : f32 to vector<1x224xf32>
    %164 = vector.extract_strided_slice %162 {offsets = [1, 0], sizes = [6, 224], strides = [1, 1]} : vector<7x224xf32> to vector<6x224xf32>
    %165 = tpu.concatenate %164, %163 in 0 : vector<6x224xf32>, vector<1x224xf32> -> vector<7x224xf32>
    %166 = vector.extract_strided_slice %152 {offsets = [0, 448], sizes = [7, 224], strides = [1, 1]} : vector<7x896xf32> to vector<7x224xf32>
    %167 = arith.addf %165, %166 : vector<7x224xf32>
    %c0_110 = arith.constant 0 : index
    %c0_111 = arith.constant 0 : index
    %168 = vector.load %arg16[%c0_110, %c0_111] : memref<1x224xf32, #tpu.memory_space<vmem>>, vector<1x224xf32>
    %169 = vector.broadcast %168 : vector<1x224xf32> to vector<7x224xf32>
    %170 = arith.addf %167, %169 : vector<7x224xf32>
    %cst_112 = arith.constant 0.000000e+00 : f32
    %171 = vector.broadcast %cst_112 : f32 to vector<7x224xf32>
    %172 = arith.maximumf %161, %171 : vector<7x224xf32>
    %cst_113 = arith.constant 0.000000e+00 : f32
    %173 = vector.broadcast %cst_113 : f32 to vector<7x224xf32>
    %174 = arith.maximumf %170, %173 : vector<7x224xf32>
    %c0_114 = arith.constant 0 : index
    %c0_115 = arith.constant 0 : index
    %c0_116 = arith.constant 0 : index
    %175 = vector.load %arg17[%c0_114, %c0_115, %c0_116] : memref<2x224x112xf32, #tpu.memory_space<vmem>>, vector<1x224x112xf32>
    %176 = vector.shape_cast %175 : vector<1x224x112xf32> to vector<224x112xf32>
    %cst_117 = arith.constant dense<0.000000e+00> : vector<7x112xf32>
    %177 = tpu.matmul %172, %176, %cst_117 {dimension_numbers = #tpu.dot_dimension_numbers<[1], [0], [0], [1], [0, 0, 1, 1], [], []>} : vector<7x224xf32>, vector<224x112xf32>, vector<7x112xf32> -> vector<7x112xf32>
    %c1_118 = arith.constant 1 : index
    %c0_119 = arith.constant 0 : index
    %c0_120 = arith.constant 0 : index
    %178 = vector.load %arg17[%c1_118, %c0_119, %c0_120] : memref<2x224x112xf32, #tpu.memory_space<vmem>>, vector<1x224x112xf32>
    %179 = vector.shape_cast %178 : vector<1x224x112xf32> to vector<224x112xf32>
    %cst_121 = arith.constant dense<0.000000e+00> : vector<7x112xf32>
    %180 = tpu.matmul %174, %179, %cst_121 {dimension_numbers = #tpu.dot_dimension_numbers<[1], [0], [0], [1], [0, 0, 1, 1], [], []>} : vector<7x224xf32>, vector<224x112xf32>, vector<7x112xf32> -> vector<7x112xf32>
    %c0_122 = arith.constant 0 : index
    %c0_123 = arith.constant 0 : index
    %181 = vector.load %arg18[%c0_122, %c0_123] : memref<1x28xf32, #tpu.memory_space<vmem>>, vector<1x28xf32>
    %182 = vector.extract_strided_slice %177 {offsets = [0, 0], sizes = [7, 28], strides = [1, 1]} : vector<7x112xf32> to vector<7x28xf32>
    %183 = vector.extract_strided_slice %180 {offsets = [0, 0], sizes = [7, 28], strides = [1, 1]} : vector<7x112xf32> to vector<7x28xf32>
    %cst_124 = arith.constant 0.000000e+00 : f32
    %184 = vector.broadcast %cst_124 : f32 to vector<1x28xf32>
    %185 = vector.extract_strided_slice %183 {offsets = [0, 0], sizes = [6, 28], strides = [1, 1]} : vector<7x28xf32> to vector<6x28xf32>
    %186 = tpu.concatenate %184, %185 in 0 : vector<1x28xf32>, vector<6x28xf32> -> vector<7x28xf32>
    %187 = arith.addf %182, %186 : vector<7x28xf32>
    %188 = vector.broadcast %181 : vector<1x28xf32> to vector<7x28xf32>
    %189 = arith.addf %187, %188 : vector<7x28xf32>
    %c0_125 = arith.constant 0 : index
    %c0_126 = arith.constant 0 : index
    %c0_127 = arith.constant 0 : index
    %c0_128 = arith.constant 0 : index
    %190 = vector.load %arg19[%c0_125, %c0_126, %c0_127, %c0_128] : memref<1x4x7x28xf32, #tpu.memory_space<vmem>>, vector<1x1x7x28xf32>
    %191 = vector.shape_cast %190 : vector<1x1x7x28xf32> to vector<7x28xf32>
    %192 = vector.shape_cast %189 : vector<7x28xf32> to vector<1x1x7x28xf32>
    tpu.vector_store %arg19[%c0_125, %c0_126, %c0_127, %c0_128], %192 {strides = array<i32>} : memref<1x4x7x28xf32, #tpu.memory_space<vmem>>, vector<1x1x7x28xf32>,
    %193 = vector.extract_strided_slice %177 {offsets = [0, 28], sizes = [7, 28], strides = [1, 1]} : vector<7x112xf32> to vector<7x28xf32>
    %194 = vector.extract_strided_slice %180 {offsets = [0, 28], sizes = [7, 28], strides = [1, 1]} : vector<7x112xf32> to vector<7x28xf32>
    %195 = arith.addf %193, %194 : vector<7x28xf32>
    %196 = vector.broadcast %181 : vector<1x28xf32> to vector<7x28xf32>
    %197 = arith.addf %195, %196 : vector<7x28xf32>
    %c0_129 = arith.constant 0 : index
    %c1_130 = arith.constant 1 : index
    %c0_131 = arith.constant 0 : index
    %c0_132 = arith.constant 0 : index
    %198 = vector.load %arg19[%c0_129, %c1_130, %c0_131, %c0_132] : memref<1x4x7x28xf32, #tpu.memory_space<vmem>>, vector<1x1x7x28xf32>
    %199 = vector.shape_cast %198 : vector<1x1x7x28xf32> to vector<7x28xf32>
    %200 = vector.shape_cast %197 : vector<7x28xf32> to vector<1x1x7x28xf32>
    tpu.vector_store %arg19[%c0_129, %c1_130, %c0_131, %c0_132], %200 {strides = array<i32>} : memref<1x4x7x28xf32, #tpu.memory_space<vmem>>, vector<1x1x7x28xf32>,
    %201 = vector.extract_strided_slice %177 {offsets = [0, 56], sizes = [7, 28], strides = [1, 1]} : vector<7x112xf32> to vector<7x28xf32>
    %202 = vector.extract_strided_slice %180 {offsets = [0, 56], sizes = [7, 28], strides = [1, 1]} : vector<7x112xf32> to vector<7x28xf32>
    %203 = arith.addf %201, %202 : vector<7x28xf32>
    %204 = vector.broadcast %181 : vector<1x28xf32> to vector<7x28xf32>
    %205 = arith.addf %203, %204 : vector<7x28xf32>
    %c0_133 = arith.constant 0 : index
    %c2_134 = arith.constant 2 : index
    %c0_135 = arith.constant 0 : index
    %c0_136 = arith.constant 0 : index
    %206 = vector.load %arg19[%c0_133, %c2_134, %c0_135, %c0_136] : memref<1x4x7x28xf32, #tpu.memory_space<vmem>>, vector<1x1x7x28xf32>
    %207 = vector.shape_cast %206 : vector<1x1x7x28xf32> to vector<7x28xf32>
    %208 = vector.shape_cast %205 : vector<7x28xf32> to vector<1x1x7x28xf32>
    tpu.vector_store %arg19[%c0_133, %c2_134, %c0_135, %c0_136], %208 {strides = array<i32>} : memref<1x4x7x28xf32, #tpu.memory_space<vmem>>, vector<1x1x7x28xf32>,
    %209 = vector.extract_strided_slice %177 {offsets = [0, 84], sizes = [7, 28], strides = [1, 1]} : vector<7x112xf32> to vector<7x28xf32>
    %cst_137 = arith.constant 0.000000e+00 : f32
    %210 = vector.broadcast %cst_137 : f32 to vector<1x28xf32>
    %211 = vector.extract_strided_slice %209 {offsets = [1, 0], sizes = [6, 28], strides = [1, 1]} : vector<7x28xf32> to vector<6x28xf32>
    %212 = tpu.concatenate %211, %210 in 0 : vector<6x28xf32>, vector<1x28xf32> -> vector<7x28xf32>
    %213 = vector.extract_strided_slice %180 {offsets = [0, 84], sizes = [7, 28], strides = [1, 1]} : vector<7x112xf32> to vector<7x28xf32>
    %214 = arith.addf %212, %213 : vector<7x28xf32>
    %215 = vector.broadcast %181 : vector<1x28xf32> to vector<7x28xf32>
    %216 = arith.addf %214, %215 : vector<7x28xf32>
    %c0_138 = arith.constant 0 : index
    %c3_139 = arith.constant 3 : index
    %c0_140 = arith.constant 0 : index
    %c0_141 = arith.constant 0 : index
    %217 = vector.load %arg19[%c0_138, %c3_139, %c0_140, %c0_141] : memref<1x4x7x28xf32, #tpu.memory_space<vmem>>, vector<1x1x7x28xf32>
    %218 = vector.shape_cast %217 : vector<1x1x7x28xf32> to vector<7x28xf32>
    %219 = vector.shape_cast %216 : vector<7x28xf32> to vector<1x1x7x28xf32>
    tpu.vector_store %arg19[%c0_138, %c3_139, %c0_140, %c0_141], %219 {strides = array<i32>} : memref<1x4x7x28xf32, #tpu.memory_space<vmem>>, vector<1x1x7x28xf32>,
    return
  }
  func.func @transform_0(%arg0: i32) -> (i32, i32, i32, i32) {
    %c0_i32 = arith.constant 0 : i32
    %c0_i32_0 = arith.constant 0 : i32
    %c0_i32_1 = arith.constant 0 : i32
    %c0_i32_2 = arith.constant 0 : i32
    return %arg0, %c0_i32, %c0_i32_0, %c0_i32_1 : i32, i32, i32, i32
  }
  func.func @transform_1(%arg0: i32) -> (i32, i32, i32) {
    %c0_i32 = arith.constant 0 : i32
    %c0_i32_0 = arith.constant 0 : i32
    %c0_i32_1 = arith.constant 0 : i32
    return %arg0, %c0_i32, %c0_i32_0 : i32, i32, i32
  }
  func.func @transform_2(%arg0: i32) -> (i32, i32, i32) {
    %c0_i32 = arith.constant 0 : i32
    %c0_i32_0 = arith.constant 0 : i32
    %c0_i32_1 = arith.constant 0 : i32
    %c0_i32_2 = arith.constant 0 : i32
    return %c0_i32, %c0_i32_0, %c0_i32_1 : i32, i32, i32
  }
  func.func @transform_3(%arg0: i32) -> (i32, i32) {
    %c0_i32 = arith.constant 0 : i32
    %c0_i32_0 = arith.constant 0 : i32
    %c0_i32_1 = arith.constant 0 : i32
    return %c0_i32, %c0_i32_0 : i32, i32
  }
  func.func @transform_4(%arg0: i32) -> (i32, i32, i32) {
    %c0_i32 = arith.constant 0 : i32
    %c0_i32_0 = arith.constant 0 : i32
    %c0_i32_1 = arith.constant 0 : i32
    %c0_i32_2 = arith.constant 0 : i32
    return %c0_i32, %c0_i32_0, %c0_i32_1 : i32, i32, i32
  }
  func.func @transform_5(%arg0: i32) -> (i32, i32) {
    %c0_i32 = arith.constant 0 : i32
    %c0_i32_0 = arith.constant 0 : i32
    %c0_i32_1 = arith.constant 0 : i32
    return %c0_i32, %c0_i32_0 : i32, i32
  }
  func.func @transform_6(%arg0: i32) -> (i32, i32, i32) {
    %c0_i32 = arith.constant 0 : i32
    %c0_i32_0 = arith.constant 0 : i32
    %c0_i32_1 = arith.constant 0 : i32
    %c0_i32_2 = arith.constant 0 : i32
    return %c0_i32, %c0_i32_0, %c0_i32_1 : i32, i32, i32
  }
  func.func @transform_7(%arg0: i32) -> (i32, i32) {
    %c0_i32 = arith.constant 0 : i32
    %c0_i32_0 = arith.constant 0 : i32
    %c0_i32_1 = arith.constant 0 : i32
    return %c0_i32, %c0_i32_0 : i32, i32
  }
  func.func @transform_8(%arg0: i32) -> (i32, i32) {
    %c0_i32 = arith.constant 0 : i32
    %c0_i32_0 = arith.constant 0 : i32
    %c0_i32_1 = arith.constant 0 : i32
    return %c0_i32, %c0_i32_0 : i32, i32
  }
  func.func @transform_9(%arg0: i32) -> (i32, i32) {
    %c0_i32 = arith.constant 0 : i32
    %c0_i32_0 = arith.constant 0 : i32
    %c0_i32_1 = arith.constant 0 : i32
    return %c0_i32, %c0_i32_0 : i32, i32
  }
  func.func @transform_10(%arg0: i32) -> (i32, i32) {
    %c0_i32 = arith.constant 0 : i32
    %c0_i32_0 = arith.constant 0 : i32
    %c0_i32_1 = arith.constant 0 : i32
    return %c0_i32, %c0_i32_0 : i32, i32
  }
  func.func @transform_11(%arg0: i32) -> (i32, i32) {
    %c0_i32 = arith.constant 0 : i32
    %c0_i32_0 = arith.constant 0 : i32
    %c0_i32_1 = arith.constant 0 : i32
    return %c0_i32, %c0_i32_0 : i32, i32
  }
  func.func @transform_12(%arg0: i32) -> (i32, i32) {
    %c0_i32 = arith.constant 0 : i32
    %c0_i32_0 = arith.constant 0 : i32
    %c0_i32_1 = arith.constant 0 : i32
    return %c0_i32, %c0_i32_0 : i32, i32
  }
  func.func @transform_13(%arg0: i32) -> (i32, i32) {
    %c0_i32 = arith.constant 0 : i32
    %c0_i32_0 = arith.constant 0 : i32
    %c0_i32_1 = arith.constant 0 : i32
    return %c0_i32, %c0_i32_0 : i32, i32
  }
  func.func @transform_14(%arg0: i32) -> (i32, i32) {
    %c0_i32 = arith.constant 0 : i32
    %c0_i32_0 = arith.constant 0 : i32
    %c0_i32_1 = arith.constant 0 : i32
    return %c0_i32, %c0_i32_0 : i32, i32
  }
  func.func @transform_15(%arg0: i32) -> (i32, i32) {
    %c0_i32 = arith.constant 0 : i32
    %c0_i32_0 = arith.constant 0 : i32
    %c0_i32_1 = arith.constant 0 : i32
    return %c0_i32, %c0_i32_0 : i32, i32
  }
  func.func @transform_16(%arg0: i32) -> (i32, i32, i32) {
    %c0_i32 = arith.constant 0 : i32
    %c0_i32_0 = arith.constant 0 : i32
    %c0_i32_1 = arith.constant 0 : i32
    %c0_i32_2 = arith.constant 0 : i32
    return %c0_i32, %c0_i32_0, %c0_i32_1 : i32, i32, i32
  }
  func.func @transform_17(%arg0: i32) -> (i32, i32) {
    %c0_i32 = arith.constant 0 : i32
    %c0_i32_0 = arith.constant 0 : i32
    %c0_i32_1 = arith.constant 0 : i32
    return %c0_i32, %c0_i32_0 : i32, i32
  }
  func.func @transform_18(%arg0: i32) -> (i32, i32, i32, i32) {
    %c0_i32 = arith.constant 0 : i32
    %c0_i32_0 = arith.constant 0 : i32
    %c0_i32_1 = arith.constant 0 : i32
    %c0_i32_2 = arith.constant 0 : i32
    return %arg0, %c0_i32, %c0_i32_0, %c0_i32_1 : i32, i32, i32, i32
  }
  func.func @transform_19(%arg0: i32) -> (i32, i32, i32) {
    %c0_i32 = arith.constant 0 : i32
    %c0_i32_0 = arith.constant 0 : i32
    %c0_i32_1 = arith.constant 0 : i32
    return %arg0, %c0_i32, %c0_i32_0 : i32, i32, i32
  }
  func.func @transform_20(%arg0: i32) -> (i32, i32, i32) {
    %c0_i32 = arith.constant 0 : i32
    %c0_i32_0 = arith.constant 0 : i32
    %c0_i32_1 = arith.constant 0 : i32
    return %arg0, %c0_i32, %c0_i32_0 : i32, i32, i32
  }
  func.func @transform_21(%arg0: i32) -> (i32, i32, i32) {
    %c0_i32 = arith.constant 0 : i32
    %c0_i32_0 = arith.constant 0 : i32
    %c0_i32_1 = arith.constant 0 : i32
    return %arg0, %c0_i32, %c0_i32_0 : i32, i32, i32
  }
}

</mosaic_0001>

<llo_original>
// kernel: vae_forward.1
$region0: #{vae_forward.1}
  #allocation0 [shape = 'u32[]', space=smem, size = 0x4, offset = 0x4, fixed_abs, tag = 'smem constant byte address 0x4 - core index']
  #allocation1 [shape = 'u32[144,128]{1,0:T(1,128)}', space=vmem, size = 0x12000, scoped, tag = 'internal scratch']
  %s0 = inlined_call_operand.vmem [shape: f32[2,4,7,28], index: 0, kind: input, shape index: {}]
  %s1 = inlined_call_operand.vmem [shape: f32[2,1,8], index: 1, kind: input, shape index: {}]
  %s2 = inlined_call_operand.vmem [shape: f32[4,28,448], index: 2, kind: input, shape index: {}]
  %s3 = inlined_call_operand.vmem [shape: f32[1,224], index: 3, kind: input, shape index: {}]
  %s4 = inlined_call_operand.vmem [shape: f32[2,224,448], index: 4, kind: input, shape index: {}]
  %s5 = inlined_call_operand.vmem [shape: f32[1,224], index: 5, kind: input, shape index: {}]
  %s6 = inlined_call_operand.vmem [shape: f32[7,224,32], index: 6, kind: input, shape index: {}]
  %s7 = inlined_call_operand.vmem [shape: f32[1,32], index: 7, kind: input, shape index: {}]
  %s8 = inlined_call_operand.vmem [shape: f32[32,16], index: 8, kind: input, shape index: {}]
  %s9 = inlined_call_operand.vmem [shape: f32[1,16], index: 9, kind: input, shape index: {}]
  %s10 = inlined_call_operand.vmem [shape: f32[8,32], index: 10, kind: input, shape index: {}]
  %s11 = inlined_call_operand.vmem [shape: f32[1,32], index: 11, kind: input, shape index: {}]
  %s12 = inlined_call_operand.vmem [shape: f32[32,1568], index: 12, kind: input, shape index: {}]
  %s13 = inlined_call_operand.vmem [shape: f32[1,1568], index: 13, kind: input, shape index: {}]
  %s14 = inlined_call_operand.hbm [shape: f32[224,896], index: 14, kind: input, shape index: {}]
  %s15 = inlined_call_operand.vmem [shape: f32[1,224], index: 15, kind: input, shape index: {}]
  %s16 = inlined_call_operand.vmem [shape: f32[2,224,112], index: 16, kind: input, shape index: {}]
  %s17 = inlined_call_operand.vmem [shape: f32[1,28], index: 17, kind: input, shape index: {}]
  %s18 = inlined_call_operand.vmem [shape: f32[2,4,7,28], index: 18, kind: output, shape index: {0}]
  %s19 = inlined_call_operand.hbm [shape: f32[2,1,8], index: 19, kind: output, shape index: {1}]
  %s20 = inlined_call_operand.hbm [shape: f32[2,1,8], index: 20, kind: output, shape index: {2}]
  %s21 = inlined_call_operand.hbm [shape: f32[2,1,8], index: 21, kind: output, shape index: {3}]
  %22 = xla_tuple %s18, %s19, %s20, %s21
  %s23 = sld [smem:[#allocation0]]
  $region133: #{vae_forward.1} parent=0
    _
  %s25 = ssub.s32 1, %s23
  %s26 = scalar_select 0, %s25, %s23
  $region1: #{vae_forward.1} parent=0
    #allocation2 [shape = 'u8[802816]{0}', space=vmem, size = 0xc4000, scoped, tag = 'input window, operand 14, single buffered']
    #allocation3 [shape = 's32[2]{0}', space=sflag, size = 0x8, scoped, tag = 'scoped memory for vae_forward.1']
    #allocation4 [shape = 's32[2]{0}', space=sflag, size = 0x8, scoped, tag = 'scoped memory for vae_forward.1']
    #allocation5 [shape = 'u8[1024]{0}', space=vmem, size = 0x400, scoped, tag = 'output window, operand 1']
    #allocation6 [shape = 'u8[1024]{0}', space=vmem, size = 0x400, scoped, tag = 'output window, operand 2']
    #allocation7 [shape = 's32[2]{0}', space=sflag, size = 0x8, scoped, tag = 'scoped memory for vae_forward.1']
    #allocation8 [shape = 'u8[1024]{0}', space=vmem, size = 0x400, scoped, tag = 'output window, operand 3']
    %27 = vsyncpa [#allocation3], 0
    %28 = vsyncpa [#allocation4], 0
    %s29 = scalar_lea.sflag [#allocation4], 1
    %30 = vsyncpa %s29, 0
    %31 = vsyncpa [#allocation7], 0
    %s32 = scalar_lea.sflag [#allocation7], 1
    %33 = vsyncpa %s32, 0
    loop: start=0, step=1, limit=4
    $region2: #{vae_forward.1} parent=1 // loop_pre_header
      _
    $region3: #{vae_forward.1} parent=1 // loop_header
      %s35 = sphi 0, %s39
      %p36 = scmp.ge.s32.totalorder %s35, 4
      %s45 = sphi 0, %s47
      %s48 = sphi 0, %s45
      %s49 = sphi 0, %s48
      %s65 = sphi 0, %s49
      %s71 = sphi 0, %s73
      %s74 = sphi 0, %s71
      %s75 = sphi 0, %s74
      %s91 = sphi 0, %s75
      %s95 = sphi 0, %s95
      %s97 = sphi 0, %s95
      %s98 = sphi 0, %s97
      %s112 = sphi 0, %s98
      %s116 = sphi 0, %s116
      %s118 = sphi 0, %s116
      %s119 = sphi 0, %s118
      %s133 = sphi 0, %s119
      %s137 = sphi 0, %s137
      %s139 = sphi 0, %s137
      %s140 = sphi 0, %s139
      %s154 = sphi 0, %s140
      %s158 = sphi 0, %s158
      %s160 = sphi 0, %s158
      %s161 = sphi 0, %s160
      %s175 = sphi 0, %s161
      %s179 = sphi 0, %s179
      %s181 = sphi 0, %s179
      %s182 = sphi 0, %s181
      %s196 = sphi 0, %s182
      %s200 = sphi 0, %s200
      %s202 = sphi 0, %s200
      %s203 = sphi 0, %s202
      %s217 = sphi 0, %s203
      %s221 = sphi 0, %s221
      %s223 = sphi 0, %s221
      %s224 = sphi 0, %s223
      %s238 = sphi 0, %s224
      %s242 = sphi 0, %s242
      %s244 = sphi 0, %s242
      %s245 = sphi 0, %s244
      %s259 = sphi 0, %s245
      %s263 = sphi 0, %s263
      %s265 = sphi 0, %s263
      %s266 = sphi 0, %s265
      %s280 = sphi 0, %s266
      %s284 = sphi 0, %s284
      %s286 = sphi 0, %s284
      %s287 = sphi 0, %s286
      %s301 = sphi 0, %s287
      %s305 = sphi 0, %s305
      %s307 = sphi 0, %s305
      %s308 = sphi 0, %s307
      %s322 = sphi 0, %s308
      %s326 = sphi 0, %s326
      %s328 = sphi 0, %s326
      %s329 = sphi 0, %s328
      %s343 = sphi 0, %s329
      %s347 = sphi 0, %s347
      %s349 = sphi 0, %s347
      %s350 = sphi 0, %s349
      %s364 = sphi 0, %s350
      %s368 = sphi 0, %s368
      %s370 = sphi 0, %s368
      %s371 = sphi 0, %s370
      %s385 = sphi 0, %s371
      %s389 = sphi 0, %s389
      %s391 = sphi 0, %s389
      %s392 = sphi 0, %s391
      %s406 = sphi 0, %s392
      %s410 = sphi 0, %s410
      %s412 = sphi 0, %s410
      %s413 = sphi 0, %s412
      %s427 = sphi 0, %s413
      %s433 = sphi 0, %s435
      %s436 = sphi 0, %s433
      %s437 = sphi 0, %s436
      %s453 = sphi 0, %s437
      %s459 = sphi 0, %s461
      %s462 = sphi 0, %s459
      %s463 = sphi 0, %s462
      %s479 = sphi 0, %s463
      %s485 = sphi 0, %s487
      %s488 = sphi 0, %s485
      %s489 = sphi 0, %s488
      %s505 = sphi 0, %s489
      %s511 = sphi 0, %s513
      %s514 = sphi 0, %s511
      %s515 = sphi 0, %s514
      %s531 = sphi 0, %s515
    $region4: #{vae_forward.1} parent=1 // loop_header_branch
      %38 = sbr.rel (%p36) target = $region8
    $region5: #{vae_forward.1} parent=1 // loop_body
      %s40 = ssub.s32 %s35, 1
      %s41 = ssub.s32 %s35, 2
      %s42 = sadd.s32 %s35, 1
      %s43 = ssub.s32 %s35, %s42
      %p44 = scmp.eq.s32.totalorder %s43, 0
      %s46 = sadd.s32 %s45, 1
      %s47 = scalar_select %p44, %s45, %s46
      %p50 = pneg %p44
      %p51 = scmp.eq.s32.totalorder %s35, 1
      %p52 = por %p50, %p51
      %p53 = scmp.ne.s32.totalorder %s45, %s48
      %p54 = scmp.eq.s32.totalorder %s35, 0
      %p55 = por %p53, %p54
      %p56 = scmp.ne.s32.totalorder %s45, %s48
      %p57 = scmp.eq.s32.totalorder %s40, 1
      %p58 = por %p56, %p57
      %p59 = scmp.ne.s32.totalorder %s48, %s49
      %p60 = scmp.eq.s32.totalorder %s40, 0
      %p61 = por %p59, %p60
      %p62 = scmp.ne.s32.totalorder %s48, %s49
      %p63 = scmp.eq.s32.totalorder %s41, 1
      %p64 = por %p62, %p63
      %p66 = scmp.ne.s32.totalorder %s49, %s65
      %p67 = scmp.eq.s32.totalorder %s41, 0
      %p68 = por %p66, %p67
      %s69 = ssub.s32 %s35, %s42
      %p70 = scmp.eq.s32.totalorder %s69, 0
      %s72 = sadd.s32 %s71, 1
      %s73 = scalar_select %p70, %s71, %s72
      %p76 = pneg %p70
      %p77 = scmp.eq.s32.totalorder %s35, 1
      %p78 = por %p76, %p77
      %p79 = scmp.ne.s32.totalorder %s71, %s74
      %p80 = scmp.eq.s32.totalorder %s35, 0
      %p81 = por %p79, %p80
      %p82 = scmp.ne.s32.totalorder %s71, %s74
      %p83 = scmp.eq.s32.totalorder %s40, 1
      %p84 = por %p82, %p83
      %p85 = scmp.ne.s32.totalorder %s74, %s75
      %p86 = scmp.eq.s32.totalorder %s40, 0
      %p87 = por %p85, %p86
      %p88 = scmp.ne.s32.totalorder %s74, %s75
      %p89 = scmp.eq.s32.totalorder %s41, 1
      %p90 = por %p88, %p89
      %p92 = scmp.ne.s32.totalorder %s75, %s91
      %p93 = scmp.eq.s32.totalorder %s41, 0
      %p94 = por %p92, %p93
      %s96 = sadd.s32 %s95, 1
      %p99 = scmp.eq.s32.totalorder %s35, 1
      %p100 = scmp.ne.s32.totalorder %s95, %s97
      %p101 = scmp.eq.s32.totalorder %s35, 0
      %p102 = por %p100, %p101
      %p103 = scmp.ne.s32.totalorder %s95, %s97
      %p104 = scmp.eq.s32.totalorder %s40, 1
      %p105 = por %p103, %p104
      %p106 = scmp.ne.s32.totalorder %s97, %s98
      %p107 = scmp.eq.s32.totalorder %s40, 0
      %p108 = por %p106, %p107
      %p109 = scmp.ne.s32.totalorder %s97, %s98
      %p110 = scmp.eq.s32.totalorder %s41, 1
      %p111 = por %p109, %p110
      %p113 = scmp.ne.s32.totalorder %s98, %s112
      %p114 = scmp.eq.s32.totalorder %s41, 0
      %p115 = por %p113, %p114
      %s117 = sadd.s32 %s116, 1
      %p120 = scmp.eq.s32.totalorder %s35, 1
      %p121 = scmp.ne.s32.totalorder %s116, %s118
      %p122 = scmp.eq.s32.totalorder %s35, 0
      %p123 = por %p121, %p122
      %p124 = scmp.ne.s32.totalorder %s116, %s118
      %p125 = scmp.eq.s32.totalorder %s40, 1
      %p126 = por %p124, %p125
      %p127 = scmp.ne.s32.totalorder %s118, %s119
      %p128 = scmp.eq.s32.totalorder %s40, 0
      %p129 = por %p127, %p128
      %p130 = scmp.ne.s32.totalorder %s118, %s119
      %p131 = scmp.eq.s32.totalorder %s41, 1
      %p132 = por %p130, %p131
      %p134 = scmp.ne.s32.totalorder %s119, %s133
      %p135 = scmp.eq.s32.totalorder %s41, 0
      %p136 = por %p134, %p135
      %s138 = sadd.s32 %s137, 1
      %p141 = scmp.eq.s32.totalorder %s35, 1
      %p142 = scmp.ne.s32.totalorder %s137, %s139
      %p143 = scmp.eq.s32.totalorder %s35, 0
      %p144 = por %p142, %p143
      %p145 = scmp.ne.s32.totalorder %s137, %s139
      %p146 = scmp.eq.s32.totalorder %s40, 1
      %p147 = por %p145, %p146
      %p148 = scmp.ne.s32.totalorder %s139, %s140
      %p149 = scmp.eq.s32.totalorder %s40, 0
      %p150 = por %p148, %p149
      %p151 = scmp.ne.s32.totalorder %s139, %s140
      %p152 = scmp.eq.s32.totalorder %s41, 1
      %p153 = por %p151, %p152
      %p155 = scmp.ne.s32.totalorder %s140, %s154
      %p156 = scmp.eq.s32.totalorder %s41, 0
      %p157 = por %p155, %p156
      %s159 = sadd.s32 %s158, 1
      %p162 = scmp.eq.s32.totalorder %s35, 1
      %p163 = scmp.ne.s32.totalorder %s158, %s160
      %p164 = scmp.eq.s32.totalorder %s35, 0
      %p165 = por %p163, %p164
      %p166 = scmp.ne.s32.totalorder %s158, %s160
      %p167 = scmp.eq.s32.totalorder %s40, 1
      %p168 = por %p166, %p167
      %p169 = scmp.ne.s32.totalorder %s160, %s161
      %p170 = scmp.eq.s32.totalorder %s40, 0
      %p171 = por %p169, %p170
      %p172 = scmp.ne.s32.totalorder %s160, %s161
      %p173 = scmp.eq.s32.totalorder %s41, 1
      %p174 = por %p172, %p173
      %p176 = scmp.ne.s32.totalorder %s161, %s175
      %p177 = scmp.eq.s32.totalorder %s41, 0
      %p178 = por %p176, %p177
      %s180 = sadd.s32 %s179, 1
      %p183 = scmp.eq.s32.totalorder %s35, 1
      %p184 = scmp.ne.s32.totalorder %s179, %s181
      %p185 = scmp.eq.s32.totalorder %s35, 0
      %p186 = por %p184, %p185
      %p187 = scmp.ne.s32.totalorder %s179, %s181
      %p188 = scmp.eq.s32.totalorder %s40, 1
      %p189 = por %p187, %p188
      %p190 = scmp.ne.s32.totalorder %s181, %s182
      %p191 = scmp.eq.s32.totalorder %s40, 0
      %p192 = por %p190, %p191
      %p193 = scmp.ne.s32.totalorder %s181, %s182
      %p194 = scmp.eq.s32.totalorder %s41, 1
      %p195 = por %p193, %p194
      %p197 = scmp.ne.s32.totalorder %s182, %s196
      %p198 = scmp.eq.s32.totalorder %s41, 0
      %p199 = por %p197, %p198
      %s201 = sadd.s32 %s200, 1
      %p204 = scmp.eq.s32.totalorder %s35, 1
      %p205 = scmp.ne.s32.totalorder %s200, %s202
      %p206 = scmp.eq.s32.totalorder %s35, 0
      %p207 = por %p205, %p206
      %p208 = scmp.ne.s32.totalorder %s200, %s202
      %p209 = scmp.eq.s32.totalorder %s40, 1
      %p210 = por %p208, %p209
      %p211 = scmp.ne.s32.totalorder %s202, %s203
      %p212 = scmp.eq.s32.totalorder %s40, 0
      %p213 = por %p211, %p212
      %p214 = scmp.ne.s32.totalorder %s202, %s203
      %p215 = scmp.eq.s32.totalorder %s41, 1
      %p216 = por %p214, %p215
      %p218 = scmp.ne.s32.totalorder %s203, %s217
      %p219 = scmp.eq.s32.totalorder %s41, 0
      %p220 = por %p218, %p219
      %s222 = sadd.s32 %s221, 1
      %p225 = scmp.eq.s32.totalorder %s35, 1
      %p226 = scmp.ne.s32.totalorder %s221, %s223
      %p227 = scmp.eq.s32.totalorder %s35, 0
      %p228 = por %p226, %p227
      %p229 = scmp.ne.s32.totalorder %s221, %s223
      %p230 = scmp.eq.s32.totalorder %s40, 1
      %p231 = por %p229, %p230
      %p232 = scmp.ne.s32.totalorder %s223, %s224
      %p233 = scmp.eq.s32.totalorder %s40, 0
      %p234 = por %p232, %p233
      %p235 = scmp.ne.s32.totalorder %s223, %s224
      %p236 = scmp.eq.s32.totalorder %s41, 1
      %p237 = por %p235, %p236
      %p239 = scmp.ne.s32.totalorder %s224, %s238
      %p240 = scmp.eq.s32.totalorder %s41, 0
      %p241 = por %p239, %p240
      %s243 = sadd.s32 %s242, 1
      %p246 = scmp.eq.s32.totalorder %s35, 1
      %p247 = scmp.ne.s32.totalorder %s242, %s244
      %p248 = scmp.eq.s32.totalorder %s35, 0
      %p249 = por %p247, %p248
      %p250 = scmp.ne.s32.totalorder %s242, %s244
      %p251 = scmp.eq.s32.totalorder %s40, 1
      %p252 = por %p250, %p251
      %p253 = scmp.ne.s32.totalorder %s244, %s245
      %p254 = scmp.eq.s32.totalorder %s40, 0
      %p255 = por %p253, %p254
      %p256 = scmp.ne.s32.totalorder %s244, %s245
      %p257 = scmp.eq.s32.totalorder %s41, 1
      %p258 = por %p256, %p257
      %p260 = scmp.ne.s32.totalorder %s245, %s259
      %p261 = scmp.eq.s32.totalorder %s41, 0
      %p262 = por %p260, %p261
      %s264 = sadd.s32 %s263, 1
      %p267 = scmp.eq.s32.totalorder %s35, 1
      %p268 = scmp.ne.s32.totalorder %s263, %s265
      %p269 = scmp.eq.s32.totalorder %s35, 0
      %p270 = por %p268, %p269
      %p271 = scmp.ne.s32.totalorder %s263, %s265
      %p272 = scmp.eq.s32.totalorder %s40, 1
      %p273 = por %p271, %p272
      %p274 = scmp.ne.s32.totalorder %s265, %s266
      %p275 = scmp.eq.s32.totalorder %s40, 0
      %p276 = por %p274, %p275
      %p277 = scmp.ne.s32.totalorder %s265, %s266
      %p278 = scmp.eq.s32.totalorder %s41, 1
      %p279 = por %p277, %p278
      %p281 = scmp.ne.s32.totalorder %s266, %s280
      %p282 = scmp.eq.s32.totalorder %s41, 0
      %p283 = por %p281, %p282
      %s285 = sadd.s32 %s284, 1
      %p288 = scmp.eq.s32.totalorder %s35, 1
      %p289 = scmp.ne.s32.totalorder %s284, %s286
      %p290 = scmp.eq.s32.totalorder %s35, 0
      %p291 = por %p289, %p290
      %p292 = scmp.ne.s32.totalorder %s284, %s286
      %p293 = scmp.eq.s32.totalorder %s40, 1
      %p294 = por %p292, %p293
      %p295 = scmp.ne.s32.totalorder %s286, %s287
      %p296 = scmp.eq.s32.totalorder %s40, 0
      %p297 = por %p295, %p296
      %p298 = scmp.ne.s32.totalorder %s286, %s287
      %p299 = scmp.eq.s32.totalorder %s41, 1
      %p300 = por %p298, %p299
      %p302 = scmp.ne.s32.totalorder %s287, %s301
      %p303 = scmp.eq.s32.totalorder %s41, 0
      %p304 = por %p302, %p303
      %s306 = sadd.s32 %s305, 1
      %p309 = scmp.eq.s32.totalorder %s35, 1
      %p310 = scmp.ne.s32.totalorder %s305, %s307
      %p311 = scmp.eq.s32.totalorder %s35, 0
      %p312 = por %p310, %p311
      %p313 = scmp.ne.s32.totalorder %s305, %s307
      %p314 = scmp.eq.s32.totalorder %s40, 1
      %p315 = por %p313, %p314
      %p316 = scmp.ne.s32.totalorder %s307, %s308
      %p317 = scmp.eq.s32.totalorder %s40, 0
      %p318 = por %p316, %p317
      %p319 = scmp.ne.s32.totalorder %s307, %s308
      %p320 = scmp.eq.s32.totalorder %s41, 1
      %p321 = por %p319, %p320
      %p323 = scmp.ne.s32.totalorder %s308, %s322
      %p324 = scmp.eq.s32.totalorder %s41, 0
      %p325 = por %p323, %p324
      %s327 = sadd.s32 %s326, 1
      %p330 = scmp.eq.s32.totalorder %s35, 1
      %p331 = scmp.ne.s32.totalorder %s326, %s328
      %p332 = scmp.eq.s32.totalorder %s35, 0
      %p333 = por %p331, %p332
      %p334 = scmp.ne.s32.totalorder %s326, %s328
      %p335 = scmp.eq.s32.totalorder %s40, 1
      %p336 = por %p334, %p335
      %p337 = scmp.ne.s32.totalorder %s328, %s329
      %p338 = scmp.eq.s32.totalorder %s40, 0
      %p339 = por %p337, %p338
      %p340 = scmp.ne.s32.totalorder %s328, %s329
      %p341 = scmp.eq.s32.totalorder %s41, 1
      %p342 = por %p340, %p341
      %p344 = scmp.ne.s32.totalorder %s329, %s343
      %p345 = scmp.eq.s32.totalorder %s41, 0
      %p346 = por %p344, %p345
      %s348 = sadd.s32 %s347, 1
      %p351 = scmp.eq.s32.totalorder %s35, 1
      %p352 = scmp.ne.s32.totalorder %s347, %s349
      %p353 = scmp.eq.s32.totalorder %s35, 0
      %p354 = por %p352, %p353
      %p355 = scmp.ne.s32.totalorder %s347, %s349
      %p356 = scmp.eq.s32.totalorder %s40, 1
      %p357 = por %p355, %p356
      %p358 = scmp.ne.s32.totalorder %s349, %s350
      %p359 = scmp.eq.s32.totalorder %s40, 0
      %p360 = por %p358, %p359
      %p361 = scmp.ne.s32.totalorder %s349, %s350
      %p362 = scmp.eq.s32.totalorder %s41, 1
      %p363 = por %p361, %p362
      %p365 = scmp.ne.s32.totalorder %s350, %s364
      %p366 = scmp.eq.s32.totalorder %s41, 0
      %p367 = por %p365, %p366
      %s369 = sadd.s32 %s368, 1
      %p372 = scmp.eq.s32.totalorder %s35, 1
      %p373 = scmp.ne.s32.totalorder %s368, %s370
      %p374 = scmp.eq.s32.totalorder %s35, 0
      %p375 = por %p373, %p374
      %p376 = scmp.ne.s32.totalorder %s368, %s370
      %p377 = scmp.eq.s32.totalorder %s40, 1
      %p378 = por %p376, %p377
      %p379 = scmp.ne.s32.totalorder %s370, %s371
      %p380 = scmp.eq.s32.totalorder %s40, 0
      %p381 = por %p379, %p380
      %p382 = scmp.ne.s32.totalorder %s370, %s371
      %p383 = scmp.eq.s32.totalorder %s41, 1
      %p384 = por %p382, %p383
      %p386 = scmp.ne.s32.totalorder %s371, %s385
      %p387 = scmp.eq.s32.totalorder %s41, 0
      %p388 = por %p386, %p387
      %s390 = sadd.s32 %s389, 1
      %p393 = scmp.eq.s32.totalorder %s35, 1
      %p394 = scmp.ne.s32.totalorder %s389, %s391
      %p395 = scmp.eq.s32.totalorder %s35, 0
      %p396 = por %p394, %p395
      %p397 = scmp.ne.s32.totalorder %s389, %s391
      %p398 = scmp.eq.s32.totalorder %s40, 1
      %p399 = por %p397, %p398
      %p400 = scmp.ne.s32.totalorder %s391, %s392
      %p401 = scmp.eq.s32.totalorder %s40, 0
      %p402 = por %p400, %p401
      %p403 = scmp.ne.s32.totalorder %s391, %s392
      %p404 = scmp.eq.s32.totalorder %s41, 1
      %p405 = por %p403, %p404
      %p407 = scmp.ne.s32.totalorder %s392, %s406
      %p408 = scmp.eq.s32.totalorder %s41, 0
      %p409 = por %p407, %p408
      %s411 = sadd.s32 %s410, 1
      %p414 = scmp.eq.s32.totalorder %s35, 1
      %p415 = scmp.ne.s32.totalorder %s410, %s412
      %p416 = scmp.eq.s32.totalorder %s35, 0
      %p417 = por %p415, %p416
      %p418 = scmp.ne.s32.totalorder %s410, %s412
      %p419 = scmp.eq.s32.totalorder %s40, 1
      %p420 = por %p418, %p419
      %p421 = scmp.ne.s32.totalorder %s412, %s413
      %p422 = scmp.eq.s32.totalorder %s40, 0
      %p423 = por %p421, %p422
      %p424 = scmp.ne.s32.totalorder %s412, %s413
      %p425 = scmp.eq.s32.totalorder %s41, 1
      %p426 = por %p424, %p425
      %p428 = scmp.ne.s32.totalorder %s413, %s427
      %p429 = scmp.eq.s32.totalorder %s41, 0
      %p430 = por %p428, %p429
      %s431 = ssub.s32 %s35, %s42
      %p432 = scmp.eq.s32.totalorder %s431, 0
      %s434 = sadd.s32 %s433, 1
      %s435 = scalar_select %p432, %s433, %s434
      %p438 = pneg %p432
      %p439 = scmp.eq.s32.totalorder %s35, 1
      %p440 = por %p438, %p439
      %p441 = scmp.ne.s32.totalorder %s433, %s436
      %p442 = scmp.eq.s32.totalorder %s35, 0
      %p443 = por %p441, %p442
      %p444 = scmp.ne.s32.totalorder %s433, %s436
      %p445 = scmp.eq.s32.totalorder %s40, 1
      %p446 = por %p444, %p445
      %p447 = scmp.ne.s32.totalorder %s436, %s437
      %p448 = scmp.eq.s32.totalorder %s40, 0
      %p449 = por %p447, %p448
      %p450 = scmp.ne.s32.totalorder %s436, %s437
      %p451 = scmp.eq.s32.totalorder %s41, 1
      %p452 = por %p450, %p451
      %p454 = scmp.ne.s32.totalorder %s437, %s453
      %p455 = scmp.eq.s32.totalorder %s41, 0
      %p456 = por %p454, %p455
      %s457 = ssub.s32 %s35, %s42
      %p458 = scmp.eq.s32.totalorder %s457, 0
      %s460 = sadd.s32 %s459, 1
      %s461 = scalar_select %p458, %s459, %s460
      %p464 = pneg %p458
      %p465 = scmp.eq.s32.totalorder %s35, 1
      %p466 = por %p464, %p465
      %p467 = scmp.ne.s32.totalorder %s459, %s462
      %p468 = scmp.eq.s32.totalorder %s35, 0
      %p469 = por %p467, %p468
      %p470 = scmp.ne.s32.totalorder %s459, %s462
      %p471 = scmp.eq.s32.totalorder %s40, 1
      %p472 = por %p470, %p471
      %p473 = scmp.ne.s32.totalorder %s462, %s463
      %p474 = scmp.eq.s32.totalorder %s40, 0
      %p475 = por %p473, %p474
      %p476 = scmp.ne.s32.totalorder %s462, %s463
      %p477 = scmp.eq.s32.totalorder %s41, 1
      %p478 = por %p476, %p477
      %p480 = scmp.ne.s32.totalorder %s463, %s479
      %p481 = scmp.eq.s32.totalorder %s41, 0
      %p482 = por %p480, %p481
      %s483 = ssub.s32 %s35, %s42
      %p484 = scmp.eq.s32.totalorder %s483, 0
      %s486 = sadd.s32 %s485, 1
      %s487 = scalar_select %p484, %s485, %s486
      %p490 = pneg %p484
      %p491 = scmp.eq.s32.totalorder %s35, 1
      %p492 = por %p490, %p491
      %p493 = scmp.ne.s32.totalorder %s485, %s488
      %p494 = scmp.eq.s32.totalorder %s35, 0
      %p495 = por %p493, %p494
      %p496 = scmp.ne.s32.totalorder %s485, %s488
      %p497 = scmp.eq.s32.totalorder %s40, 1
      %p498 = por %p496, %p497
      %p499 = scmp.ne.s32.totalorder %s488, %s489
      %p500 = scmp.eq.s32.totalorder %s40, 0
      %p501 = por %p499, %p500
      %p502 = scmp.ne.s32.totalorder %s488, %s489
      %p503 = scmp.eq.s32.totalorder %s41, 1
      %p504 = por %p502, %p503
      %p506 = scmp.ne.s32.totalorder %s489, %s505
      %p507 = scmp.eq.s32.totalorder %s41, 0
      %p508 = por %p506, %p507
      %s509 = ssub.s32 %s35, %s42
      %p510 = scmp.eq.s32.totalorder %s509, 0
      %s512 = sadd.s32 %s511, 1
      %s513 = scalar_select %p510, %s511, %s512
      %p516 = pneg %p510
      %p517 = scmp.eq.s32.totalorder %s35, 1
      %p518 = por %p516, %p517
      %p519 = scmp.ne.s32.totalorder %s511, %s514
      %p520 = scmp.eq.s32.totalorder %s35, 0
      %p521 = por %p519, %p520
      %p522 = scmp.ne.s32.totalorder %s511, %s514
      %p523 = scmp.eq.s32.totalorder %s40, 1
      %p524 = por %p522, %p523
      %p525 = scmp.ne.s32.totalorder %s514, %s515
      %p526 = scmp.eq.s32.totalorder %s40, 0
      %p527 = por %p525, %p526
      %p528 = scmp.ne.s32.totalorder %s514, %s515
      %p529 = scmp.eq.s32.totalorder %s41, 1
      %p530 = por %p528, %p529
      %p532 = scmp.ne.s32.totalorder %s515, %s531
      %p533 = scmp.eq.s32.totalorder %s41, 0
      %p534 = por %p532, %p533
      %p535 = scmp.le.s32.totalorder 1, %s35
      %p536 = scmp.lt.s32.totalorder %s35, 3
      %p537 = pnand %p535, %p536
      %p538 = pneg %p537
      // Predicated region
      $region9: #{vae_forward.1} parent=5 // pred_check
        _
      $region10: #{vae_forward.1} parent=5 // pred_check_branch
        %540 = sbr.rel (%p537) target = $region12
      $region11: #{vae_forward.1} parent=5 // pred_region
        %s541 = ssub.s32 %s35, 1
        // Predicated region
        $region13: #{vae_forward.1} parent=11 // pred_check
          %p542 = pneg %p108
        $region14: #{vae_forward.1} parent=11 // pred_check_branch
          %544 = sbr.rel (%p542) target = $region16
        $region15: #{vae_forward.1} parent=11 // pred_region
          _
        $region16: #{vae_forward.1} parent=11 // pred_fallthru
          _
        // Predicated region
        $region17: #{vae_forward.1} parent=11 // pred_check
          %p545 = pneg %p129
        $region18: #{vae_forward.1} parent=11 // pred_check_branch
          %547 = sbr.rel (%p545) target = $region20
        $region19: #{vae_forward.1} parent=11 // pred_region
          _
        $region20: #{vae_forward.1} parent=11 // pred_fallthru
          _
        // Predicated region
        $region21: #{vae_forward.1} parent=11 // pred_check
          %p548 = pneg %p150
        $region22: #{vae_forward.1} parent=11 // pred_check_branch
          %550 = sbr.rel (%p548) target = $region24
        $region23: #{vae_forward.1} parent=11 // pred_region
          _
        $region24: #{vae_forward.1} parent=11 // pred_fallthru
          _
        // Predicated region
        $region25: #{vae_forward.1} parent=11 // pred_check
          %p551 = pneg %p171
        $region26: #{vae_forward.1} parent=11 // pred_check_branch
          %553 = sbr.rel (%p551) target = $region28
        $region27: #{vae_forward.1} parent=11 // pred_region
          _
        $region28: #{vae_forward.1} parent=11 // pred_fallthru
          _
        // Predicated region
        $region29: #{vae_forward.1} parent=11 // pred_check
          %p554 = pneg %p192
        $region30: #{vae_forward.1} parent=11 // pred_check_branch
          %556 = sbr.rel (%p554) target = $region32
        $region31: #{vae_forward.1} parent=11 // pred_region
          _
        $region32: #{vae_forward.1} parent=11 // pred_fallthru
          _
        // Predicated region
        $region33: #{vae_forward.1} parent=11 // pred_check
          %p557 = pneg %p213
        $region34: #{vae_forward.1} parent=11 // pred_check_branch
          %559 = sbr.rel (%p557) target = $region36
        $region35: #{vae_forward.1} parent=11 // pred_region
          _
        $region36: #{vae_forward.1} parent=11 // pred_fallthru
          _
        // Predicated region
        $region37: #{vae_forward.1} parent=11 // pred_check
          %p560 = pneg %p234
        $region38: #{vae_forward.1} parent=11 // pred_check_branch
          %562 = sbr.rel (%p560) target = $region40
        $region39: #{vae_forward.1} parent=11 // pred_region
          _
        $region40: #{vae_forward.1} parent=11 // pred_fallthru
          _
        // Predicated region
        $region41: #{vae_forward.1} parent=11 // pred_check
          %p563 = pneg %p255
        $region42: #{vae_forward.1} parent=11 // pred_check_branch
          %565 = sbr.rel (%p563) target = $region44
        $region43: #{vae_forward.1} parent=11 // pred_region
          _
        $region44: #{vae_forward.1} parent=11 // pred_fallthru
          _
        // Predicated region
        $region45: #{vae_forward.1} parent=11 // pred_check
          %p566 = pneg %p276
        $region46: #{vae_forward.1} parent=11 // pred_check_branch
          %568 = sbr.rel (%p566) target = $region48
        $region47: #{vae_forward.1} parent=11 // pred_region
          _
        $region48: #{vae_forward.1} parent=11 // pred_fallthru
          _
        // Predicated region
        $region49: #{vae_forward.1} parent=11 // pred_check
          %p569 = pneg %p297
        $region50: #{vae_forward.1} parent=11 // pred_check_branch
          %571 = sbr.rel (%p569) target = $region52
        $region51: #{vae_forward.1} parent=11 // pred_region
          _
        $region52: #{vae_forward.1} parent=11 // pred_fallthru
          _
        // Predicated region
        $region53: #{vae_forward.1} parent=11 // pred_check
          %p572 = pneg %p318
        $region54: #{vae_forward.1} parent=11 // pred_check_branch
          %574 = sbr.rel (%p572) target = $region56
        $region55: #{vae_forward.1} parent=11 // pred_region
          _
        $region56: #{vae_forward.1} parent=11 // pred_fallthru
          _
        // Predicated region
        $region57: #{vae_forward.1} parent=11 // pred_check
          %p575 = pneg %p339
        $region58: #{vae_forward.1} parent=11 // pred_check_branch
          %577 = sbr.rel (%p575) target = $region60
        $region59: #{vae_forward.1} parent=11 // pred_region
          _
        $region60: #{vae_forward.1} parent=11 // pred_fallthru
          _
        // Predicated region
        $region61: #{vae_forward.1} parent=11 // pred_check
          %p578 = pneg %p360
        $region62: #{vae_forward.1} parent=11 // pred_check_branch
          %580 = sbr.rel (%p578) target = $region64
        $region63: #{vae_forward.1} parent=11 // pred_region
          %s582 = ssub.s32 25088, 25088
          %583 = vsyncadd [#allocation3], %s582
          %s584 = sshll.u32 [#allocation2], 4
          %s585 = int_to_ptr.vmem [resolvable:$true] %s584
          %590 = dma.hbm_to_vmem [thread:$0]  %s14, 25088, %s585, [#allocation3], 896, 896, 56
        $region64: #{vae_forward.1} parent=11 // pred_fallthru
          _
        // Predicated region
        $region65: #{vae_forward.1} parent=11 // pred_check
          %p591 = pneg %p381
        $region66: #{vae_forward.1} parent=11 // pred_check_branch
          %593 = sbr.rel (%p591) target = $region68
        $region67: #{vae_forward.1} parent=11 // pred_region
          _
        $region68: #{vae_forward.1} parent=11 // pred_fallthru
          _
        // Predicated region
        $region69: #{vae_forward.1} parent=11 // pred_check
          %p594 = pneg %p402
        $region70: #{vae_forward.1} parent=11 // pred_check_branch
          %596 = sbr.rel (%p594) target = $region72
        $region71: #{vae_forward.1} parent=11 // pred_region
          _
        $region72: #{vae_forward.1} parent=11 // pred_fallthru
          _
        // Predicated region
        $region73: #{vae_forward.1} parent=11 // pred_check
          %p597 = pneg %p423
        $region74: #{vae_forward.1} parent=11 // pred_check_branch
          %599 = sbr.rel (%p597) target = $region76
        $region75: #{vae_forward.1} parent=11 // pred_region
          _
        $region76: #{vae_forward.1} parent=11 // pred_fallthru
          _
      $region12: #{vae_forward.1} parent=5 // pred_fallthru
        _
      %p600 = scmp.lt.s32.totalorder %s35, 2
      // Predicated region
      $region77: #{vae_forward.1} parent=5 // pred_check
        %p601 = pneg %p600
      $region78: #{vae_forward.1} parent=5 // pred_check_branch
        %603 = sbr.rel (%p601) target = $region80
      $region79: #{vae_forward.1} parent=5 // pred_region
        // Predicated region
        $region81: #{vae_forward.1} parent=79 // pred_check
          %p604 = pneg %p55
        $region82: #{vae_forward.1} parent=79 // pred_check_branch
          %606 = sbr.rel (%p604) target = $region84
        $region83: #{vae_forward.1} parent=79 // pred_region
          %p607 = scmp.lt.s32.totalorder %s35, 1
          %s608 = scalar_select %p607, %s35, 1
          %s609 = smul.addr %s608, 4
          %s610 = smul.addr %s609, 8
          %s611 = scalar_lea.vmem %s0, %s610
        $region84: #{vae_forward.1} parent=79 // pred_fallthru
          _
        // Predicated region
        $region85: #{vae_forward.1} parent=79 // pred_check
          %p612 = pneg %p81
        $region86: #{vae_forward.1} parent=79 // pred_check_branch
          %614 = sbr.rel (%p612) target = $region88
        $region87: #{vae_forward.1} parent=79 // pred_region
          %p615 = scmp.lt.s32.totalorder %s35, 1
          %s616 = scalar_select %p615, %s35, 1
          %s617 = scalar_lea.vmem %s1, %s616
        $region88: #{vae_forward.1} parent=79 // pred_fallthru
          _
      $region80: #{vae_forward.1} parent=5 // pred_fallthru
        _
      %p618 = scmp.le.s32.totalorder 1, %s35
      %p619 = scmp.lt.s32.totalorder %s35, 3
      %p620 = pnand %p618, %p619
      %p621 = pneg %p620
      // Predicated region
      $region89: #{vae_forward.1} parent=5 // pred_check
        _
      $region90: #{vae_forward.1} parent=5 // pred_check_branch
        %623 = sbr.rel (%p620) target = $region92
      $region91: #{vae_forward.1} parent=5 // pred_region
        %s624 = ssub.s32 %s35, 1
        // Predicated region
        $region93: #{vae_forward.1} parent=91 // pred_check
          %p625 = pneg %p360
        $region94: #{vae_forward.1} parent=91 // pred_check_branch
          %627 = sbr.rel (%p625) target = $region96
        $region95: #{vae_forward.1} parent=91 // pred_region
          %628 = dma.done [#allocation3], 25088
        $region96: #{vae_forward.1} parent=91 // pred_fallthru
          _
        %p629 = scmp.lt.s32.totalorder %s40, 1
        %s630 = scalar_select %p629, %s40, 1
        %s631 = smul.addr %s630, 4
        %s632 = smul.addr %s631, 8
        %s633 = scalar_lea.vmem %s0, %s632
        %p634 = pneg %p61
        %p635 = pneg %p58
        %p636 = scmp.lt.s32.totalorder %s40, 1
        %s637 = scalar_select %p636, %s40, 1
        %s638 = scalar_lea.vmem %s1, %s637
        %p639 = pneg %p87
        %p640 = pneg %p84
        %p641 = pneg %p108
        %p642 = pneg %p105
        %p643 = pneg %p129
        %p644 = pneg %p126
        %p645 = pneg %p150
        %p646 = pneg %p147
        %p647 = pneg %p171
        %p648 = pneg %p168
        %p649 = pneg %p192
        %p650 = pneg %p189
        %p651 = pneg %p213
        %p652 = pneg %p210
        %p653 = pneg %p234
        %p654 = pneg %p231
        %p655 = pneg %p255
        %p656 = pneg %p252
        %p657 = pneg %p276
        %p658 = pneg %p273
        %p659 = pneg %p297
        %p660 = pneg %p294
        %p661 = pneg %p318
        %p662 = pneg %p315
        %p663 = pneg %p339
        %p664 = pneg %p336
        %p665 = pneg %p360
        %p666 = pneg %p357
        %p667 = pneg %p381
        %p668 = pneg %p378
        %p669 = pneg %p402
        %p670 = pneg %p399
        %p671 = pneg %p423
        %p672 = pneg %p420
        %p673 = pneg %p449
        %p674 = pneg %p446
        %p675 = scmp.lt.s32.totalorder %s40, 1
        %s676 = scalar_select %p675, %s40, 1
        %s677 = smul.addr %s676, 4
        %s678 = smul.addr %s677, 8
        %s679 = scalar_lea.vmem %s18, %s678
        %p680 = pneg %p475
        %p681 = pneg %p472
        %s682 = sand.u32 %s462, 1
        %s683 = scalar_lea.sflag [#allocation4], %s682
        %s684 = sand.u32 %s462, 1
        %s685 = scalar_lea.vmem [#allocation5], %s684
        %p686 = pneg %p501
        %p687 = pneg %p498
        %s688 = sand.u32 %s40, 1
        %s689 = scalar_lea.sflag [#allocation7], %s688
        %s690 = sand.u32 %s488, 1
        %s691 = scalar_lea.vmem [#allocation6], %s690
        %p692 = pneg %p527
        %p693 = pneg %p524
        %s694 = sand.u32 %s40, 1
        %s695 = scalar_lea.sflag [#allocation7], %s694
        %s696 = sand.u32 %s514, 1
        %s697 = scalar_lea.vmem [#allocation8], %s696
        %p698 = scmp.lt.s32.totalorder %s40, 1
        %s699 = scalar_select %p698, %s40, 1
        %s700 = smul.addr %s699, 4
        %s701 = smul.addr %s700, 8
        %s702 = scalar_lea.vmem %s0, %s701
        %p703 = scmp.lt.s32.totalorder %s40, 1
        %s704 = scalar_select %p703, %s40, 1
        %s705 = scalar_lea.vmem %s1, %s704
        %p706 = scmp.lt.s32.totalorder %s40, 1
        %s707 = scalar_select %p706, %s40, 1
        %s708 = smul.addr %s707, 4
        %s709 = smul.addr %s708, 8
        %s710 = scalar_lea.vmem %s18, %s709
        %v711 = vld [vmem:[%s702] sm:$0x7f]
        %v712 = vld [vmem:[%s2] sm:$0xff]
        %v713 = vld [vmem:[%s2 + $0x8] sm:$0xff]
        %v714 = vld [vmem:[%s2 + $0x10] sm:$0xff]
        %v715 = vld [vmem:[%s2 + $0x18] sm:$0xff]
        %v716 = vld [vmem:[%s2 + $0x20] sm:$0xff]
        %v717 = vld [vmem:[%s2 + $0x28] sm:$0xff]
        %v718 = vld [vmem:[%s2 + $0x30] sm:$0xff]
        %v719 = vld [vmem:[%s2 + $0x38] sm:$0xff]
        %v720 = vld [vmem:[%s2 + $0x40] sm:$0xff]
        %v721 = vld [vmem:[%s2 + $0x48] sm:$0xff]
        %v722 = vld [vmem:[%s2 + $0x50] sm:$0xff]
        %v723 = vld [vmem:[%s2 + $0x58] sm:$0xff]
        %v724 = vld [vmem:[%s2 + $0x60] sm:$0xf]
        %v725 = vld [vmem:[%s2 + $0x68] sm:$0xf]
        %v726 = vld [vmem:[%s2 + $0x70] sm:$0xf]
        %v727 = vld [vmem:[%s2 + $0x78] sm:$0xf]
        %vm728 = vcmask 228352
        %v730 = vsel %vm728, %v711, 0
        %vm732 = vcmask 1043456
        %v734 = vsel %vm732, %v724, 0
        %v737 = vsel %vm732, %v725, 0
        %v740 = vsel %vm732, %v726, 0
        %v743 = vsel %vm732, %v727, 0
        %745 = vmatprep.subr.mxu0 0.0
        %746 = vmatpush1.msra.mxu0 0.0
        %747 = vmatprep.subr.mxu0 0.0
        %748 = vmatpush1.msra.mxu0 0.0
        %749 = vmatprep.subr.mxu0 0.0
        %750 = vmatpush1.msra.mxu0 0.0
        %751 = vmatprep.subr.mxu0 0.0
        %752 = vmatpush1.msra.mxu0 0.0
        %753 = vmatprep.subr.mxu0 0.0
        %754 = vmatpush1.msra.mxu0 0.0
        %755 = vmatprep.subr.mxu0 0.0
        %756 = vmatpush1.msra.mxu0 0.0
        %757 = vmatprep.subr.mxu0 0.0
        %758 = vmatpush1.msra.mxu0 0.0
        %759 = vmatprep.subr.mxu0 0.0
        %760 = vmatpush1.msra.mxu0 0.0
        %761 = vmatprep.subr.mxu0 0.0
        %762 = vmatpush1.msra.mxu0 0.0
        %763 = vmatprep.subr.mxu0 0.0
        %764 = vmatpush1.msra.mxu0 0.0
        %765 = vmatprep.subr.mxu0 0.0
        %766 = vmatpush1.msra.mxu0 0.0
        %767 = vmatprep.subr.mxu0 0.0
        %768 = vmatpush1.msra.mxu0 0.0
        %769 = vmatprep.subr.mxu0 %v737
        %770 = vmatpush1.msra.mxu0 %v734
        %771 = vmatprep.subr.mxu0 %v721
        %772 = vmatpush1.msra.mxu0 %v720
        %773 = vmatprep.subr.mxu0 %v717
        %774 = vmatpush1.msra.mxu0 %v716
        %775 = vmatprep.subr.mxu0 %v713
        %776 = vmatpush1.msra.mxu0 %v712
        %777 = vmatprep.subr.mxu0 0.0
        %778 = vmatpush2.msra.mxu0 0.0
        %779 = vmatprep.subr.mxu0 0.0
        %780 = vmatpush2.msra.mxu0 0.0
        %781 = vmatprep.subr.mxu0 0.0
        %782 = vmatpush2.msra.mxu0 0.0
        %783 = vmatprep.subr.mxu0 0.0
        %784 = vmatpush2.msra.mxu0 0.0
        %785 = vmatprep.subr.mxu0 0.0
        %786 = vmatpush2.msra.mxu0 0.0
        %787 = vmatprep.subr.mxu0 0.0
        %788 = vmatpush2.msra.mxu0 0.0
        %789 = vmatprep.subr.mxu0 0.0
        %790 = vmatpush2.msra.mxu0 0.0
        %791 = vmatprep.subr.mxu0 0.0
        %792 = vmatpush2.msra.mxu0 0.0
        %793 = vmatprep.subr.mxu0 0.0
        %794 = vmatpush2.msra.mxu0 0.0
        %795 = vmatprep.subr.mxu0 0.0
        %796 = vmatpush2.msra.mxu0 0.0
        %797 = vmatprep.subr.mxu0 0.0
        %798 = vmatpush2.msra.mxu0 0.0
        %799 = vmatprep.subr.mxu0 0.0
        %800 = vmatpush2.msra.mxu0 0.0
        %801 = vmatprep.subr.mxu0 0.0
        %802 = vmatpush2.msra.mxu0 0.0
        %803 = vmatprep.subr.mxu0 0.0
        %804 = vmatpush2.msra.mxu0 0.0
        %805 = vmatprep.subr.mxu0 0.0
        %806 = vmatpush2.msra.mxu0 0.0
        %807 = vmatprep.subr.mxu0 0.0
        %808 = vmatpush2.msra.mxu0 0.0
        %809 = vmatprep.mubr.f32.mxu0 0.0
        %810 = vmatmul.mubr.f32.gmra.mxu0 %v730
        %v811 = vpop.f32.mrf.mxu0
        %v812 = vadd.f32 0.0, %v811
        %v813 = vpop.f32.mrf.mxu0
        %v814 = vadd.f32 0.0, %v813
        %815 = vdwg.mxu0
        %816 = vmatprep.subr.mxu0 0.0
        %817 = vmatpush1.msra.mxu0 0.0
        %818 = vmatprep.subr.mxu0 0.0
        %819 = vmatpush1.msra.mxu0 0.0
        %820 = vmatprep.subr.mxu0 0.0
        %821 = vmatpush1.msra.mxu0 0.0
        %822 = vmatprep.subr.mxu0 0.0
        %823 = vmatpush1.msra.mxu0 0.0
        %824 = vmatprep.subr.mxu0 0.0
        %825 = vmatpush1.msra.mxu0 0.0
        %826 = vmatprep.subr.mxu0 0.0
        %827 = vmatpush1.msra.mxu0 0.0
        %828 = vmatprep.subr.mxu0 0.0
        %829 = vmatpush1.msra.mxu0 0.0
        %830 = vmatprep.subr.mxu0 0.0
        %831 = vmatpush1.msra.mxu0 0.0
        %832 = vmatprep.subr.mxu0 0.0
        %833 = vmatpush1.msra.mxu0 0.0
        %834 = vmatprep.subr.mxu0 0.0
        %835 = vmatpush1.msra.mxu0 0.0
        %836 = vmatprep.subr.mxu0 0.0
        %837 = vmatpush1.msra.mxu0 0.0
        %838 = vmatprep.subr.mxu0 0.0
        %839 = vmatpush1.msra.mxu0 0.0
        %840 = vmatprep.subr.mxu0 %v743
        %841 = vmatpush1.msra.mxu0 %v740
        %842 = vmatprep.subr.mxu0 %v723
        %843 = vmatpush1.msra.mxu0 %v722
        %844 = vmatprep.subr.mxu0 %v719
        %845 = vmatpush1.msra.mxu0 %v718
        %846 = vmatprep.subr.mxu0 %v715
        %847 = vmatpush1.msra.mxu0 %v714
        %848 = vmatprep.subr.mxu0 0.0
        %849 = vmatpush2.msra.mxu0 0.0
        %850 = vmatprep.subr.mxu0 0.0
        %851 = vmatpush2.msra.mxu0 0.0
        %852 = vmatprep.subr.mxu0 0.0
        %853 = vmatpush2.msra.mxu0 0.0
        %854 = vmatprep.subr.mxu0 0.0
        %855 = vmatpush2.msra.mxu0 0.0
        %856 = vmatprep.subr.mxu0 0.0
        %857 = vmatpush2.msra.mxu0 0.0
        %858 = vmatprep.subr.mxu0 0.0
        %859 = vmatpush2.msra.mxu0 0.0
        %860 = vmatprep.subr.mxu0 0.0
        %861 = vmatpush2.msra.mxu0 0.0
        %862 = vmatprep.subr.mxu0 0.0
        %863 = vmatpush2.msra.mxu0 0.0
        %864 = vmatprep.subr.mxu0 0.0
        %865 = vmatpush2.msra.mxu0 0.0
        %866 = vmatprep.subr.mxu0 0.0
        %867 = vmatpush2.msra.mxu0 0.0
        %868 = vmatprep.subr.mxu0 0.0
        %869 = vmatpush2.msra.mxu0 0.0
        %870 = vmatprep.subr.mxu0 0.0
        %871 = vmatpush2.msra.mxu0 0.0
        %872 = vmatprep.subr.mxu0 0.0
        %873 = vmatpush2.msra.mxu0 0.0
        %874 = vmatprep.subr.mxu0 0.0
        %875 = vmatpush2.msra.mxu0 0.0
        %876 = vmatprep.subr.mxu0 0.0
        %877 = vmatpush2.msra.mxu0 0.0
        %878 = vmatprep.subr.mxu0 0.0
        %879 = vmatpush2.msra.mxu0 0.0
        %880 = vmatprep.mubr.f32.mxu0 0.0
        %881 = vmatmul.mubr.f32.gmra.mxu0 %v730
        %v882 = vpop.f32.mrf.mxu0
        %v883 = vadd.f32 0.0, %v882
        %v884 = vpop.f32.mrf.mxu0
        %v885 = vadd.f32 0.0, %v884
        %886 = vdwg.mxu0
        %s887 = scalar_lea.vmem %s702, 8
        %v888 = vld [vmem:[%s887] sm:$0x7f]
        %s889 = scalar_lea.vmem %s2, 128
        %v890 = vld [vmem:[%s889] sm:$0xff]
        %v891 = vld [vmem:[%s889 + $0x8] sm:$0xff]
        %v892 = vld [vmem:[%s889 + $0x10] sm:$0xff]
        %v893 = vld [vmem:[%s889 + $0x18] sm:$0xff]
        %v894 = vld [vmem:[%s889 + $0x20] sm:$0xff]
        %v895 = vld [vmem:[%s889 + $0x28] sm:$0xff]
        %v896 = vld [vmem:[%s889 + $0x30] sm:$0xff]
        %v897 = vld [vmem:[%s889 + $0x38] sm:$0xff]
        %v898 = vld [vmem:[%s889 + $0x40] sm:$0xff]
        %v899 = vld [vmem:[%s889 + $0x48] sm:$0xff]
        %v900 = vld [vmem:[%s889 + $0x50] sm:$0xff]
        %v901 = vld [vmem:[%s889 + $0x58] sm:$0xff]
        %v902 = vld [vmem:[%s889 + $0x60] sm:$0xf]
        %v903 = vld [vmem:[%s889 + $0x68] sm:$0xf]
        %v904 = vld [vmem:[%s889 + $0x70] sm:$0xf]
        %v905 = vld [vmem:[%s889 + $0x78] sm:$0xf]
        %v907 = vsel %vm728, %v888, 0
        %v910 = vsel %vm732, %v902, 0
        %v913 = vsel %vm732, %v903, 0
        %v916 = vsel %vm732, %v904, 0
        %v919 = vsel %vm732, %v905, 0
        %921 = vmatprep.subr.mxu0 0.0
        %922 = vmatpush1.msra.mxu0 0.0
        %923 = vmatprep.subr.mxu0 0.0
        %924 = vmatpush1.msra.mxu0 0.0
        %925 = vmatprep.subr.mxu0 0.0
        %926 = vmatpush1.msra.mxu0 0.0
        %927 = vmatprep.subr.mxu0 0.0
        %928 = vmatpush1.msra.mxu0 0.0
        %929 = vmatprep.subr.mxu0 0.0
        %930 = vmatpush1.msra.mxu0 0.0
        %931 = vmatprep.subr.mxu0 0.0
        %932 = vmatpush1.msra.mxu0 0.0
        %933 = vmatprep.subr.mxu0 0.0
        %934 = vmatpush1.msra.mxu0 0.0
        %935 = vmatprep.subr.mxu0 0.0
        %936 = vmatpush1.msra.mxu0 0.0
        %937 = vmatprep.subr.mxu0 0.0
        %938 = vmatpush1.msra.mxu0 0.0
        %939 = vmatprep.subr.mxu0 0.0
        %940 = vmatpush1.msra.mxu0 0.0
        %941 = vmatprep.subr.mxu0 0.0
        %942 = vmatpush1.msra.mxu0 0.0
        %943 = vmatprep.subr.mxu0 0.0
        %944 = vmatpush1.msra.mxu0 0.0
        %945 = vmatprep.subr.mxu0 %v913
        %946 = vmatpush1.msra.mxu0 %v910
        %947 = vmatprep.subr.mxu0 %v899
        %948 = vmatpush1.msra.mxu0 %v898
        %949 = vmatprep.subr.mxu0 %v895
        %950 = vmatpush1.msra.mxu0 %v894
        %951 = vmatprep.subr.mxu0 %v891
        %952 = vmatpush1.msra.mxu0 %v890
        %953 = vmatprep.subr.mxu0 0.0
        %954 = vmatpush2.msra.mxu0 0.0
        %955 = vmatprep.subr.mxu0 0.0
        %956 = vmatpush2.msra.mxu0 0.0
        %957 = vmatprep.subr.mxu0 0.0
        %958 = vmatpush2.msra.mxu0 0.0
        %959 = vmatprep.subr.mxu0 0.0
        %960 = vmatpush2.msra.mxu0 0.0
        %961 = vmatprep.subr.mxu0 0.0
        %962 = vmatpush2.msra.mxu0 0.0
        %963 = vmatprep.subr.mxu0 0.0
        %964 = vmatpush2.msra.mxu0 0.0
        %965 = vmatprep.subr.mxu0 0.0
        %966 = vmatpush2.msra.mxu0 0.0
        %967 = vmatprep.subr.mxu0 0.0
        %968 = vmatpush2.msra.mxu0 0.0
        %969 = vmatprep.subr.mxu0 0.0
        %970 = vmatpush2.msra.mxu0 0.0
        %971 = vmatprep.subr.mxu0 0.0
        %972 = vmatpush2.msra.mxu0 0.0
        %973 = vmatprep.subr.mxu0 0.0
        %974 = vmatpush2.msra.mxu0 0.0
        %975 = vmatprep.subr.mxu0 0.0
        %976 = vmatpush2.msra.mxu0 0.0
        %977 = vmatprep.subr.mxu0 0.0
        %978 = vmatpush2.msra.mxu0 0.0
        %979 = vmatprep.subr.mxu0 0.0
        %980 = vmatpush2.msra.mxu0 0.0
        %981 = vmatprep.subr.mxu0 0.0
        %982 = vmatpush2.msra.mxu0 0.0
        %983 = vmatprep.subr.mxu0 0.0
        %984 = vmatpush2.msra.mxu0 0.0
        %985 = vmatprep.mubr.f32.mxu0 0.0
        %986 = vmatmul.mubr.f32.gmra.mxu0 %v907
        %v987 = vpop.f32.mrf.mxu0
        %v988 = vadd.f32 0.0, %v987
        %v989 = vpop.f32.mrf.mxu0
        %v990 = vadd.f32 0.0, %v989
        %991 = vdwg.mxu0
        %992 = vmatprep.subr.mxu0 0.0
        %993 = vmatpush1.msra.mxu0 0.0
        %994 = vmatprep.subr.mxu0 0.0
        %995 = vmatpush1.msra.mxu0 0.0
        %996 = vmatprep.subr.mxu0 0.0
        %997 = vmatpush1.msra.mxu0 0.0
        %998 = vmatprep.subr.mxu0 0.0
        %999 = vmatpush1.msra.mxu0 0.0
        %1000 = vmatprep.subr.mxu0 0.0
        %1001 = vmatpush1.msra.mxu0 0.0
        %1002 = vmatprep.subr.mxu0 0.0
        %1003 = vmatpush1.msra.mxu0 0.0
        %1004 = vmatprep.subr.mxu0 0.0
        %1005 = vmatpush1.msra.mxu0 0.0
        %1006 = vmatprep.subr.mxu0 0.0
        %1007 = vmatpush1.msra.mxu0 0.0
        %1008 = vmatprep.subr.mxu0 0.0
        %1009 = vmatpush1.msra.mxu0 0.0
        %1010 = vmatprep.subr.mxu0 0.0
        %1011 = vmatpush1.msra.mxu0 0.0
        %1012 = vmatprep.subr.mxu0 0.0
        %1013 = vmatpush1.msra.mxu0 0.0
        %1014 = vmatprep.subr.mxu0 0.0
        %1015 = vmatpush1.msra.mxu0 0.0
        %1016 = vmatprep.subr.mxu0 %v919
        %1017 = vmatpush1.msra.mxu0 %v916
        %1018 = vmatprep.subr.mxu0 %v901
        %1019 = vmatpush1.msra.mxu0 %v900
        %1020 = vmatprep.subr.mxu0 %v897
        %1021 = vmatpush1.msra.mxu0 %v896
        %1022 = vmatprep.subr.mxu0 %v893
        %1023 = vmatpush1.msra.mxu0 %v892
        %1024 = vmatprep.subr.mxu0 0.0
        %1025 = vmatpush2.msra.mxu0 0.0
        %1026 = vmatprep.subr.mxu0 0.0
        %1027 = vmatpush2.msra.mxu0 0.0
        %1028 = vmatprep.subr.mxu0 0.0
        %1029 = vmatpush2.msra.mxu0 0.0
        %1030 = vmatprep.subr.mxu0 0.0
        %1031 = vmatpush2.msra.mxu0 0.0
        %1032 = vmatprep.subr.mxu0 0.0
        %1033 = vmatpush2.msra.mxu0 0.0
        %1034 = vmatprep.subr.mxu0 0.0
        %1035 = vmatpush2.msra.mxu0 0.0
        %1036 = vmatprep.subr.mxu0 0.0
        %1037 = vmatpush2.msra.mxu0 0.0
        %1038 = vmatprep.subr.mxu0 0.0
        %1039 = vmatpush2.msra.mxu0 0.0
        %1040 = vmatprep.subr.mxu0 0.0
        %1041 = vmatpush2.msra.mxu0 0.0
        %1042 = vmatprep.subr.mxu0 0.0
        %1043 = vmatpush2.msra.mxu0 0.0
        %1044 = vmatprep.subr.mxu0 0.0
        %1045 = vmatpush2.msra.mxu0 0.0
        %1046 = vmatprep.subr.mxu0 0.0
        %1047 = vmatpush2.msra.mxu0 0.0
        %1048 = vmatprep.subr.mxu0 0.0
        %1049 = vmatpush2.msra.mxu0 0.0
        %1050 = vmatprep.subr.mxu0 0.0
        %1051 = vmatpush2.msra.mxu0 0.0
        %1052 = vmatprep.subr.mxu0 0.0
        %1053 = vmatpush2.msra.mxu0 0.0
        %1054 = vmatprep.subr.mxu0 0.0
        %1055 = vmatpush2.msra.mxu0 0.0
        %1056 = vmatprep.mubr.f32.mxu0 0.0
        %1057 = vmatmul.mubr.f32.gmra.mxu0 %v907
        %v1058 = vpop.f32.mrf.mxu0
        %v1059 = vadd.f32 0.0, %v1058
        %v1060 = vpop.f32.mrf.mxu0
        %v1061 = vadd.f32 0.0, %v1060
        %1062 = vdwg.mxu0
        %s1063 = scalar_lea.vmem %s702, 16
        %v1064 = vld [vmem:[%s1063] sm:$0x7f]
        %s1065 = scalar_lea.vmem %s2, 256
        %v1066 = vld [vmem:[%s1065] sm:$0xff]
        %v1067 = vld [vmem:[%s1065 + $0x8] sm:$0xff]
        %v1068 = vld [vmem:[%s1065 + $0x10] sm:$0xff]
        %v1069 = vld [vmem:[%s1065 + $0x18] sm:$0xff]
        %v1070 = vld [vmem:[%s1065 + $0x20] sm:$0xff]
        %v1071 = vld [vmem:[%s1065 + $0x28] sm:$0xff]
        %v1072 = vld [vmem:[%s1065 + $0x30] sm:$0xff]
        %v1073 = vld [vmem:[%s1065 + $0x38] sm:$0xff]
        %v1074 = vld [vmem:[%s1065 + $0x40] sm:$0xff]
        %v1075 = vld [vmem:[%s1065 + $0x48] sm:$0xff]
        %v1076 = vld [vmem:[%s1065 + $0x50] sm:$0xff]
        %v1077 = vld [vmem:[%s1065 + $0x58] sm:$0xff]
        %v1078 = vld [vmem:[%s1065 + $0x60] sm:$0xf]
        %v1079 = vld [vmem:[%s1065 + $0x68] sm:$0xf]
        %v1080 = vld [vmem:[%s1065 + $0x70] sm:$0xf]
        %v1081 = vld [vmem:[%s1065 + $0x78] sm:$0xf]
        %v1083 = vsel %vm728, %v1064, 0
        %v1086 = vsel %vm732, %v1078, 0
        %v1089 = vsel %vm732, %v1079, 0
        %v1092 = vsel %vm732, %v1080, 0
        %v1095 = vsel %vm732, %v1081, 0
        %1097 = vmatprep.subr.mxu0 0.0
        %1098 = vmatpush1.msra.mxu0 0.0
        %1099 = vmatprep.subr.mxu0 0.0
        %1100 = vmatpush1.msra.mxu0 0.0
        %1101 = vmatprep.subr.mxu0 0.0
        %1102 = vmatpush1.msra.mxu0 0.0
        %1103 = vmatprep.subr.mxu0 0.0
        %1104 = vmatpush1.msra.mxu0 0.0
        %1105 = vmatprep.subr.mxu0 0.0
        %1106 = vmatpush1.msra.mxu0 0.0
        %1107 = vmatprep.subr.mxu0 0.0
        %1108 = vmatpush1.msra.mxu0 0.0
        %1109 = vmatprep.subr.mxu0 0.0
        %1110 = vmatpush1.msra.mxu0 0.0
        %1111 = vmatprep.subr.mxu0 0.0
        %1112 = vmatpush1.msra.mxu0 0.0
        %1113 = vmatprep.subr.mxu0 0.0
        %1114 = vmatpush1.msra.mxu0 0.0
        %1115 = vmatprep.subr.mxu0 0.0
        %1116 = vmatpush1.msra.mxu0 0.0
        %1117 = vmatprep.subr.mxu0 0.0
        %1118 = vmatpush1.msra.mxu0 0.0
        %1119 = vmatprep.subr.mxu0 0.0
        %1120 = vmatpush1.msra.mxu0 0.0
        %1121 = vmatprep.subr.mxu0 %v1089
        %1122 = vmatpush1.msra.mxu0 %v1086
        %1123 = vmatprep.subr.mxu0 %v1075
        %1124 = vmatpush1.msra.mxu0 %v1074
        %1125 = vmatprep.subr.mxu0 %v1071
        %1126 = vmatpush1.msra.mxu0 %v1070
        %1127 = vmatprep.subr.mxu0 %v1067
        %1128 = vmatpush1.msra.mxu0 %v1066
        %1129 = vmatprep.subr.mxu0 0.0
        %1130 = vmatpush2.msra.mxu0 0.0
        %1131 = vmatprep.subr.mxu0 0.0
        %1132 = vmatpush2.msra.mxu0 0.0
        %1133 = vmatprep.subr.mxu0 0.0
        %1134 = vmatpush2.msra.mxu0 0.0
        %1135 = vmatprep.subr.mxu0 0.0
        %1136 = vmatpush2.msra.mxu0 0.0
        %1137 = vmatprep.subr.mxu0 0.0
        %1138 = vmatpush2.msra.mxu0 0.0
        %1139 = vmatprep.subr.mxu0 0.0
        %1140 = vmatpush2.msra.mxu0 0.0
        %1141 = vmatprep.subr.mxu0 0.0
        %1142 = vmatpush2.msra.mxu0 0.0
        %1143 = vmatprep.subr.mxu0 0.0
        %1144 = vmatpush2.msra.mxu0 0.0
        %1145 = vmatprep.subr.mxu0 0.0
        %1146 = vmatpush2.msra.mxu0 0.0
        %1147 = vmatprep.subr.mxu0 0.0
        %1148 = vmatpush2.msra.mxu0 0.0
        %1149 = vmatprep.subr.mxu0 0.0
        %1150 = vmatpush2.msra.mxu0 0.0
        %1151 = vmatprep.subr.mxu0 0.0
        %1152 = vmatpush2.msra.mxu0 0.0
        %1153 = vmatprep.subr.mxu0 0.0
        %1154 = vmatpush2.msra.mxu0 0.0
        %1155 = vmatprep.subr.mxu0 0.0
        %1156 = vmatpush2.msra.mxu0 0.0
        %1157 = vmatprep.subr.mxu0 0.0
        %1158 = vmatpush2.msra.mxu0 0.0
        %1159 = vmatprep.subr.mxu0 0.0
        %1160 = vmatpush2.msra.mxu0 0.0
        %1161 = vmatprep.mubr.f32.mxu0 0.0
        %1162 = vmatmul.mubr.f32.gmra.mxu0 %v1083
        %v1163 = vpop.f32.mrf.mxu0
        %v1164 = vadd.f32 0.0, %v1163
        %v1165 = vpop.f32.mrf.mxu0
        %v1166 = vadd.f32 0.0, %v1165
        %1167 = vdwg.mxu0
        %1168 = vmatprep.subr.mxu0 0.0
        %1169 = vmatpush1.msra.mxu0 0.0
        %1170 = vmatprep.subr.mxu0 0.0
        %1171 = vmatpush1.msra.mxu0 0.0
        %1172 = vmatprep.subr.mxu0 0.0
        %1173 = vmatpush1.msra.mxu0 0.0
        %1174 = vmatprep.subr.mxu0 0.0
        %1175 = vmatpush1.msra.mxu0 0.0
        %1176 = vmatprep.subr.mxu0 0.0
        %1177 = vmatpush1.msra.mxu0 0.0
        %1178 = vmatprep.subr.mxu0 0.0
        %1179 = vmatpush1.msra.mxu0 0.0
        %1180 = vmatprep.subr.mxu0 0.0
        %1181 = vmatpush1.msra.mxu0 0.0
        %1182 = vmatprep.subr.mxu0 0.0
        %1183 = vmatpush1.msra.mxu0 0.0
        %1184 = vmatprep.subr.mxu0 0.0
        %1185 = vmatpush1.msra.mxu0 0.0
        %1186 = vmatprep.subr.mxu0 0.0
        %1187 = vmatpush1.msra.mxu0 0.0
        %1188 = vmatprep.subr.mxu0 0.0
        %1189 = vmatpush1.msra.mxu0 0.0
        %1190 = vmatprep.subr.mxu0 0.0
        %1191 = vmatpush1.msra.mxu0 0.0
        %1192 = vmatprep.subr.mxu0 %v1095
        %1193 = vmatpush1.msra.mxu0 %v1092
        %1194 = vmatprep.subr.mxu0 %v1077
        %1195 = vmatpush1.msra.mxu0 %v1076
        %1196 = vmatprep.subr.mxu0 %v1073
        %1197 = vmatpush1.msra.mxu0 %v1072
        %1198 = vmatprep.subr.mxu0 %v1069
        %1199 = vmatpush1.msra.mxu0 %v1068
        %1200 = vmatprep.subr.mxu0 0.0
        %1201 = vmatpush2.msra.mxu0 0.0
        %1202 = vmatprep.subr.mxu0 0.0
        %1203 = vmatpush2.msra.mxu0 0.0
        %1204 = vmatprep.subr.mxu0 0.0
        %1205 = vmatpush2.msra.mxu0 0.0
        %1206 = vmatprep.subr.mxu0 0.0
        %1207 = vmatpush2.msra.mxu0 0.0
        %1208 = vmatprep.subr.mxu0 0.0
        %1209 = vmatpush2.msra.mxu0 0.0
        %1210 = vmatprep.subr.mxu0 0.0
        %1211 = vmatpush2.msra.mxu0 0.0
        %1212 = vmatprep.subr.mxu0 0.0
        %1213 = vmatpush2.msra.mxu0 0.0
        %1214 = vmatprep.subr.mxu0 0.0
        %1215 = vmatpush2.msra.mxu0 0.0
        %1216 = vmatprep.subr.mxu0 0.0
        %1217 = vmatpush2.msra.mxu0 0.0
        %1218 = vmatprep.subr.mxu0 0.0
        %1219 = vmatpush2.msra.mxu0 0.0
        %1220 = vmatprep.subr.mxu0 0.0
        %1221 = vmatpush2.msra.mxu0 0.0
        %1222 = vmatprep.subr.mxu0 0.0
        %1223 = vmatpush2.msra.mxu0 0.0
        %1224 = vmatprep.subr.mxu0 0.0
        %1225 = vmatpush2.msra.mxu0 0.0
        %1226 = vmatprep.subr.mxu0 0.0
        %1227 = vmatpush2.msra.mxu0 0.0
        %1228 = vmatprep.subr.mxu0 0.0
        %1229 = vmatpush2.msra.mxu0 0.0
        %1230 = vmatprep.subr.mxu0 0.0
        %1231 = vmatpush2.msra.mxu0 0.0
        %1232 = vmatprep.mubr.f32.mxu0 0.0
        %1233 = vmatmul.mubr.f32.gmra.mxu0 %v1083
        %v1234 = vpop.f32.mrf.mxu0
        %v1235 = vadd.f32 0.0, %v1234
        %v1236 = vpop.f32.mrf.mxu0
        %v1237 = vadd.f32 0.0, %v1236
        %1238 = vdwg.mxu0
        %s1239 = scalar_lea.vmem %s702, 24
        %v1240 = vld [vmem:[%s1239] sm:$0x7f]
        %s1241 = scalar_lea.vmem %s2, 384
        %v1242 = vld [vmem:[%s1241] sm:$0xff]
        %v1243 = vld [vmem:[%s1241 + $0x8] sm:$0xff]
        %v1244 = vld [vmem:[%s1241 + $0x10] sm:$0xff]
        %v1245 = vld [vmem:[%s1241 + $0x18] sm:$0xff]
        %v1246 = vld [vmem:[%s1241 + $0x20] sm:$0xff]
        %v1247 = vld [vmem:[%s1241 + $0x28] sm:$0xff]
        %v1248 = vld [vmem:[%s1241 + $0x30] sm:$0xff]
        %v1249 = vld [vmem:[%s1241 + $0x38] sm:$0xff]
        %v1250 = vld [vmem:[%s1241 + $0x40] sm:$0xff]
        %v1251 = vld [vmem:[%s1241 + $0x48] sm:$0xff]
        %v1252 = vld [vmem:[%s1241 + $0x50] sm:$0xff]
        %v1253 = vld [vmem:[%s1241 + $0x58] sm:$0xff]
        %v1254 = vld [vmem:[%s1241 + $0x60] sm:$0xf]
        %v1255 = vld [vmem:[%s1241 + $0x68] sm:$0xf]
        %v1256 = vld [vmem:[%s1241 + $0x70] sm:$0xf]
        %v1257 = vld [vmem:[%s1241 + $0x78] sm:$0xf]
        %v1259 = vsel %vm728, %v1240, 0
        %v1262 = vsel %vm732, %v1254, 0
        %v1265 = vsel %vm732, %v1255, 0
        %v1268 = vsel %vm732, %v1256, 0
        %v1271 = vsel %vm732, %v1257, 0
        %1273 = vmatprep.subr.mxu0 0.0
        %1274 = vmatpush1.msra.mxu0 0.0
        %1275 = vmatprep.subr.mxu0 0.0
        %1276 = vmatpush1.msra.mxu0 0.0
        %1277 = vmatprep.subr.mxu0 0.0
        %1278 = vmatpush1.msra.mxu0 0.0
        %1279 = vmatprep.subr.mxu0 0.0
        %1280 = vmatpush1.msra.mxu0 0.0
        %1281 = vmatprep.subr.mxu0 0.0
        %1282 = vmatpush1.msra.mxu0 0.0
        %1283 = vmatprep.subr.mxu0 0.0
        %1284 = vmatpush1.msra.mxu0 0.0
        %1285 = vmatprep.subr.mxu0 0.0
        %1286 = vmatpush1.msra.mxu0 0.0
        %1287 = vmatprep.subr.mxu0 0.0
        %1288 = vmatpush1.msra.mxu0 0.0
        %1289 = vmatprep.subr.mxu0 0.0
        %1290 = vmatpush1.msra.mxu0 0.0
        %1291 = vmatprep.subr.mxu0 0.0
        %1292 = vmatpush1.msra.mxu0 0.0
        %1293 = vmatprep.subr.mxu0 0.0
        %1294 = vmatpush1.msra.mxu0 0.0
        %1295 = vmatprep.subr.mxu0 0.0
        %1296 = vmatpush1.msra.mxu0 0.0
        %1297 = vmatprep.subr.mxu0 %v1265
        %1298 = vmatpush1.msra.mxu0 %v1262
        %1299 = vmatprep.subr.mxu0 %v1251
        %1300 = vmatpush1.msra.mxu0 %v1250
        %1301 = vmatprep.subr.mxu0 %v1247
        %1302 = vmatpush1.msra.mxu0 %v1246
        %1303 = vmatprep.subr.mxu0 %v1243
        %1304 = vmatpush1.msra.mxu0 %v1242
        %1305 = vmatprep.subr.mxu0 0.0
        %1306 = vmatpush2.msra.mxu0 0.0
        %1307 = vmatprep.subr.mxu0 0.0
        %1308 = vmatpush2.msra.mxu0 0.0
        %1309 = vmatprep.subr.mxu0 0.0
        %1310 = vmatpush2.msra.mxu0 0.0
        %1311 = vmatprep.subr.mxu0 0.0
        %1312 = vmatpush2.msra.mxu0 0.0
        %1313 = vmatprep.subr.mxu0 0.0
        %1314 = vmatpush2.msra.mxu0 0.0
        %1315 = vmatprep.subr.mxu0 0.0
        %1316 = vmatpush2.msra.mxu0 0.0
        %1317 = vmatprep.subr.mxu0 0.0
        %1318 = vmatpush2.msra.mxu0 0.0
        %1319 = vmatprep.subr.mxu0 0.0
        %1320 = vmatpush2.msra.mxu0 0.0
        %1321 = vmatprep.subr.mxu0 0.0
        %1322 = vmatpush2.msra.mxu0 0.0
        %1323 = vmatprep.subr.mxu0 0.0
        %1324 = vmatpush2.msra.mxu0 0.0
        %1325 = vmatprep.subr.mxu0 0.0
        %1326 = vmatpush2.msra.mxu0 0.0
        %1327 = vmatprep.subr.mxu0 0.0
        %1328 = vmatpush2.msra.mxu0 0.0
        %1329 = vmatprep.subr.mxu0 0.0
        %1330 = vmatpush2.msra.mxu0 0.0
        %1331 = vmatprep.subr.mxu0 0.0
        %1332 = vmatpush2.msra.mxu0 0.0
        %1333 = vmatprep.subr.mxu0 0.0
        %1334 = vmatpush2.msra.mxu0 0.0
        %1335 = vmatprep.subr.mxu0 0.0
        %1336 = vmatpush2.msra.mxu0 0.0
        %1337 = vmatprep.mubr.f32.mxu0 0.0
        %1338 = vmatmul.mubr.f32.gmra.mxu0 %v1259
        %v1339 = vpop.f32.mrf.mxu0
        %v1340 = vadd.f32 0.0, %v1339
        %v1341 = vpop.f32.mrf.mxu0
        %v1342 = vadd.f32 0.0, %v1341
        %1343 = vdwg.mxu0
        %1344 = vmatprep.subr.mxu0 0.0
        %1345 = vmatpush1.msra.mxu0 0.0
        %1346 = vmatprep.subr.mxu0 0.0
        %1347 = vmatpush1.msra.mxu0 0.0
        %1348 = vmatprep.subr.mxu0 0.0
        %1349 = vmatpush1.msra.mxu0 0.0
        %1350 = vmatprep.subr.mxu0 0.0
        %1351 = vmatpush1.msra.mxu0 0.0
        %1352 = vmatprep.subr.mxu0 0.0
        %1353 = vmatpush1.msra.mxu0 0.0
        %1354 = vmatprep.subr.mxu0 0.0
        %1355 = vmatpush1.msra.mxu0 0.0
        %1356 = vmatprep.subr.mxu0 0.0
        %1357 = vmatpush1.msra.mxu0 0.0
        %1358 = vmatprep.subr.mxu0 0.0
        %1359 = vmatpush1.msra.mxu0 0.0
        %1360 = vmatprep.subr.mxu0 0.0
        %1361 = vmatpush1.msra.mxu0 0.0
        %1362 = vmatprep.subr.mxu0 0.0
        %1363 = vmatpush1.msra.mxu0 0.0
        %1364 = vmatprep.subr.mxu0 0.0
        %1365 = vmatpush1.msra.mxu0 0.0
        %1366 = vmatprep.subr.mxu0 0.0
        %1367 = vmatpush1.msra.mxu0 0.0
        %1368 = vmatprep.subr.mxu0 %v1271
        %1369 = vmatpush1.msra.mxu0 %v1268
        %1370 = vmatprep.subr.mxu0 %v1253
        %1371 = vmatpush1.msra.mxu0 %v1252
        %1372 = vmatprep.subr.mxu0 %v1249
        %1373 = vmatpush1.msra.mxu0 %v1248
        %1374 = vmatprep.subr.mxu0 %v1245
        %1375 = vmatpush1.msra.mxu0 %v1244
        %1376 = vmatprep.subr.mxu0 0.0
        %1377 = vmatpush2.msra.mxu0 0.0
        %1378 = vmatprep.subr.mxu0 0.0
        %1379 = vmatpush2.msra.mxu0 0.0
        %1380 = vmatprep.subr.mxu0 0.0
        %1381 = vmatpush2.msra.mxu0 0.0
        %1382 = vmatprep.subr.mxu0 0.0
        %1383 = vmatpush2.msra.mxu0 0.0
        %1384 = vmatprep.subr.mxu0 0.0
        %1385 = vmatpush2.msra.mxu0 0.0
        %1386 = vmatprep.subr.mxu0 0.0
        %1387 = vmatpush2.msra.mxu0 0.0
        %1388 = vmatprep.subr.mxu0 0.0
        %1389 = vmatpush2.msra.mxu0 0.0
        %1390 = vmatprep.subr.mxu0 0.0
        %1391 = vmatpush2.msra.mxu0 0.0
        %1392 = vmatprep.subr.mxu0 0.0
        %1393 = vmatpush2.msra.mxu0 0.0
        %1394 = vmatprep.subr.mxu0 0.0
        %1395 = vmatpush2.msra.mxu0 0.0
        %1396 = vmatprep.subr.mxu0 0.0
        %1397 = vmatpush2.msra.mxu0 0.0
        %1398 = vmatprep.subr.mxu0 0.0
        %1399 = vmatpush2.msra.mxu0 0.0
        %1400 = vmatprep.subr.mxu0 0.0
        %1401 = vmatpush2.msra.mxu0 0.0
        %1402 = vmatprep.subr.mxu0 0.0
        %1403 = vmatpush2.msra.mxu0 0.0
        %1404 = vmatprep.subr.mxu0 0.0
        %1405 = vmatpush2.msra.mxu0 0.0
        %1406 = vmatprep.subr.mxu0 0.0
        %1407 = vmatpush2.msra.mxu0 0.0
        %1408 = vmatprep.mubr.f32.mxu0 0.0
        %1409 = vmatmul.mubr.f32.gmra.mxu0 %v1259
        %v1410 = vpop.f32.mrf.mxu0
        %v1411 = vadd.f32 0.0, %v1410
        %v1412 = vpop.f32.mrf.mxu0
        %v1413 = vadd.f32 0.0, %v1412
        %1414 = vdwg.mxu0
        %v1415 = vld [vmem:[%s3] sm:$0x3]
        %v1416 = vadd.f32 %v812, %v988
        %v1417 = vadd.f32 %v814, %v990
        %v1418 = vadd.f32 %v1416, %v1164
        %v1419 = vadd.f32 %v1417, %v1166
        %v1422 = vrot.slane %v1340, 7
        %v1423 = vrot.slane %v1342, 7
        %vm1426 = vcmask 1040384
        %v1427 = vsel %vm1426, 0.0, %v1422
        %v1428 = vsel %vm1426, 0.0, %v1423
        %v1429 = vadd.f32 %v1418, %v1427
        %v1430 = vadd.f32 %v1419, %v1428
        %v1432 = vlaneseq
        %v1433 = vshrl.u32 %v1432, 7
        %v1434 = vsub.s32 0, %v1433
        %v1435 = vrot.slane %v1415, %v1434
        %v1436 = vlaneseq
        %v1437 = vshrl.u32 %v1436, 7
        %v1438 = vsub.s32 1, %v1437
        %v1439 = vrot.slane %v1415, %v1438
        %v1442 = vadd.f32 %v1429, %v1435
        %v1443 = vadd.f32 %v1430, %v1439
        %v1447 = vrot.slane %v814, 1
        %v1448 = vrot.slane %v883, 1
        %v1449 = vrot.slane %v885, 1
        %vm1453 = vcmask 1045504
        %v1454 = vsel %vm1453, %v1447, 0.0
        %v1455 = vsel %vm1453, %v1448, 0.0
        %v1456 = vsel %vm1453, %v1449, 0.0
        %v1457 = vadd.f32 %v1454, %v990
        %v1458 = vadd.f32 %v1455, %v1059
        %v1459 = vadd.f32 %v1456, %v1061
        %v1460 = vadd.f32 %v1457, %v1166
        %v1461 = vadd.f32 %v1458, %v1235
        %v1462 = vadd.f32 %v1459, %v1237
        %v1463 = vadd.f32 %v1460, %v1342
        %v1464 = vadd.f32 %v1461, %v1411
        %v1465 = vadd.f32 %v1462, %v1413
        %1466 = vrot.lane.b32.xlu0 %v1435, 96
        %v1467 = vpop.permute.xlu0 %1466
        %1468 = vrot.lane.b32.xlu0 %v1439, 96
        %v1469 = vpop.permute.xlu0 %1468
        %vm1470 = vcmask 785408
        %v1471 = vsel %vm1470, %v1467, %v1469
        %v1475 = vadd.f32 %v1463, %v1467
        %v1476 = vadd.f32 %v1464, %v1471
        %v1477 = vadd.f32 %v1465, %v1469
        %v1478 = vmax.f32 %v1442, 0.0
        %v1479 = vmax.f32 %v1443, 0.0
        %v1480 = vmax.f32 %v1475, 0.0
        %v1481 = vmax.f32 %v1476, 0.0
        %v1482 = vmax.f32 %v1477, 0.0
        %v1483 = vld [vmem:[%s4] sm:$0xff]
        %v1484 = vld [vmem:[%s4 + $0x8] sm:$0xff]
        %v1485 = vld [vmem:[%s4 + $0x10] sm:$0xff]
        %v1486 = vld [vmem:[%s4 + $0x18] sm:$0xff]
        %v1487 = vld [vmem:[%s4 + $0x20] sm:$0xff]
        %v1488 = vld [vmem:[%s4 + $0x28] sm:$0xff]
        %v1489 = vld [vmem:[%s4 + $0x30] sm:$0xff]
        %v1490 = vld [vmem:[%s4 + $0x38] sm:$0xff]
        %v1491 = vld [vmem:[%s4 + $0x40] sm:$0xff]
        %v1492 = vld [vmem:[%s4 + $0x48] sm:$0xff]
        %v1493 = vld [vmem:[%s4 + $0x50] sm:$0xff]
        %v1494 = vld [vmem:[%s4 + $0x58] sm:$0xff]
        %v1495 = vld [vmem:[%s4 + $0x60] sm:$0xff]
        %v1496 = vld [vmem:[%s4 + $0x68] sm:$0xff]
        %v1497 = vld [vmem:[%s4 + $0x70] sm:$0xff]
        %v1498 = vld [vmem:[%s4 + $0x78] sm:$0xff]
        %v1499 = vld [vmem:[%s4 + $0x80] sm:$0xff]
        %v1500 = vld [vmem:[%s4 + $0x88] sm:$0xff]
        %v1501 = vld [vmem:[%s4 + $0x90] sm:$0xff]
        %v1502 = vld [vmem:[%s4 + $0x98] sm:$0xff]
        %v1503 = vld [vmem:[%s4 + $0xa0] sm:$0xff]
        %v1504 = vld [vmem:[%s4 + $0xa8] sm:$0xff]
        %v1505 = vld [vmem:[%s4 + $0xb0] sm:$0xff]
        %v1506 = vld [vmem:[%s4 + $0xb8] sm:$0xff]
        %v1507 = vld [vmem:[%s4 + $0xc0] sm:$0xff]
        %v1508 = vld [vmem:[%s4 + $0xc8] sm:$0xff]
        %v1509 = vld [vmem:[%s4 + $0xd0] sm:$0xff]
        %v1510 = vld [vmem:[%s4 + $0xd8] sm:$0xff]
        %v1511 = vld [vmem:[%s4 + $0xe0] sm:$0xff]
        %v1512 = vld [vmem:[%s4 + $0xe8] sm:$0xff]
        %v1513 = vld [vmem:[%s4 + $0xf0] sm:$0xff]
        %v1514 = vld [vmem:[%s4 + $0xf8] sm:$0xff]
        %v1515 = vld [vmem:[%s4 + $0x100] sm:$0xff]
        %v1516 = vld [vmem:[%s4 + $0x108] sm:$0xff]
        %v1517 = vld [vmem:[%s4 + $0x110] sm:$0xff]
        %v1518 = vld [vmem:[%s4 + $0x118] sm:$0xff]
        %v1519 = vld [vmem:[%s4 + $0x120] sm:$0xff]
        %v1520 = vld [vmem:[%s4 + $0x128] sm:$0xff]
        %v1521 = vld [vmem:[%s4 + $0x130] sm:$0xff]
        %v1522 = vld [vmem:[%s4 + $0x138] sm:$0xff]
        %v1523 = vld [vmem:[%s4 + $0x140] sm:$0xff]
        %v1524 = vld [vmem:[%s4 + $0x148] sm:$0xff]
        %v1525 = vld [vmem:[%s4 + $0x150] sm:$0xff]
        %v1526 = vld [vmem:[%s4 + $0x158] sm:$0xff]
        %v1527 = vld [vmem:[%s4 + $0x160] sm:$0xff]
        %v1528 = vld [vmem:[%s4 + $0x168] sm:$0xff]
        %v1529 = vld [vmem:[%s4 + $0x170] sm:$0xff]
        %v1530 = vld [vmem:[%s4 + $0x178] sm:$0xff]
        %v1531 = vld [vmem:[%s4 + $0x180] sm:$0xff]
        %v1532 = vld [vmem:[%s4 + $0x188] sm:$0xff]
        %v1533 = vld [vmem:[%s4 + $0x190] sm:$0xff]
        %v1534 = vld [vmem:[%s4 + $0x198] sm:$0xff]
        %v1535 = vld [vmem:[%s4 + $0x1a0] sm:$0xff]
        %v1536 = vld [vmem:[%s4 + $0x1a8] sm:$0xff]
        %v1537 = vld [vmem:[%s4 + $0x1b0] sm:$0xff]
        %v1538 = vld [vmem:[%s4 + $0x1b8] sm:$0xff]
        %v1539 = vld [vmem:[%s4 + $0x1c0] sm:$0xff]
        %v1540 = vld [vmem:[%s4 + $0x1c8] sm:$0xff]
        %v1541 = vld [vmem:[%s4 + $0x1d0] sm:$0xff]
        %v1542 = vld [vmem:[%s4 + $0x1d8] sm:$0xff]
        %v1543 = vld [vmem:[%s4 + $0x1e0] sm:$0xff]
        %v1544 = vld [vmem:[%s4 + $0x1e8] sm:$0xff]
        %v1545 = vld [vmem:[%s4 + $0x1f0] sm:$0xff]
        %v1546 = vld [vmem:[%s4 + $0x1f8] sm:$0xff]
        %v1547 = vld [vmem:[%s4 + $0x200] sm:$0xff]
        %v1548 = vld [vmem:[%s4 + $0x208] sm:$0xff]
        %v1549 = vld [vmem:[%s4 + $0x210] sm:$0xff]
        %v1550 = vld [vmem:[%s4 + $0x218] sm:$0xff]
        %v1551 = vld [vmem:[%s4 + $0x220] sm:$0xff]
        %v1552 = vld [vmem:[%s4 + $0x228] sm:$0xff]
        %v1553 = vld [vmem:[%s4 + $0x230] sm:$0xff]
        %v1554 = vld [vmem:[%s4 + $0x238] sm:$0xff]
        %v1555 = vld [vmem:[%s4 + $0x240] sm:$0xff]
        %v1556 = vld [vmem:[%s4 + $0x248] sm:$0xff]
        %v1557 = vld [vmem:[%s4 + $0x250] sm:$0xff]
        %v1558 = vld [vmem:[%s4 + $0x258] sm:$0xff]
        %v1559 = vld [vmem:[%s4 + $0x260] sm:$0xff]
        %v1560 = vld [vmem:[%s4 + $0x268] sm:$0xff]
        %v1561 = vld [vmem:[%s4 + $0x270] sm:$0xff]
        %v1562 = vld [vmem:[%s4 + $0x278] sm:$0xff]
        %v1563 = vld [vmem:[%s4 + $0x280] sm:$0xff]
        %v1564 = vld [vmem:[%s4 + $0x288] sm:$0xff]
        %v1565 = vld [vmem:[%s4 + $0x290] sm:$0xff]
        %v1566 = vld [vmem:[%s4 + $0x298] sm:$0xff]
        %v1567 = vld [vmem:[%s4 + $0x2a0] sm:$0xff]
        %v1568 = vld [vmem:[%s4 + $0x2a8] sm:$0xff]
        %v1569 = vld [vmem:[%s4 + $0x2b0] sm:$0xff]
        %v1570 = vld [vmem:[%s4 + $0x2b8] sm:$0xff]
        %v1571 = vld [vmem:[%s4 + $0x2c0] sm:$0xff]
        %v1572 = vld [vmem:[%s4 + $0x2c8] sm:$0xff]
        %v1573 = vld [vmem:[%s4 + $0x2d0] sm:$0xff]
        %v1574 = vld [vmem:[%s4 + $0x2d8] sm:$0xff]
        %v1575 = vld [vmem:[%s4 + $0x2e0] sm:$0xff]
        %v1576 = vld [vmem:[%s4 + $0x2e8] sm:$0xff]
        %v1577 = vld [vmem:[%s4 + $0x2f0] sm:$0xff]
        %v1578 = vld [vmem:[%s4 + $0x2f8] sm:$0xff]
        %v1579 = vld [vmem:[%s4 + $0x300] sm:$0xff]
        %v1580 = vld [vmem:[%s4 + $0x308] sm:$0xff]
        %v1581 = vld [vmem:[%s4 + $0x310] sm:$0xff]
        %v1582 = vld [vmem:[%s4 + $0x318] sm:$0xff]
        %v1583 = vld [vmem:[%s4 + $0x320] sm:$0xff]
        %v1584 = vld [vmem:[%s4 + $0x328] sm:$0xff]
        %v1585 = vld [vmem:[%s4 + $0x330] sm:$0xff]
        %v1586 = vld [vmem:[%s4 + $0x338] sm:$0xff]
        %v1587 = vld [vmem:[%s4 + $0x340] sm:$0xff]
        %v1588 = vld [vmem:[%s4 + $0x348] sm:$0xff]
        %v1589 = vld [vmem:[%s4 + $0x350] sm:$0xff]
        %v1590 = vld [vmem:[%s4 + $0x358] sm:$0xff]
        %v1591 = vld [vmem:[%s4 + $0x360] sm:$0xff]
        %v1592 = vld [vmem:[%s4 + $0x368] sm:$0xff]
        %v1593 = vld [vmem:[%s4 + $0x370] sm:$0xff]
        %v1594 = vld [vmem:[%s4 + $0x378] sm:$0xff]
        %v1596 = vsel %vm1470, %v1479, 0
        %1598 = vmatprep.subr.mxu0 %v1544
        %1599 = vmatpush1.msra.mxu0 %v1543
        %1600 = vmatprep.subr.mxu0 %v1540
        %1601 = vmatpush1.msra.mxu0 %v1539
        %1602 = vmatprep.subr.mxu0 %v1536
        %1603 = vmatpush1.msra.mxu0 %v1535
        %1604 = vmatprep.subr.mxu0 %v1532
        %1605 = vmatpush1.msra.mxu0 %v1531
        %1606 = vmatprep.subr.mxu0 %v1528
        %1607 = vmatpush1.msra.mxu0 %v1527
        %1608 = vmatprep.subr.mxu0 %v1524
        %1609 = vmatpush1.msra.mxu0 %v1523
        %1610 = vmatprep.subr.mxu0 %v1520
        %1611 = vmatpush1.msra.mxu0 %v1519
        %1612 = vmatprep.subr.mxu0 %v1516
        %1613 = vmatpush1.msra.mxu0 %v1515
        %1614 = vmatprep.subr.mxu0 %v1512
        %1615 = vmatpush1.msra.mxu0 %v1511
        %1616 = vmatprep.subr.mxu0 %v1508
        %1617 = vmatpush1.msra.mxu0 %v1507
        %1618 = vmatprep.subr.mxu0 %v1504
        %1619 = vmatpush1.msra.mxu0 %v1503
        %1620 = vmatprep.subr.mxu0 %v1500
        %1621 = vmatpush1.msra.mxu0 %v1499
        %1622 = vmatprep.subr.mxu0 %v1496
        %1623 = vmatpush1.msra.mxu0 %v1495
        %1624 = vmatprep.subr.mxu0 %v1492
        %1625 = vmatpush1.msra.mxu0 %v1491
        %1626 = vmatprep.subr.mxu0 %v1488
        %1627 = vmatpush1.msra.mxu0 %v1487
        %1628 = vmatprep.subr.mxu0 %v1484
        %1629 = vmatpush1.msra.mxu0 %v1483
        %1630 = vmatprep.subr.mxu0 0.0
        %1631 = vmatpush2.msra.mxu0 0.0
        %1632 = vmatprep.subr.mxu0 0.0
        %1633 = vmatpush2.msra.mxu0 0.0
        %1634 = vmatprep.subr.mxu0 0.0
        %1635 = vmatpush2.msra.mxu0 0.0
        %1636 = vmatprep.subr.mxu0 0.0
        %1637 = vmatpush2.msra.mxu0 0.0
        %1638 = vmatprep.subr.mxu0 %v1592
        %1639 = vmatpush2.msra.mxu0 %v1591
        %1640 = vmatprep.subr.mxu0 %v1588
        %1641 = vmatpush2.msra.mxu0 %v1587
        %1642 = vmatprep.subr.mxu0 %v1584
        %1643 = vmatpush2.msra.mxu0 %v1583
        %1644 = vmatprep.subr.mxu0 %v1580
        %1645 = vmatpush2.msra.mxu0 %v1579
        %1646 = vmatprep.subr.mxu0 %v1576
        %1647 = vmatpush2.msra.mxu0 %v1575
        %1648 = vmatprep.subr.mxu0 %v1572
        %1649 = vmatpush2.msra.mxu0 %v1571
        %1650 = vmatprep.subr.mxu0 %v1568
        %1651 = vmatpush2.msra.mxu0 %v1567
        %1652 = vmatprep.subr.mxu0 %v1564
        %1653 = vmatpush2.msra.mxu0 %v1563
        %1654 = vmatprep.subr.mxu0 %v1560
        %1655 = vmatpush2.msra.mxu0 %v1559
        %1656 = vmatprep.subr.mxu0 %v1556
        %1657 = vmatpush2.msra.mxu0 %v1555
        %1658 = vmatprep.subr.mxu0 %v1552
        %1659 = vmatpush2.msra.mxu0 %v1551
        %1660 = vmatprep.subr.mxu0 %v1548
        %1661 = vmatpush2.msra.mxu0 %v1547
        %1662 = vmatprep.mubr.f32.mxu0 %v1596
        %1663 = vmatmul.mubr.f32.gmra.mxu0 %v1478
        %v1664 = vpop.f32.mrf.mxu0
        %v1665 = vadd.f32 0.0, %v1664
        %v1666 = vpop.f32.mrf.mxu0
        %v1667 = vadd.f32 0.0, %v1666
        %1668 = vdwg.mxu0
        %1669 = vmatprep.subr.mxu0 %v1546
        %1670 = vmatpush1.msra.mxu0 %v1545
        %1671 = vmatprep.subr.mxu0 %v1542
        %1672 = vmatpush1.msra.mxu0 %v1541
        %1673 = vmatprep.subr.mxu0 %v1538
        %1674 = vmatpush1.msra.mxu0 %v1537
        %1675 = vmatprep.subr.mxu0 %v1534
        %1676 = vmatpush1.msra.mxu0 %v1533
        %1677 = vmatprep.subr.mxu0 %v1530
        %1678 = vmatpush1.msra.mxu0 %v1529
        %1679 = vmatprep.subr.mxu0 %v1526
        %1680 = vmatpush1.msra.mxu0 %v1525
        %1681 = vmatprep.subr.mxu0 %v1522
        %1682 = vmatpush1.msra.mxu0 %v1521
        %1683 = vmatprep.subr.mxu0 %v1518
        %1684 = vmatpush1.msra.mxu0 %v1517
        %1685 = vmatprep.subr.mxu0 %v1514
        %1686 = vmatpush1.msra.mxu0 %v1513
        %1687 = vmatprep.subr.mxu0 %v1510
        %1688 = vmatpush1.msra.mxu0 %v1509
        %1689 = vmatprep.subr.mxu0 %v1506
        %1690 = vmatpush1.msra.mxu0 %v1505
        %1691 = vmatprep.subr.mxu0 %v1502
        %1692 = vmatpush1.msra.mxu0 %v1501
        %1693 = vmatprep.subr.mxu0 %v1498
        %1694 = vmatpush1.msra.mxu0 %v1497
        %1695 = vmatprep.subr.mxu0 %v1494
        %1696 = vmatpush1.msra.mxu0 %v1493
        %1697 = vmatprep.subr.mxu0 %v1490
        %1698 = vmatpush1.msra.mxu0 %v1489
        %1699 = vmatprep.subr.mxu0 %v1486
        %1700 = vmatpush1.msra.mxu0 %v1485
        %1701 = vmatprep.subr.mxu0 0.0
        %1702 = vmatpush2.msra.mxu0 0.0
        %1703 = vmatprep.subr.mxu0 0.0
        %1704 = vmatpush2.msra.mxu0 0.0
        %1705 = vmatprep.subr.mxu0 0.0
        %1706 = vmatpush2.msra.mxu0 0.0
        %1707 = vmatprep.subr.mxu0 0.0
        %1708 = vmatpush2.msra.mxu0 0.0
        %1709 = vmatprep.subr.mxu0 %v1594
        %1710 = vmatpush2.msra.mxu0 %v1593
        %1711 = vmatprep.subr.mxu0 %v1590
        %1712 = vmatpush2.msra.mxu0 %v1589
        %1713 = vmatprep.subr.mxu0 %v1586
        %1714 = vmatpush2.msra.mxu0 %v1585
        %1715 = vmatprep.subr.mxu0 %v1582
        %1716 = vmatpush2.msra.mxu0 %v1581
        %1717 = vmatprep.subr.mxu0 %v1578
        %1718 = vmatpush2.msra.mxu0 %v1577
        %1719 = vmatprep.subr.mxu0 %v1574
        %1720 = vmatpush2.msra.mxu0 %v1573
        %1721 = vmatprep.subr.mxu0 %v1570
        %1722 = vmatpush2.msra.mxu0 %v1569
        %1723 = vmatprep.subr.mxu0 %v1566
        %1724 = vmatpush2.msra.mxu0 %v1565
        %1725 = vmatprep.subr.mxu0 %v1562
        %1726 = vmatpush2.msra.mxu0 %v1561
        %1727 = vmatprep.subr.mxu0 %v1558
        %1728 = vmatpush2.msra.mxu0 %v1557
        %1729 = vmatprep.subr.mxu0 %v1554
        %1730 = vmatpush2.msra.mxu0 %v1553
        %1731 = vmatprep.subr.mxu0 %v1550
        %1732 = vmatpush2.msra.mxu0 %v1549
        %1733 = vmatprep.mubr.f32.mxu0 %v1596
        %1734 = vmatmul.mubr.f32.gmra.mxu0 %v1478
        %v1735 = vpop.f32.mrf.mxu0
        %v1736 = vadd.f32 0.0, %v1735
        %v1737 = vpop.f32.mrf.mxu0
        %v1738 = vadd.f32 0.0, %v1737
        %1739 = vdwg.mxu0
        %s1740 = scalar_lea.vmem %s4, 896
        %v1741 = vld [vmem:[%s1740] sm:$0xff]
        %v1742 = vld [vmem:[%s1740 + $0x8] sm:$0xff]
        %v1743 = vld [vmem:[%s1740 + $0x10] sm:$0xff]
        %v1744 = vld [vmem:[%s1740 + $0x18] sm:$0xff]
        %v1745 = vld [vmem:[%s1740 + $0x20] sm:$0xff]
        %v1746 = vld [vmem:[%s1740 + $0x28] sm:$0xff]
        %v1747 = vld [vmem:[%s1740 + $0x30] sm:$0xff]
        %v1748 = vld [vmem:[%s1740 + $0x38] sm:$0xff]
        %v1749 = vld [vmem:[%s1740 + $0x40] sm:$0xff]
        %v1750 = vld [vmem:[%s1740 + $0x48] sm:$0xff]
        %v1751 = vld [vmem:[%s1740 + $0x50] sm:$0xff]
        %v1752 = vld [vmem:[%s1740 + $0x58] sm:$0xff]
        %v1753 = vld [vmem:[%s1740 + $0x60] sm:$0xff]
        %v1754 = vld [vmem:[%s1740 + $0x68] sm:$0xff]
        %v1755 = vld [vmem:[%s1740 + $0x70] sm:$0xff]
        %v1756 = vld [vmem:[%s1740 + $0x78] sm:$0xff]
        %v1757 = vld [vmem:[%s1740 + $0x80] sm:$0xff]
        %v1758 = vld [vmem:[%s1740 + $0x88] sm:$0xff]
        %v1759 = vld [vmem:[%s1740 + $0x90] sm:$0xff]
        %v1760 = vld [vmem:[%s1740 + $0x98] sm:$0xff]
        %v1761 = vld [vmem:[%s1740 + $0xa0] sm:$0xff]
        %v1762 = vld [vmem:[%s1740 + $0xa8] sm:$0xff]
        %v1763 = vld [vmem:[%s1740 + $0xb0] sm:$0xff]
        %v1764 = vld [vmem:[%s1740 + $0xb8] sm:$0xff]
        %v1765 = vld [vmem:[%s1740 + $0xc0] sm:$0xff]
        %v1766 = vld [vmem:[%s1740 + $0xc8] sm:$0xff]
        %v1767 = vld [vmem:[%s1740 + $0xd0] sm:$0xff]
        %v1768 = vld [vmem:[%s1740 + $0xd8] sm:$0xff]
        %v1769 = vld [vmem:[%s1740 + $0xe0] sm:$0xff]
        %v1770 = vld [vmem:[%s1740 + $0xe8] sm:$0xff]
        %v1771 = vld [vmem:[%s1740 + $0xf0] sm:$0xff]
        %v1772 = vld [vmem:[%s1740 + $0xf8] sm:$0xff]
        %v1773 = vld [vmem:[%s1740 + $0x100] sm:$0xff]
        %v1774 = vld [vmem:[%s1740 + $0x108] sm:$0xff]
        %v1775 = vld [vmem:[%s1740 + $0x110] sm:$0xff]
        %v1776 = vld [vmem:[%s1740 + $0x118] sm:$0xff]
        %v1777 = vld [vmem:[%s1740 + $0x120] sm:$0xff]
        %v1778 = vld [vmem:[%s1740 + $0x128] sm:$0xff]
        %v1779 = vld [vmem:[%s1740 + $0x130] sm:$0xff]
        %v1780 = vld [vmem:[%s1740 + $0x138] sm:$0xff]
        %v1781 = vld [vmem:[%s1740 + $0x140] sm:$0xff]
        %v1782 = vld [vmem:[%s1740 + $0x148] sm:$0xff]
        %v1783 = vld [vmem:[%s1740 + $0x150] sm:$0xff]
        %v1784 = vld [vmem:[%s1740 + $0x158] sm:$0xff]
        %v1785 = vld [vmem:[%s1740 + $0x160] sm:$0xff]
        %v1786 = vld [vmem:[%s1740 + $0x168] sm:$0xff]
        %v1787 = vld [vmem:[%s1740 + $0x170] sm:$0xff]
        %v1788 = vld [vmem:[%s1740 + $0x178] sm:$0xff]
        %v1789 = vld [vmem:[%s1740 + $0x180] sm:$0xff]
        %v1790 = vld [vmem:[%s1740 + $0x188] sm:$0xff]
        %v1791 = vld [vmem:[%s1740 + $0x190] sm:$0xff]
        %v1792 = vld [vmem:[%s1740 + $0x198] sm:$0xff]
        %v1793 = vld [vmem:[%s1740 + $0x1a0] sm:$0xff]
        %v1794 = vld [vmem:[%s1740 + $0x1a8] sm:$0xff]
        %v1795 = vld [vmem:[%s1740 + $0x1b0] sm:$0xff]
        %v1796 = vld [vmem:[%s1740 + $0x1b8] sm:$0xff]
        %v1797 = vld [vmem:[%s1740 + $0x1c0] sm:$0xff]
        %v1798 = vld [vmem:[%s1740 + $0x1c8] sm:$0xff]
        %v1799 = vld [vmem:[%s1740 + $0x1d0] sm:$0xff]
        %v1800 = vld [vmem:[%s1740 + $0x1d8] sm:$0xff]
        %v1801 = vld [vmem:[%s1740 + $0x1e0] sm:$0xff]
        %v1802 = vld [vmem:[%s1740 + $0x1e8] sm:$0xff]
        %v1803 = vld [vmem:[%s1740 + $0x1f0] sm:$0xff]
        %v1804 = vld [vmem:[%s1740 + $0x1f8] sm:$0xff]
        %v1805 = vld [vmem:[%s1740 + $0x200] sm:$0xff]
        %v1806 = vld [vmem:[%s1740 + $0x208] sm:$0xff]
        %v1807 = vld [vmem:[%s1740 + $0x210] sm:$0xff]
        %v1808 = vld [vmem:[%s1740 + $0x218] sm:$0xff]
        %v1809 = vld [vmem:[%s1740 + $0x220] sm:$0xff]
        %v1810 = vld [vmem:[%s1740 + $0x228] sm:$0xff]
        %v1811 = vld [vmem:[%s1740 + $0x230] sm:$0xff]
        %v1812 = vld [vmem:[%s1740 + $0x238] sm:$0xff]
        %v1813 = vld [vmem:[%s1740 + $0x240] sm:$0xff]
        %v1814 = vld [vmem:[%s1740 + $0x248] sm:$0xff]
        %v1815 = vld [vmem:[%s1740 + $0x250] sm:$0xff]
        %v1816 = vld [vmem:[%s1740 + $0x258] sm:$0xff]
        %v1817 = vld [vmem:[%s1740 + $0x260] sm:$0xff]
        %v1818 = vld [vmem:[%s1740 + $0x268] sm:$0xff]
        %v1819 = vld [vmem:[%s1740 + $0x270] sm:$0xff]
        %v1820 = vld [vmem:[%s1740 + $0x278] sm:$0xff]
        %v1821 = vld [vmem:[%s1740 + $0x280] sm:$0xff]
        %v1822 = vld [vmem:[%s1740 + $0x288] sm:$0xff]
        %v1823 = vld [vmem:[%s1740 + $0x290] sm:$0xff]
        %v1824 = vld [vmem:[%s1740 + $0x298] sm:$0xff]
        %v1825 = vld [vmem:[%s1740 + $0x2a0] sm:$0xff]
        %v1826 = vld [vmem:[%s1740 + $0x2a8] sm:$0xff]
        %v1827 = vld [vmem:[%s1740 + $0x2b0] sm:$0xff]
        %v1828 = vld [vmem:[%s1740 + $0x2b8] sm:$0xff]
        %v1829 = vld [vmem:[%s1740 + $0x2c0] sm:$0xff]
        %v1830 = vld [vmem:[%s1740 + $0x2c8] sm:$0xff]
        %v1831 = vld [vmem:[%s1740 + $0x2d0] sm:$0xff]
        %v1832 = vld [vmem:[%s1740 + $0x2d8] sm:$0xff]
        %v1833 = vld [vmem:[%s1740 + $0x2e0] sm:$0xff]
        %v1834 = vld [vmem:[%s1740 + $0x2e8] sm:$0xff]
        %v1835 = vld [vmem:[%s1740 + $0x2f0] sm:$0xff]
        %v1836 = vld [vmem:[%s1740 + $0x2f8] sm:$0xff]
        %v1837 = vld [vmem:[%s1740 + $0x300] sm:$0xff]
        %v1838 = vld [vmem:[%s1740 + $0x308] sm:$0xff]
        %v1839 = vld [vmem:[%s1740 + $0x310] sm:$0xff]
        %v1840 = vld [vmem:[%s1740 + $0x318] sm:$0xff]
        %v1841 = vld [vmem:[%s1740 + $0x320] sm:$0xff]
        %v1842 = vld [vmem:[%s1740 + $0x328] sm:$0xff]
        %v1843 = vld [vmem:[%s1740 + $0x330] sm:$0xff]
        %v1844 = vld [vmem:[%s1740 + $0x338] sm:$0xff]
        %v1845 = vld [vmem:[%s1740 + $0x340] sm:$0xff]
        %v1846 = vld [vmem:[%s1740 + $0x348] sm:$0xff]
        %v1847 = vld [vmem:[%s1740 + $0x350] sm:$0xff]
        %v1848 = vld [vmem:[%s1740 + $0x358] sm:$0xff]
        %v1849 = vld [vmem:[%s1740 + $0x360] sm:$0xff]
        %v1850 = vld [vmem:[%s1740 + $0x368] sm:$0xff]
        %v1851 = vld [vmem:[%s1740 + $0x370] sm:$0xff]
        %v1852 = vld [vmem:[%s1740 + $0x378] sm:$0xff]
        %1856 = vrot.lane.b32.xlu0 %v1480, 32
        %v1857 = vpop.permute.xlu0 %1856
        %1858 = vrot.lane.b32.xlu0 %v1481, 32
        %v1859 = vpop.permute.xlu0 %1858
        %1860 = vrot.lane.b32.xlu0 %v1482, 32
        %v1861 = vpop.permute.xlu0 %1860
        %vm1862 = vcmask 261120
        %v1863 = vsel %vm1862, %v1857, %v1859
        %v1864 = vsel %vm1862, %v1859, %v1861
        %v1866 = vsel %vm1470, %v1864, 0
        %1868 = vmatprep.subr.mxu0 %v1802
        %1869 = vmatpush1.msra.mxu0 %v1801
        %1870 = vmatprep.subr.mxu0 %v1798
        %1871 = vmatpush1.msra.mxu0 %v1797
        %1872 = vmatprep.subr.mxu0 %v1794
        %1873 = vmatpush1.msra.mxu0 %v1793
        %1874 = vmatprep.subr.mxu0 %v1790
        %1875 = vmatpush1.msra.mxu0 %v1789
        %1876 = vmatprep.subr.mxu0 %v1786
        %1877 = vmatpush1.msra.mxu0 %v1785
        %1878 = vmatprep.subr.mxu0 %v1782
        %1879 = vmatpush1.msra.mxu0 %v1781
        %1880 = vmatprep.subr.mxu0 %v1778
        %1881 = vmatpush1.msra.mxu0 %v1777
        %1882 = vmatprep.subr.mxu0 %v1774
        %1883 = vmatpush1.msra.mxu0 %v1773
        %1884 = vmatprep.subr.mxu0 %v1770
        %1885 = vmatpush1.msra.mxu0 %v1769
        %1886 = vmatprep.subr.mxu0 %v1766
        %1887 = vmatpush1.msra.mxu0 %v1765
        %1888 = vmatprep.subr.mxu0 %v1762
        %1889 = vmatpush1.msra.mxu0 %v1761
        %1890 = vmatprep.subr.mxu0 %v1758
        %1891 = vmatpush1.msra.mxu0 %v1757
        %1892 = vmatprep.subr.mxu0 %v1754
        %1893 = vmatpush1.msra.mxu0 %v1753
        %1894 = vmatprep.subr.mxu0 %v1750
        %1895 = vmatpush1.msra.mxu0 %v1749
        %1896 = vmatprep.subr.mxu0 %v1746
        %1897 = vmatpush1.msra.mxu0 %v1745
        %1898 = vmatprep.subr.mxu0 %v1742
        %1899 = vmatpush1.msra.mxu0 %v1741
        %1900 = vmatprep.subr.mxu0 0.0
        %1901 = vmatpush2.msra.mxu0 0.0
        %1902 = vmatprep.subr.mxu0 0.0
        %1903 = vmatpush2.msra.mxu0 0.0
        %1904 = vmatprep.subr.mxu0 0.0
        %1905 = vmatpush2.msra.mxu0 0.0
        %1906 = vmatprep.subr.mxu0 0.0
        %1907 = vmatpush2.msra.mxu0 0.0
        %1908 = vmatprep.subr.mxu0 %v1850
        %1909 = vmatpush2.msra.mxu0 %v1849
        %1910 = vmatprep.subr.mxu0 %v1846
        %1911 = vmatpush2.msra.mxu0 %v1845
        %1912 = vmatprep.subr.mxu0 %v1842
        %1913 = vmatpush2.msra.mxu0 %v1841
        %1914 = vmatprep.subr.mxu0 %v1838
        %1915 = vmatpush2.msra.mxu0 %v1837
        %1916 = vmatprep.subr.mxu0 %v1834
        %1917 = vmatpush2.msra.mxu0 %v1833
        %1918 = vmatprep.subr.mxu0 %v1830
        %1919 = vmatpush2.msra.mxu0 %v1829
        %1920 = vmatprep.subr.mxu0 %v1826
        %1921 = vmatpush2.msra.mxu0 %v1825
        %1922 = vmatprep.subr.mxu0 %v1822
        %1923 = vmatpush2.msra.mxu0 %v1821
        %1924 = vmatprep.subr.mxu0 %v1818
        %1925 = vmatpush2.msra.mxu0 %v1817
        %1926 = vmatprep.subr.mxu0 %v1814
        %1927 = vmatpush2.msra.mxu0 %v1813
        %1928 = vmatprep.subr.mxu0 %v1810
        %1929 = vmatpush2.msra.mxu0 %v1809
        %1930 = vmatprep.subr.mxu0 %v1806
        %1931 = vmatpush2.msra.mxu0 %v1805
        %1932 = vmatprep.mubr.f32.mxu0 %v1866
        %1933 = vmatmul.mubr.f32.gmra.mxu0 %v1863
        %v1934 = vpop.f32.mrf.mxu0
        %v1935 = vadd.f32 0.0, %v1934
        %v1936 = vpop.f32.mrf.mxu0
        %v1937 = vadd.f32 0.0, %v1936
        %1938 = vdwg.mxu0
        %1939 = vmatprep.subr.mxu0 %v1804
        %1940 = vmatpush1.msra.mxu0 %v1803
        %1941 = vmatprep.subr.mxu0 %v1800
        %1942 = vmatpush1.msra.mxu0 %v1799
        %1943 = vmatprep.subr.mxu0 %v1796
        %1944 = vmatpush1.msra.mxu0 %v1795
        %1945 = vmatprep.subr.mxu0 %v1792
        %1946 = vmatpush1.msra.mxu0 %v1791
        %1947 = vmatprep.subr.mxu0 %v1788
        %1948 = vmatpush1.msra.mxu0 %v1787
        %1949 = vmatprep.subr.mxu0 %v1784
        %1950 = vmatpush1.msra.mxu0 %v1783
        %1951 = vmatprep.subr.mxu0 %v1780
        %1952 = vmatpush1.msra.mxu0 %v1779
        %1953 = vmatprep.subr.mxu0 %v1776
        %1954 = vmatpush1.msra.mxu0 %v1775
        %1955 = vmatprep.subr.mxu0 %v1772
        %1956 = vmatpush1.msra.mxu0 %v1771
        %1957 = vmatprep.subr.mxu0 %v1768
        %1958 = vmatpush1.msra.mxu0 %v1767
        %1959 = vmatprep.subr.mxu0 %v1764
        %1960 = vmatpush1.msra.mxu0 %v1763
        %1961 = vmatprep.subr.mxu0 %v1760
        %1962 = vmatpush1.msra.mxu0 %v1759
        %1963 = vmatprep.subr.mxu0 %v1756
        %1964 = vmatpush1.msra.mxu0 %v1755
        %1965 = vmatprep.subr.mxu0 %v1752
        %1966 = vmatpush1.msra.mxu0 %v1751
        %1967 = vmatprep.subr.mxu0 %v1748
        %1968 = vmatpush1.msra.mxu0 %v1747
        %1969 = vmatprep.subr.mxu0 %v1744
        %1970 = vmatpush1.msra.mxu0 %v1743
        %1971 = vmatprep.subr.mxu0 0.0
        %1972 = vmatpush2.msra.mxu0 0.0
        %1973 = vmatprep.subr.mxu0 0.0
        %1974 = vmatpush2.msra.mxu0 0.0
        %1975 = vmatprep.subr.mxu0 0.0
        %1976 = vmatpush2.msra.mxu0 0.0
        %1977 = vmatprep.subr.mxu0 0.0
        %1978 = vmatpush2.msra.mxu0 0.0
        %1979 = vmatprep.subr.mxu0 %v1852
        %1980 = vmatpush2.msra.mxu0 %v1851
        %1981 = vmatprep.subr.mxu0 %v1848
        %1982 = vmatpush2.msra.mxu0 %v1847
        %1983 = vmatprep.subr.mxu0 %v1844
        %1984 = vmatpush2.msra.mxu0 %v1843
        %1985 = vmatprep.subr.mxu0 %v1840
        %1986 = vmatpush2.msra.mxu0 %v1839
        %1987 = vmatprep.subr.mxu0 %v1836
        %1988 = vmatpush2.msra.mxu0 %v1835
        %1989 = vmatprep.subr.mxu0 %v1832
        %1990 = vmatpush2.msra.mxu0 %v1831
        %1991 = vmatprep.subr.mxu0 %v1828
        %1992 = vmatpush2.msra.mxu0 %v1827
        %1993 = vmatprep.subr.mxu0 %v1824
        %1994 = vmatpush2.msra.mxu0 %v1823
        %1995 = vmatprep.subr.mxu0 %v1820
        %1996 = vmatpush2.msra.mxu0 %v1819
        %1997 = vmatprep.subr.mxu0 %v1816
        %1998 = vmatpush2.msra.mxu0 %v1815
        %1999 = vmatprep.subr.mxu0 %v1812
        %2000 = vmatpush2.msra.mxu0 %v1811
        %2001 = vmatprep.subr.mxu0 %v1808
        %2002 = vmatpush2.msra.mxu0 %v1807
        %2003 = vmatprep.mubr.f32.mxu0 %v1866
        %2004 = vmatmul.mubr.f32.gmra.mxu0 %v1863
        %v2005 = vpop.f32.mrf.mxu0
        %v2006 = vadd.f32 0.0, %v2005
        %v2007 = vpop.f32.mrf.mxu0
        %v2008 = vadd.f32 0.0, %v2007
        %2009 = vdwg.mxu0
        %v2010 = vadd.f32 %v1665, %v1935
        %v2011 = vadd.f32 %v1667, %v1937
        %v2015 = vrot.slane %v1667, 1
        %v2016 = vrot.slane %v1736, 1
        %v2017 = vrot.slane %v1738, 1
        %v2021 = vsel %vm1453, %v2015, 0.0
        %v2022 = vsel %vm1453, %v2016, 0.0
        %v2023 = vsel %vm1453, %v2017, 0.0
        %2027 = vrot.lane.b32.xlu0 %v2021, 32
        %v2028 = vpop.permute.xlu0 %2027
        %2029 = vrot.lane.b32.xlu0 %v2022, 32
        %v2030 = vpop.permute.xlu0 %2029
        %2031 = vrot.lane.b32.xlu0 %v2023, 32
        %v2032 = vpop.permute.xlu0 %2031
        %v2033 = vsel %vm1862, %v2028, %v2030
        %v2034 = vsel %vm1862, %v2030, %v2032
        %v2037 = vadd.f32 %v2010, %v2033
        %v2038 = vadd.f32 %v2011, %v2034
        %v2042 = vrot.slane %v1937, 7
        %v2043 = vrot.slane %v2006, 7
        %v2044 = vrot.slane %v2008, 7
        %2045 = vrot.lane.b32.xlu0 %v2042, 32
        %v2046 = vpop.permute.xlu0 %2045
        %2047 = vrot.lane.b32.xlu0 %v2043, 32
        %v2048 = vpop.permute.xlu0 %2047
        %2049 = vrot.lane.b32.xlu0 %v2044, 32
        %v2050 = vpop.permute.xlu0 %2049
        %v2051 = vsel %vm1862, %v2046, %v2048
        %v2052 = vsel %vm1862, %v2048, %v2050
        %v2055 = vsel %vm1426, 0.0, %v2051
        %v2056 = vsel %vm1426, 0.0, %v2052
        %v2057 = vadd.f32 %v2037, %v2055
        %v2058 = vadd.f32 %v2038, %v2056
        %v2059 = vld [vmem:[%s5] sm:$0x3]
        %v2061 = vlaneseq
        %v2062 = vshrl.u32 %v2061, 7
        %v2063 = vsub.s32 0, %v2062
        %v2064 = vrot.slane %v2059, %v2063
        %v2065 = vlaneseq
        %v2066 = vshrl.u32 %v2065, 7
        %v2067 = vsub.s32 1, %v2066
        %v2068 = vrot.slane %v2059, %v2067
        %v2071 = vadd.f32 %v2057, %v2064
        %v2072 = vadd.f32 %v2058, %v2068
        %v2073 = vmax.f32 %v2071, 0.0
        %v2074 = vmax.f32 %v2072, 0.0
        %v2075 = vld [vmem:[%s7] sm:$0x1]
        %v2076 = vld [vmem:[%s6] sm:$0xff]
        %v2077 = vld [vmem:[%s6 + $0x8] sm:$0xff]
        %v2078 = vld [vmem:[%s6 + $0x10] sm:$0xff]
        %v2079 = vld [vmem:[%s6 + $0x18] sm:$0xff]
        %v2080 = vld [vmem:[%s6 + $0x20] sm:$0xff]
        %v2081 = vld [vmem:[%s6 + $0x28] sm:$0xff]
        %v2082 = vld [vmem:[%s6 + $0x30] sm:$0xff]
        %v2083 = vld [vmem:[%s6 + $0x38] sm:$0xff]
        %v2084 = vld [vmem:[%s6 + $0x40] sm:$0xff]
        %v2085 = vld [vmem:[%s6 + $0x48] sm:$0xff]
        %v2086 = vld [vmem:[%s6 + $0x50] sm:$0xff]
        %v2087 = vld [vmem:[%s6 + $0x58] sm:$0xff]
        %v2088 = vld [vmem:[%s6 + $0x60] sm:$0xff]
        %v2089 = vld [vmem:[%s6 + $0x68] sm:$0xff]
        %v2090 = vld [vmem:[%s6 + $0x70] sm:$0xff]
        %v2091 = vld [vmem:[%s6 + $0x78] sm:$0xff]
        %v2092 = vld [vmem:[%s6 + $0x80] sm:$0xff]
        %v2093 = vld [vmem:[%s6 + $0x88] sm:$0xff]
        %v2094 = vld [vmem:[%s6 + $0x90] sm:$0xff]
        %v2095 = vld [vmem:[%s6 + $0x98] sm:$0xff]
        %v2096 = vld [vmem:[%s6 + $0xa0] sm:$0xff]
        %v2097 = vld [vmem:[%s6 + $0xa8] sm:$0xff]
        %v2098 = vld [vmem:[%s6 + $0xb0] sm:$0xff]
        %v2099 = vld [vmem:[%s6 + $0xb8] sm:$0xff]
        %v2100 = vld [vmem:[%s6 + $0xc0] sm:$0xff]
        %v2101 = vld [vmem:[%s6 + $0xc8] sm:$0xff]
        %v2102 = vld [vmem:[%s6 + $0xd0] sm:$0xff]
        %v2103 = vld [vmem:[%s6 + $0xd8] sm:$0xff]
        %v2105 = vsel %vm1470, %v2074, 0
        %2107 = vmatprep.subr.mxu0 0.0
        %2108 = vmatpush1.msra.mxu0 %v2091
        %2109 = vmatprep.subr.mxu0 0.0
        %2110 = vmatpush1.msra.mxu0 %v2090
        %2111 = vmatprep.subr.mxu0 0.0
        %2112 = vmatpush1.msra.mxu0 %v2089
        %2113 = vmatprep.subr.mxu0 0.0
        %2114 = vmatpush1.msra.mxu0 %v2088
        %2115 = vmatprep.subr.mxu0 0.0
        %2116 = vmatpush1.msra.mxu0 %v2087
        %2117 = vmatprep.subr.mxu0 0.0
        %2118 = vmatpush1.msra.mxu0 %v2086
        %2119 = vmatprep.subr.mxu0 0.0
        %2120 = vmatpush1.msra.mxu0 %v2085
        %2121 = vmatprep.subr.mxu0 0.0
        %2122 = vmatpush1.msra.mxu0 %v2084
        %2123 = vmatprep.subr.mxu0 0.0
        %2124 = vmatpush1.msra.mxu0 %v2083
        %2125 = vmatprep.subr.mxu0 0.0
        %2126 = vmatpush1.msra.mxu0 %v2082
        %2127 = vmatprep.subr.mxu0 0.0
        %2128 = vmatpush1.msra.mxu0 %v2081
        %2129 = vmatprep.subr.mxu0 0.0
        %2130 = vmatpush1.msra.mxu0 %v2080
        %2131 = vmatprep.subr.mxu0 0.0
        %2132 = vmatpush1.msra.mxu0 %v2079
        %2133 = vmatprep.subr.mxu0 0.0
        %2134 = vmatpush1.msra.mxu0 %v2078
        %2135 = vmatprep.subr.mxu0 0.0
        %2136 = vmatpush1.msra.mxu0 %v2077
        %2137 = vmatprep.subr.mxu0 0.0
        %2138 = vmatpush1.msra.mxu0 %v2076
        %2139 = vmatprep.subr.mxu0 0.0
        %2140 = vmatpush2.msra.mxu0 0.0
        %2141 = vmatprep.subr.mxu0 0.0
        %2142 = vmatpush2.msra.mxu0 0.0
        %2143 = vmatprep.subr.mxu0 0.0
        %2144 = vmatpush2.msra.mxu0 0.0
        %2145 = vmatprep.subr.mxu0 0.0
        %2146 = vmatpush2.msra.mxu0 0.0
        %2147 = vmatprep.subr.mxu0 0.0
        %2148 = vmatpush2.msra.mxu0 %v2103
        %2149 = vmatprep.subr.mxu0 0.0
        %2150 = vmatpush2.msra.mxu0 %v2102
        %2151 = vmatprep.subr.mxu0 0.0
        %2152 = vmatpush2.msra.mxu0 %v2101
        %2153 = vmatprep.subr.mxu0 0.0
        %2154 = vmatpush2.msra.mxu0 %v2100
        %2155 = vmatprep.subr.mxu0 0.0
        %2156 = vmatpush2.msra.mxu0 %v2099
        %2157 = vmatprep.subr.mxu0 0.0
        %2158 = vmatpush2.msra.mxu0 %v2098
        %2159 = vmatprep.subr.mxu0 0.0
        %2160 = vmatpush2.msra.mxu0 %v2097
        %2161 = vmatprep.subr.mxu0 0.0
        %2162 = vmatpush2.msra.mxu0 %v2096
        %2163 = vmatprep.subr.mxu0 0.0
        %2164 = vmatpush2.msra.mxu0 %v2095
        %2165 = vmatprep.subr.mxu0 0.0
        %2166 = vmatpush2.msra.mxu0 %v2094
        %2167 = vmatprep.subr.mxu0 0.0
        %2168 = vmatpush2.msra.mxu0 %v2093
        %2169 = vmatprep.subr.mxu0 0.0
        %2170 = vmatpush2.msra.mxu0 %v2092
        %2171 = vmatprep.mubr.f32.mxu0 %v2105
        %2172 = vmatmul.mubr.f32.gmra.mxu0 %v2073
        %v2173 = vpop.f32.mrf.mxu0
        %v2174 = vadd.f32 0.0, %v2173
        %v2175 = vpop.f32.mrf.mxu0
        %2176 = vdwg.mxu0
        %v2177 = vadd.f32 %v2075, %v2174
        %s2178 = scalar_lea.vmem %s6, 224
        %v2179 = vld [vmem:[%s2178] sm:$0xff]
        %v2180 = vld [vmem:[%s2178 + $0x8] sm:$0xff]
        %v2181 = vld [vmem:[%s2178 + $0x10] sm:$0xff]
        %v2182 = vld [vmem:[%s2178 + $0x18] sm:$0xff]
        %v2183 = vld [vmem:[%s2178 + $0x20] sm:$0xff]
        %v2184 = vld [vmem:[%s2178 + $0x28] sm:$0xff]
        %v2185 = vld [vmem:[%s2178 + $0x30] sm:$0xff]
        %v2186 = vld [vmem:[%s2178 + $0x38] sm:$0xff]
        %v2187 = vld [vmem:[%s2178 + $0x40] sm:$0xff]
        %v2188 = vld [vmem:[%s2178 + $0x48] sm:$0xff]
        %v2189 = vld [vmem:[%s2178 + $0x50] sm:$0xff]
        %v2190 = vld [vmem:[%s2178 + $0x58] sm:$0xff]
        %v2191 = vld [vmem:[%s2178 + $0x60] sm:$0xff]
        %v2192 = vld [vmem:[%s2178 + $0x68] sm:$0xff]
        %v2193 = vld [vmem:[%s2178 + $0x70] sm:$0xff]
        %v2194 = vld [vmem:[%s2178 + $0x78] sm:$0xff]
        %v2195 = vld [vmem:[%s2178 + $0x80] sm:$0xff]
        %v2196 = vld [vmem:[%s2178 + $0x88] sm:$0xff]
        %v2197 = vld [vmem:[%s2178 + $0x90] sm:$0xff]
        %v2198 = vld [vmem:[%s2178 + $0x98] sm:$0xff]
        %v2199 = vld [vmem:[%s2178 + $0xa0] sm:$0xff]
        %v2200 = vld [vmem:[%s2178 + $0xa8] sm:$0xff]
        %v2201 = vld [vmem:[%s2178 + $0xb0] sm:$0xff]
        %v2202 = vld [vmem:[%s2178 + $0xb8] sm:$0xff]
        %v2203 = vld [vmem:[%s2178 + $0xc0] sm:$0xff]
        %v2204 = vld [vmem:[%s2178 + $0xc8] sm:$0xff]
        %v2205 = vld [vmem:[%s2178 + $0xd0] sm:$0xff]
        %v2206 = vld [vmem:[%s2178 + $0xd8] sm:$0xff]
        %v2208 = vrot.slane %v2073, 1
        %v2209 = vrot.slane %v2074, 1
        %v2211 = vsel %vm1470, %v2209, 0
        %2213 = vmatprep.subr.mxu0 0.0
        %2214 = vmatpush1.msra.mxu0 %v2194
        %2215 = vmatprep.subr.mxu0 0.0
        %2216 = vmatpush1.msra.mxu0 %v2193
        %2217 = vmatprep.subr.mxu0 0.0
        %2218 = vmatpush1.msra.mxu0 %v2192
        %2219 = vmatprep.subr.mxu0 0.0
        %2220 = vmatpush1.msra.mxu0 %v2191
        %2221 = vmatprep.subr.mxu0 0.0
        %2222 = vmatpush1.msra.mxu0 %v2190
        %2223 = vmatprep.subr.mxu0 0.0
        %2224 = vmatpush1.msra.mxu0 %v2189
        %2225 = vmatprep.subr.mxu0 0.0
        %2226 = vmatpush1.msra.mxu0 %v2188
        %2227 = vmatprep.subr.mxu0 0.0
        %2228 = vmatpush1.msra.mxu0 %v2187
        %2229 = vmatprep.subr.mxu0 0.0
        %2230 = vmatpush1.msra.mxu0 %v2186
        %2231 = vmatprep.subr.mxu0 0.0
        %2232 = vmatpush1.msra.mxu0 %v2185
        %2233 = vmatprep.subr.mxu0 0.0
        %2234 = vmatpush1.msra.mxu0 %v2184
        %2235 = vmatprep.subr.mxu0 0.0
        %2236 = vmatpush1.msra.mxu0 %v2183
        %2237 = vmatprep.subr.mxu0 0.0
        %2238 = vmatpush1.msra.mxu0 %v2182
        %2239 = vmatprep.subr.mxu0 0.0
        %2240 = vmatpush1.msra.mxu0 %v2181
        %2241 = vmatprep.subr.mxu0 0.0
        %2242 = vmatpush1.msra.mxu0 %v2180
        %2243 = vmatprep.subr.mxu0 0.0
        %2244 = vmatpush1.msra.mxu0 %v2179
        %2245 = vmatprep.subr.mxu0 0.0
        %2246 = vmatpush2.msra.mxu0 0.0
        %2247 = vmatprep.subr.mxu0 0.0
        %2248 = vmatpush2.msra.mxu0 0.0
        %2249 = vmatprep.subr.mxu0 0.0
        %2250 = vmatpush2.msra.mxu0 0.0
        %2251 = vmatprep.subr.mxu0 0.0
        %2252 = vmatpush2.msra.mxu0 0.0
        %2253 = vmatprep.subr.mxu0 0.0
        %2254 = vmatpush2.msra.mxu0 %v2206
        %2255 = vmatprep.subr.mxu0 0.0
        %2256 = vmatpush2.msra.mxu0 %v2205
        %2257 = vmatprep.subr.mxu0 0.0
        %2258 = vmatpush2.msra.mxu0 %v2204
        %2259 = vmatprep.subr.mxu0 0.0
        %2260 = vmatpush2.msra.mxu0 %v2203
        %2261 = vmatprep.subr.mxu0 0.0
        %2262 = vmatpush2.msra.mxu0 %v2202
        %2263 = vmatprep.subr.mxu0 0.0
        %2264 = vmatpush2.msra.mxu0 %v2201
        %2265 = vmatprep.subr.mxu0 0.0
        %2266 = vmatpush2.msra.mxu0 %v2200
        %2267 = vmatprep.subr.mxu0 0.0
        %2268 = vmatpush2.msra.mxu0 %v2199
        %2269 = vmatprep.subr.mxu0 0.0
        %2270 = vmatpush2.msra.mxu0 %v2198
        %2271 = vmatprep.subr.mxu0 0.0
        %2272 = vmatpush2.msra.mxu0 %v2197
        %2273 = vmatprep.subr.mxu0 0.0
        %2274 = vmatpush2.msra.mxu0 %v2196
        %2275 = vmatprep.subr.mxu0 0.0
        %2276 = vmatpush2.msra.mxu0 %v2195
        %2277 = vmatprep.mubr.f32.mxu0 %v2211
        %2278 = vmatmul.mubr.f32.gmra.mxu0 %v2208
        %v2279 = vpop.f32.mrf.mxu0
        %v2280 = vadd.f32 0.0, %v2279
        %v2281 = vpop.f32.mrf.mxu0
        %2282 = vdwg.mxu0
        %v2283 = vadd.f32 %v2177, %v2280
        %s2284 = scalar_lea.vmem %s6, 448
        %v2285 = vld [vmem:[%s2284] sm:$0xff]
        %v2286 = vld [vmem:[%s2284 + $0x8] sm:$0xff]
        %v2287 = vld [vmem:[%s2284 + $0x10] sm:$0xff]
        %v2288 = vld [vmem:[%s2284 + $0x18] sm:$0xff]
        %v2289 = vld [vmem:[%s2284 + $0x20] sm:$0xff]
        %v2290 = vld [vmem:[%s2284 + $0x28] sm:$0xff]
        %v2291 = vld [vmem:[%s2284 + $0x30] sm:$0xff]
        %v2292 = vld [vmem:[%s2284 + $0x38] sm:$0xff]
        %v2293 = vld [vmem:[%s2284 + $0x40] sm:$0xff]
        %v2294 = vld [vmem:[%s2284 + $0x48] sm:$0xff]
        %v2295 = vld [vmem:[%s2284 + $0x50] sm:$0xff]
        %v2296 = vld [vmem:[%s2284 + $0x58] sm:$0xff]
        %v2297 = vld [vmem:[%s2284 + $0x60] sm:$0xff]
        %v2298 = vld [vmem:[%s2284 + $0x68] sm:$0xff]
        %v2299 = vld [vmem:[%s2284 + $0x70] sm:$0xff]
        %v2300 = vld [vmem:[%s2284 + $0x78] sm:$0xff]
        %v2301 = vld [vmem:[%s2284 + $0x80] sm:$0xff]
        %v2302 = vld [vmem:[%s2284 + $0x88] sm:$0xff]
        %v2303 = vld [vmem:[%s2284 + $0x90] sm:$0xff]
        %v2304 = vld [vmem:[%s2284 + $0x98] sm:$0xff]
        %v2305 = vld [vmem:[%s2284 + $0xa0] sm:$0xff]
        %v2306 = vld [vmem:[%s2284 + $0xa8] sm:$0xff]
        %v2307 = vld [vmem:[%s2284 + $0xb0] sm:$0xff]
        %v2308 = vld [vmem:[%s2284 + $0xb8] sm:$0xff]
        %v2309 = vld [vmem:[%s2284 + $0xc0] sm:$0xff]
        %v2310 = vld [vmem:[%s2284 + $0xc8] sm:$0xff]
        %v2311 = vld [vmem:[%s2284 + $0xd0] sm:$0xff]
        %v2312 = vld [vmem:[%s2284 + $0xd8] sm:$0xff]
        %v2313 = vrot.slane %v2073, 2
        %v2314 = vrot.slane %v2074, 2
        %v2316 = vsel %vm1470, %v2314, 0
        %2318 = vmatprep.subr.mxu0 0.0
        %2319 = vmatpush1.msra.mxu0 %v2300
        %2320 = vmatprep.subr.mxu0 0.0
        %2321 = vmatpush1.msra.mxu0 %v2299
        %2322 = vmatprep.subr.mxu0 0.0
        %2323 = vmatpush1.msra.mxu0 %v2298
        %2324 = vmatprep.subr.mxu0 0.0
        %2325 = vmatpush1.msra.mxu0 %v2297
        %2326 = vmatprep.subr.mxu0 0.0
        %2327 = vmatpush1.msra.mxu0 %v2296
        %2328 = vmatprep.subr.mxu0 0.0
        %2329 = vmatpush1.msra.mxu0 %v2295
        %2330 = vmatprep.subr.mxu0 0.0
        %2331 = vmatpush1.msra.mxu0 %v2294
        %2332 = vmatprep.subr.mxu0 0.0
        %2333 = vmatpush1.msra.mxu0 %v2293
        %2334 = vmatprep.subr.mxu0 0.0
        %2335 = vmatpush1.msra.mxu0 %v2292
        %2336 = vmatprep.subr.mxu0 0.0
        %2337 = vmatpush1.msra.mxu0 %v2291
        %2338 = vmatprep.subr.mxu0 0.0
        %2339 = vmatpush1.msra.mxu0 %v2290
        %2340 = vmatprep.subr.mxu0 0.0
        %2341 = vmatpush1.msra.mxu0 %v2289
        %2342 = vmatprep.subr.mxu0 0.0
        %2343 = vmatpush1.msra.mxu0 %v2288
        %2344 = vmatprep.subr.mxu0 0.0
        %2345 = vmatpush1.msra.mxu0 %v2287
        %2346 = vmatprep.subr.mxu0 0.0
        %2347 = vmatpush1.msra.mxu0 %v2286
        %2348 = vmatprep.subr.mxu0 0.0
        %2349 = vmatpush1.msra.mxu0 %v2285
        %2350 = vmatprep.subr.mxu0 0.0
        %2351 = vmatpush2.msra.mxu0 0.0
        %2352 = vmatprep.subr.mxu0 0.0
        %2353 = vmatpush2.msra.mxu0 0.0
        %2354 = vmatprep.subr.mxu0 0.0
        %2355 = vmatpush2.msra.mxu0 0.0
        %2356 = vmatprep.subr.mxu0 0.0
        %2357 = vmatpush2.msra.mxu0 0.0
        %2358 = vmatprep.subr.mxu0 0.0
        %2359 = vmatpush2.msra.mxu0 %v2312
        %2360 = vmatprep.subr.mxu0 0.0
        %2361 = vmatpush2.msra.mxu0 %v2311
        %2362 = vmatprep.subr.mxu0 0.0
        %2363 = vmatpush2.msra.mxu0 %v2310
        %2364 = vmatprep.subr.mxu0 0.0
        %2365 = vmatpush2.msra.mxu0 %v2309
        %2366 = vmatprep.subr.mxu0 0.0
        %2367 = vmatpush2.msra.mxu0 %v2308
        %2368 = vmatprep.subr.mxu0 0.0
        %2369 = vmatpush2.msra.mxu0 %v2307
        %2370 = vmatprep.subr.mxu0 0.0
        %2371 = vmatpush2.msra.mxu0 %v2306
        %2372 = vmatprep.subr.mxu0 0.0
        %2373 = vmatpush2.msra.mxu0 %v2305
        %2374 = vmatprep.subr.mxu0 0.0
        %2375 = vmatpush2.msra.mxu0 %v2304
        %2376 = vmatprep.subr.mxu0 0.0
        %2377 = vmatpush2.msra.mxu0 %v2303
        %2378 = vmatprep.subr.mxu0 0.0
        %2379 = vmatpush2.msra.mxu0 %v2302
        %2380 = vmatprep.subr.mxu0 0.0
        %2381 = vmatpush2.msra.mxu0 %v2301
        %2382 = vmatprep.mubr.f32.mxu0 %v2316
        %2383 = vmatmul.mubr.f32.gmra.mxu0 %v2313
        %v2384 = vpop.f32.mrf.mxu0
        %v2385 = vadd.f32 0.0, %v2384
        %v2386 = vpop.f32.mrf.mxu0
        %2387 = vdwg.mxu0
        %v2388 = vadd.f32 %v2283, %v2385
        %s2389 = scalar_lea.vmem %s6, 672
        %v2390 = vld [vmem:[%s2389] sm:$0xff]
        %v2391 = vld [vmem:[%s2389 + $0x8] sm:$0xff]
        %v2392 = vld [vmem:[%s2389 + $0x10] sm:$0xff]
        %v2393 = vld [vmem:[%s2389 + $0x18] sm:$0xff]
        %v2394 = vld [vmem:[%s2389 + $0x20] sm:$0xff]
        %v2395 = vld [vmem:[%s2389 + $0x28] sm:$0xff]
        %v2396 = vld [vmem:[%s2389 + $0x30] sm:$0xff]
        %v2397 = vld [vmem:[%s2389 + $0x38] sm:$0xff]
        %v2398 = vld [vmem:[%s2389 + $0x40] sm:$0xff]
        %v2399 = vld [vmem:[%s2389 + $0x48] sm:$0xff]
        %v2400 = vld [vmem:[%s2389 + $0x50] sm:$0xff]
        %v2401 = vld [vmem:[%s2389 + $0x58] sm:$0xff]
        %v2402 = vld [vmem:[%s2389 + $0x60] sm:$0xff]
        %v2403 = vld [vmem:[%s2389 + $0x68] sm:$0xff]
        %v2404 = vld [vmem:[%s2389 + $0x70] sm:$0xff]
        %v2405 = vld [vmem:[%s2389 + $0x78] sm:$0xff]
        %v2406 = vld [vmem:[%s2389 + $0x80] sm:$0xff]
        %v2407 = vld [vmem:[%s2389 + $0x88] sm:$0xff]
        %v2408 = vld [vmem:[%s2389 + $0x90] sm:$0xff]
        %v2409 = vld [vmem:[%s2389 + $0x98] sm:$0xff]
        %v2410 = vld [vmem:[%s2389 + $0xa0] sm:$0xff]
        %v2411 = vld [vmem:[%s2389 + $0xa8] sm:$0xff]
        %v2412 = vld [vmem:[%s2389 + $0xb0] sm:$0xff]
        %v2413 = vld [vmem:[%s2389 + $0xb8] sm:$0xff]
        %v2414 = vld [vmem:[%s2389 + $0xc0] sm:$0xff]
        %v2415 = vld [vmem:[%s2389 + $0xc8] sm:$0xff]
        %v2416 = vld [vmem:[%s2389 + $0xd0] sm:$0xff]
        %v2417 = vld [vmem:[%s2389 + $0xd8] sm:$0xff]
        %v2418 = vrot.slane %v2073, 3
        %v2419 = vrot.slane %v2074, 3
        %v2421 = vsel %vm1470, %v2419, 0
        %2423 = vmatprep.subr.mxu0 0.0
        %2424 = vmatpush1.msra.mxu0 %v2405
        %2425 = vmatprep.subr.mxu0 0.0
        %2426 = vmatpush1.msra.mxu0 %v2404
        %2427 = vmatprep.subr.mxu0 0.0
        %2428 = vmatpush1.msra.mxu0 %v2403
        %2429 = vmatprep.subr.mxu0 0.0
        %2430 = vmatpush1.msra.mxu0 %v2402
        %2431 = vmatprep.subr.mxu0 0.0
        %2432 = vmatpush1.msra.mxu0 %v2401
        %2433 = vmatprep.subr.mxu0 0.0
        %2434 = vmatpush1.msra.mxu0 %v2400
        %2435 = vmatprep.subr.mxu0 0.0
        %2436 = vmatpush1.msra.mxu0 %v2399
        %2437 = vmatprep.subr.mxu0 0.0
        %2438 = vmatpush1.msra.mxu0 %v2398
        %2439 = vmatprep.subr.mxu0 0.0
        %2440 = vmatpush1.msra.mxu0 %v2397
        %2441 = vmatprep.subr.mxu0 0.0
        %2442 = vmatpush1.msra.mxu0 %v2396
        %2443 = vmatprep.subr.mxu0 0.0
        %2444 = vmatpush1.msra.mxu0 %v2395
        %2445 = vmatprep.subr.mxu0 0.0
        %2446 = vmatpush1.msra.mxu0 %v2394
        %2447 = vmatprep.subr.mxu0 0.0
        %2448 = vmatpush1.msra.mxu0 %v2393
        %2449 = vmatprep.subr.mxu0 0.0
        %2450 = vmatpush1.msra.mxu0 %v2392
        %2451 = vmatprep.subr.mxu0 0.0
        %2452 = vmatpush1.msra.mxu0 %v2391
        %2453 = vmatprep.subr.mxu0 0.0
        %2454 = vmatpush1.msra.mxu0 %v2390
        %2455 = vmatprep.subr.mxu0 0.0
        %2456 = vmatpush2.msra.mxu0 0.0
        %2457 = vmatprep.subr.mxu0 0.0
        %2458 = vmatpush2.msra.mxu0 0.0
        %2459 = vmatprep.subr.mxu0 0.0
        %2460 = vmatpush2.msra.mxu0 0.0
        %2461 = vmatprep.subr.mxu0 0.0
        %2462 = vmatpush2.msra.mxu0 0.0
        %2463 = vmatprep.subr.mxu0 0.0
        %2464 = vmatpush2.msra.mxu0 %v2417
        %2465 = vmatprep.subr.mxu0 0.0
        %2466 = vmatpush2.msra.mxu0 %v2416
        %2467 = vmatprep.subr.mxu0 0.0
        %2468 = vmatpush2.msra.mxu0 %v2415
        %2469 = vmatprep.subr.mxu0 0.0
        %2470 = vmatpush2.msra.mxu0 %v2414
        %2471 = vmatprep.subr.mxu0 0.0
        %2472 = vmatpush2.msra.mxu0 %v2413
        %2473 = vmatprep.subr.mxu0 0.0
        %2474 = vmatpush2.msra.mxu0 %v2412
        %2475 = vmatprep.subr.mxu0 0.0
        %2476 = vmatpush2.msra.mxu0 %v2411
        %2477 = vmatprep.subr.mxu0 0.0
        %2478 = vmatpush2.msra.mxu0 %v2410
        %2479 = vmatprep.subr.mxu0 0.0
        %2480 = vmatpush2.msra.mxu0 %v2409
        %2481 = vmatprep.subr.mxu0 0.0
        %2482 = vmatpush2.msra.mxu0 %v2408
        %2483 = vmatprep.subr.mxu0 0.0
        %2484 = vmatpush2.msra.mxu0 %v2407
        %2485 = vmatprep.subr.mxu0 0.0
        %2486 = vmatpush2.msra.mxu0 %v2406
        %2487 = vmatprep.mubr.f32.mxu0 %v2421
        %2488 = vmatmul.mubr.f32.gmra.mxu0 %v2418
        %v2489 = vpop.f32.mrf.mxu0
        %v2490 = vadd.f32 0.0, %v2489
        %v2491 = vpop.f32.mrf.mxu0
        %2492 = vdwg.mxu0
        %v2493 = vadd.f32 %v2388, %v2490
        %s2494 = scalar_lea.vmem %s6, 896
        %v2495 = vld [vmem:[%s2494] sm:$0xff]
        %v2496 = vld [vmem:[%s2494 + $0x8] sm:$0xff]
        %v2497 = vld [vmem:[%s2494 + $0x10] sm:$0xff]
        %v2498 = vld [vmem:[%s2494 + $0x18] sm:$0xff]
        %v2499 = vld [vmem:[%s2494 + $0x20] sm:$0xff]
        %v2500 = vld [vmem:[%s2494 + $0x28] sm:$0xff]
        %v2501 = vld [vmem:[%s2494 + $0x30] sm:$0xff]
        %v2502 = vld [vmem:[%s2494 + $0x38] sm:$0xff]
        %v2503 = vld [vmem:[%s2494 + $0x40] sm:$0xff]
        %v2504 = vld [vmem:[%s2494 + $0x48] sm:$0xff]
        %v2505 = vld [vmem:[%s2494 + $0x50] sm:$0xff]
        %v2506 = vld [vmem:[%s2494 + $0x58] sm:$0xff]
        %v2507 = vld [vmem:[%s2494 + $0x60] sm:$0xff]
        %v2508 = vld [vmem:[%s2494 + $0x68] sm:$0xff]
        %v2509 = vld [vmem:[%s2494 + $0x70] sm:$0xff]
        %v2510 = vld [vmem:[%s2494 + $0x78] sm:$0xff]
        %v2511 = vld [vmem:[%s2494 + $0x80] sm:$0xff]
        %v2512 = vld [vmem:[%s2494 + $0x88] sm:$0xff]
        %v2513 = vld [vmem:[%s2494 + $0x90] sm:$0xff]
        %v2514 = vld [vmem:[%s2494 + $0x98] sm:$0xff]
        %v2515 = vld [vmem:[%s2494 + $0xa0] sm:$0xff]
        %v2516 = vld [vmem:[%s2494 + $0xa8] sm:$0xff]
        %v2517 = vld [vmem:[%s2494 + $0xb0] sm:$0xff]
        %v2518 = vld [vmem:[%s2494 + $0xb8] sm:$0xff]
        %v2519 = vld [vmem:[%s2494 + $0xc0] sm:$0xff]
        %v2520 = vld [vmem:[%s2494 + $0xc8] sm:$0xff]
        %v2521 = vld [vmem:[%s2494 + $0xd0] sm:$0xff]
        %v2522 = vld [vmem:[%s2494 + $0xd8] sm:$0xff]
        %v2523 = vrot.slane %v2073, 4
        %v2524 = vrot.slane %v2074, 4
        %v2526 = vsel %vm1470, %v2524, 0
        %2528 = vmatprep.subr.mxu0 0.0
        %2529 = vmatpush1.msra.mxu0 %v2510
        %2530 = vmatprep.subr.mxu0 0.0
        %2531 = vmatpush1.msra.mxu0 %v2509
        %2532 = vmatprep.subr.mxu0 0.0
        %2533 = vmatpush1.msra.mxu0 %v2508
        %2534 = vmatprep.subr.mxu0 0.0
        %2535 = vmatpush1.msra.mxu0 %v2507
        %2536 = vmatprep.subr.mxu0 0.0
        %2537 = vmatpush1.msra.mxu0 %v2506
        %2538 = vmatprep.subr.mxu0 0.0
        %2539 = vmatpush1.msra.mxu0 %v2505
        %2540 = vmatprep.subr.mxu0 0.0
        %2541 = vmatpush1.msra.mxu0 %v2504
        %2542 = vmatprep.subr.mxu0 0.0
        %2543 = vmatpush1.msra.mxu0 %v2503
        %2544 = vmatprep.subr.mxu0 0.0
        %2545 = vmatpush1.msra.mxu0 %v2502
        %2546 = vmatprep.subr.mxu0 0.0
        %2547 = vmatpush1.msra.mxu0 %v2501
        %2548 = vmatprep.subr.mxu0 0.0
        %2549 = vmatpush1.msra.mxu0 %v2500
        %2550 = vmatprep.subr.mxu0 0.0
        %2551 = vmatpush1.msra.mxu0 %v2499
        %2552 = vmatprep.subr.mxu0 0.0
        %2553 = vmatpush1.msra.mxu0 %v2498
        %2554 = vmatprep.subr.mxu0 0.0
        %2555 = vmatpush1.msra.mxu0 %v2497
        %2556 = vmatprep.subr.mxu0 0.0
        %2557 = vmatpush1.msra.mxu0 %v2496
        %2558 = vmatprep.subr.mxu0 0.0
        %2559 = vmatpush1.msra.mxu0 %v2495
        %2560 = vmatprep.subr.mxu0 0.0
        %2561 = vmatpush2.msra.mxu0 0.0
        %2562 = vmatprep.subr.mxu0 0.0
        %2563 = vmatpush2.msra.mxu0 0.0
        %2564 = vmatprep.subr.mxu0 0.0
        %2565 = vmatpush2.msra.mxu0 0.0
        %2566 = vmatprep.subr.mxu0 0.0
        %2567 = vmatpush2.msra.mxu0 0.0
        %2568 = vmatprep.subr.mxu0 0.0
        %2569 = vmatpush2.msra.mxu0 %v2522
        %2570 = vmatprep.subr.mxu0 0.0
        %2571 = vmatpush2.msra.mxu0 %v2521
        %2572 = vmatprep.subr.mxu0 0.0
        %2573 = vmatpush2.msra.mxu0 %v2520
        %2574 = vmatprep.subr.mxu0 0.0
        %2575 = vmatpush2.msra.mxu0 %v2519
        %2576 = vmatprep.subr.mxu0 0.0
        %2577 = vmatpush2.msra.mxu0 %v2518
        %2578 = vmatprep.subr.mxu0 0.0
        %2579 = vmatpush2.msra.mxu0 %v2517
        %2580 = vmatprep.subr.mxu0 0.0
        %2581 = vmatpush2.msra.mxu0 %v2516
        %2582 = vmatprep.subr.mxu0 0.0
        %2583 = vmatpush2.msra.mxu0 %v2515
        %2584 = vmatprep.subr.mxu0 0.0
        %2585 = vmatpush2.msra.mxu0 %v2514
        %2586 = vmatprep.subr.mxu0 0.0
        %2587 = vmatpush2.msra.mxu0 %v2513
        %2588 = vmatprep.subr.mxu0 0.0
        %2589 = vmatpush2.msra.mxu0 %v2512
        %2590 = vmatprep.subr.mxu0 0.0
        %2591 = vmatpush2.msra.mxu0 %v2511
        %2592 = vmatprep.mubr.f32.mxu0 %v2526
        %2593 = vmatmul.mubr.f32.gmra.mxu0 %v2523
        %v2594 = vpop.f32.mrf.mxu0
        %v2595 = vadd.f32 0.0, %v2594
        %v2596 = vpop.f32.mrf.mxu0
        %2597 = vdwg.mxu0
        %v2598 = vadd.f32 %v2493, %v2595
        %s2599 = scalar_lea.vmem %s6, 1120
        %v2600 = vld [vmem:[%s2599] sm:$0xff]
        %v2601 = vld [vmem:[%s2599 + $0x8] sm:$0xff]
        %v2602 = vld [vmem:[%s2599 + $0x10] sm:$0xff]
        %v2603 = vld [vmem:[%s2599 + $0x18] sm:$0xff]
        %v2604 = vld [vmem:[%s2599 + $0x20] sm:$0xff]
        %v2605 = vld [vmem:[%s2599 + $0x28] sm:$0xff]
        %v2606 = vld [vmem:[%s2599 + $0x30] sm:$0xff]
        %v2607 = vld [vmem:[%s2599 + $0x38] sm:$0xff]
        %v2608 = vld [vmem:[%s2599 + $0x40] sm:$0xff]
        %v2609 = vld [vmem:[%s2599 + $0x48] sm:$0xff]
        %v2610 = vld [vmem:[%s2599 + $0x50] sm:$0xff]
        %v2611 = vld [vmem:[%s2599 + $0x58] sm:$0xff]
        %v2612 = vld [vmem:[%s2599 + $0x60] sm:$0xff]
        %v2613 = vld [vmem:[%s2599 + $0x68] sm:$0xff]
        %v2614 = vld [vmem:[%s2599 + $0x70] sm:$0xff]
        %v2615 = vld [vmem:[%s2599 + $0x78] sm:$0xff]
        %v2616 = vld [vmem:[%s2599 + $0x80] sm:$0xff]
        %v2617 = vld [vmem:[%s2599 + $0x88] sm:$0xff]
        %v2618 = vld [vmem:[%s2599 + $0x90] sm:$0xff]
        %v2619 = vld [vmem:[%s2599 + $0x98] sm:$0xff]
        %v2620 = vld [vmem:[%s2599 + $0xa0] sm:$0xff]
        %v2621 = vld [vmem:[%s2599 + $0xa8] sm:$0xff]
        %v2622 = vld [vmem:[%s2599 + $0xb0] sm:$0xff]
        %v2623 = vld [vmem:[%s2599 + $0xb8] sm:$0xff]
        %v2624 = vld [vmem:[%s2599 + $0xc0] sm:$0xff]
        %v2625 = vld [vmem:[%s2599 + $0xc8] sm:$0xff]
        %v2626 = vld [vmem:[%s2599 + $0xd0] sm:$0xff]
        %v2627 = vld [vmem:[%s2599 + $0xd8] sm:$0xff]
        %v2628 = vrot.slane %v2073, 5
        %v2629 = vrot.slane %v2074, 5
        %v2631 = vsel %vm1470, %v2629, 0
        %2633 = vmatprep.subr.mxu0 0.0
        %2634 = vmatpush1.msra.mxu0 %v2615
        %2635 = vmatprep.subr.mxu0 0.0
        %2636 = vmatpush1.msra.mxu0 %v2614
        %2637 = vmatprep.subr.mxu0 0.0
        %2638 = vmatpush1.msra.mxu0 %v2613
        %2639 = vmatprep.subr.mxu0 0.0
        %2640 = vmatpush1.msra.mxu0 %v2612
        %2641 = vmatprep.subr.mxu0 0.0
        %2642 = vmatpush1.msra.mxu0 %v2611
        %2643 = vmatprep.subr.mxu0 0.0
        %2644 = vmatpush1.msra.mxu0 %v2610
        %2645 = vmatprep.subr.mxu0 0.0
        %2646 = vmatpush1.msra.mxu0 %v2609
        %2647 = vmatprep.subr.mxu0 0.0
        %2648 = vmatpush1.msra.mxu0 %v2608
        %2649 = vmatprep.subr.mxu0 0.0
        %2650 = vmatpush1.msra.mxu0 %v2607
        %2651 = vmatprep.subr.mxu0 0.0
        %2652 = vmatpush1.msra.mxu0 %v2606
        %2653 = vmatprep.subr.mxu0 0.0
        %2654 = vmatpush1.msra.mxu0 %v2605
        %2655 = vmatprep.subr.mxu0 0.0
        %2656 = vmatpush1.msra.mxu0 %v2604
        %2657 = vmatprep.subr.mxu0 0.0
        %2658 = vmatpush1.msra.mxu0 %v2603
        %2659 = vmatprep.subr.mxu0 0.0
        %2660 = vmatpush1.msra.mxu0 %v2602
        %2661 = vmatprep.subr.mxu0 0.0
        %2662 = vmatpush1.msra.mxu0 %v2601
        %2663 = vmatprep.subr.mxu0 0.0
        %2664 = vmatpush1.msra.mxu0 %v2600
        %2665 = vmatprep.subr.mxu0 0.0
        %2666 = vmatpush2.msra.mxu0 0.0
        %2667 = vmatprep.subr.mxu0 0.0
        %2668 = vmatpush2.msra.mxu0 0.0
        %2669 = vmatprep.subr.mxu0 0.0
        %2670 = vmatpush2.msra.mxu0 0.0
        %2671 = vmatprep.subr.mxu0 0.0
        %2672 = vmatpush2.msra.mxu0 0.0
        %2673 = vmatprep.subr.mxu0 0.0
        %2674 = vmatpush2.msra.mxu0 %v2627
        %2675 = vmatprep.subr.mxu0 0.0
        %2676 = vmatpush2.msra.mxu0 %v2626
        %2677 = vmatprep.subr.mxu0 0.0
        %2678 = vmatpush2.msra.mxu0 %v2625
        %2679 = vmatprep.subr.mxu0 0.0
        %2680 = vmatpush2.msra.mxu0 %v2624
        %2681 = vmatprep.subr.mxu0 0.0
        %2682 = vmatpush2.msra.mxu0 %v2623
        %2683 = vmatprep.subr.mxu0 0.0
        %2684 = vmatpush2.msra.mxu0 %v2622
        %2685 = vmatprep.subr.mxu0 0.0
        %2686 = vmatpush2.msra.mxu0 %v2621
        %2687 = vmatprep.subr.mxu0 0.0
        %2688 = vmatpush2.msra.mxu0 %v2620
        %2689 = vmatprep.subr.mxu0 0.0
        %2690 = vmatpush2.msra.mxu0 %v2619
        %2691 = vmatprep.subr.mxu0 0.0
        %2692 = vmatpush2.msra.mxu0 %v2618
        %2693 = vmatprep.subr.mxu0 0.0
        %2694 = vmatpush2.msra.mxu0 %v2617
        %2695 = vmatprep.subr.mxu0 0.0
        %2696 = vmatpush2.msra.mxu0 %v2616
        %2697 = vmatprep.mubr.f32.mxu0 %v2631
        %2698 = vmatmul.mubr.f32.gmra.mxu0 %v2628
        %v2699 = vpop.f32.mrf.mxu0
        %v2700 = vadd.f32 0.0, %v2699
        %v2701 = vpop.f32.mrf.mxu0
        %2702 = vdwg.mxu0
        %v2703 = vadd.f32 %v2598, %v2700
        %s2704 = scalar_lea.vmem %s6, 1344
        %v2705 = vld [vmem:[%s2704] sm:$0xff]
        %v2706 = vld [vmem:[%s2704 + $0x8] sm:$0xff]
        %v2707 = vld [vmem:[%s2704 + $0x10] sm:$0xff]
        %v2708 = vld [vmem:[%s2704 + $0x18] sm:$0xff]
        %v2709 = vld [vmem:[%s2704 + $0x20] sm:$0xff]
        %v2710 = vld [vmem:[%s2704 + $0x28] sm:$0xff]
        %v2711 = vld [vmem:[%s2704 + $0x30] sm:$0xff]
        %v2712 = vld [vmem:[%s2704 + $0x38] sm:$0xff]
        %v2713 = vld [vmem:[%s2704 + $0x40] sm:$0xff]
        %v2714 = vld [vmem:[%s2704 + $0x48] sm:$0xff]
        %v2715 = vld [vmem:[%s2704 + $0x50] sm:$0xff]
        %v2716 = vld [vmem:[%s2704 + $0x58] sm:$0xff]
        %v2717 = vld [vmem:[%s2704 + $0x60] sm:$0xff]
        %v2718 = vld [vmem:[%s2704 + $0x68] sm:$0xff]
        %v2719 = vld [vmem:[%s2704 + $0x70] sm:$0xff]
        %v2720 = vld [vmem:[%s2704 + $0x78] sm:$0xff]
        %v2721 = vld [vmem:[%s2704 + $0x80] sm:$0xff]
        %v2722 = vld [vmem:[%s2704 + $0x88] sm:$0xff]
        %v2723 = vld [vmem:[%s2704 + $0x90] sm:$0xff]
        %v2724 = vld [vmem:[%s2704 + $0x98] sm:$0xff]
        %v2725 = vld [vmem:[%s2704 + $0xa0] sm:$0xff]
        %v2726 = vld [vmem:[%s2704 + $0xa8] sm:$0xff]
        %v2727 = vld [vmem:[%s2704 + $0xb0] sm:$0xff]
        %v2728 = vld [vmem:[%s2704 + $0xb8] sm:$0xff]
        %v2729 = vld [vmem:[%s2704 + $0xc0] sm:$0xff]
        %v2730 = vld [vmem:[%s2704 + $0xc8] sm:$0xff]
        %v2731 = vld [vmem:[%s2704 + $0xd0] sm:$0xff]
        %v2732 = vld [vmem:[%s2704 + $0xd8] sm:$0xff]
        %v2733 = vrot.slane %v2073, 6
        %v2734 = vrot.slane %v2074, 6
        %v2736 = vsel %vm1470, %v2734, 0
        %2738 = vmatprep.subr.mxu0 0.0
        %2739 = vmatpush1.msra.mxu0 %v2720
        %2740 = vmatprep.subr.mxu0 0.0
        %2741 = vmatpush1.msra.mxu0 %v2719
        %2742 = vmatprep.subr.mxu0 0.0
        %2743 = vmatpush1.msra.mxu0 %v2718
        %2744 = vmatprep.subr.mxu0 0.0
        %2745 = vmatpush1.msra.mxu0 %v2717
        %2746 = vmatprep.subr.mxu0 0.0
        %2747 = vmatpush1.msra.mxu0 %v2716
        %2748 = vmatprep.subr.mxu0 0.0
        %2749 = vmatpush1.msra.mxu0 %v2715
        %2750 = vmatprep.subr.mxu0 0.0
        %2751 = vmatpush1.msra.mxu0 %v2714
        %2752 = vmatprep.subr.mxu0 0.0
        %2753 = vmatpush1.msra.mxu0 %v2713
        %2754 = vmatprep.subr.mxu0 0.0
        %2755 = vmatpush1.msra.mxu0 %v2712
        %2756 = vmatprep.subr.mxu0 0.0
        %2757 = vmatpush1.msra.mxu0 %v2711
        %2758 = vmatprep.subr.mxu0 0.0
        %2759 = vmatpush1.msra.mxu0 %v2710
        %2760 = vmatprep.subr.mxu0 0.0
        %2761 = vmatpush1.msra.mxu0 %v2709
        %2762 = vmatprep.subr.mxu0 0.0
        %2763 = vmatpush1.msra.mxu0 %v2708
        %2764 = vmatprep.subr.mxu0 0.0
        %2765 = vmatpush1.msra.mxu0 %v2707
        %2766 = vmatprep.subr.mxu0 0.0
        %2767 = vmatpush1.msra.mxu0 %v2706
        %2768 = vmatprep.subr.mxu0 0.0
        %2769 = vmatpush1.msra.mxu0 %v2705
        %2770 = vmatprep.subr.mxu0 0.0
        %2771 = vmatpush2.msra.mxu0 0.0
        %2772 = vmatprep.subr.mxu0 0.0
        %2773 = vmatpush2.msra.mxu0 0.0
        %2774 = vmatprep.subr.mxu0 0.0
        %2775 = vmatpush2.msra.mxu0 0.0
        %2776 = vmatprep.subr.mxu0 0.0
        %2777 = vmatpush2.msra.mxu0 0.0
        %2778 = vmatprep.subr.mxu0 0.0
        %2779 = vmatpush2.msra.mxu0 %v2732
        %2780 = vmatprep.subr.mxu0 0.0
        %2781 = vmatpush2.msra.mxu0 %v2731
        %2782 = vmatprep.subr.mxu0 0.0
        %2783 = vmatpush2.msra.mxu0 %v2730
        %2784 = vmatprep.subr.mxu0 0.0
        %2785 = vmatpush2.msra.mxu0 %v2729
        %2786 = vmatprep.subr.mxu0 0.0
        %2787 = vmatpush2.msra.mxu0 %v2728
        %2788 = vmatprep.subr.mxu0 0.0
        %2789 = vmatpush2.msra.mxu0 %v2727
        %2790 = vmatprep.subr.mxu0 0.0
        %2791 = vmatpush2.msra.mxu0 %v2726
        %2792 = vmatprep.subr.mxu0 0.0
        %2793 = vmatpush2.msra.mxu0 %v2725
        %2794 = vmatprep.subr.mxu0 0.0
        %2795 = vmatpush2.msra.mxu0 %v2724
        %2796 = vmatprep.subr.mxu0 0.0
        %2797 = vmatpush2.msra.mxu0 %v2723
        %2798 = vmatprep.subr.mxu0 0.0
        %2799 = vmatpush2.msra.mxu0 %v2722
        %2800 = vmatprep.subr.mxu0 0.0
        %2801 = vmatpush2.msra.mxu0 %v2721
        %2802 = vmatprep.mubr.f32.mxu0 %v2736
        %2803 = vmatmul.mubr.f32.gmra.mxu0 %v2733
        %v2804 = vpop.f32.mrf.mxu0
        %v2805 = vadd.f32 0.0, %v2804
        %v2806 = vpop.f32.mrf.mxu0
        %2807 = vdwg.mxu0
        %v2808 = vadd.f32 %v2703, %v2805
        %v2809 = vmax.f32 %v2808, 0.0
        %v2810 = vld [vmem:[%s8] sm:$0xff]
        %v2811 = vld [vmem:[%s8 + $0x8] sm:$0xff]
        %v2812 = vld [vmem:[%s8 + $0x10] sm:$0xff]
        %v2813 = vld [vmem:[%s8 + $0x18] sm:$0xff]
        %v2814 = vld [vmem:[%s9] sm:$0x1]
        %v2816 = vsel %vm1862, %v2809, 0
        %2818 = vmatprep.subr.mxu0 0.0
        %2819 = vmatpush1.msra.mxu0 0.0
        %2820 = vmatprep.subr.mxu0 0.0
        %2821 = vmatpush1.msra.mxu0 0.0
        %2822 = vmatprep.subr.mxu0 0.0
        %2823 = vmatpush1.msra.mxu0 0.0
        %2824 = vmatprep.subr.mxu0 0.0
        %2825 = vmatpush1.msra.mxu0 0.0
        %2826 = vmatprep.subr.mxu0 0.0
        %2827 = vmatpush1.msra.mxu0 0.0
        %2828 = vmatprep.subr.mxu0 0.0
        %2829 = vmatpush1.msra.mxu0 0.0
        %2830 = vmatprep.subr.mxu0 0.0
        %2831 = vmatpush1.msra.mxu0 0.0
        %2832 = vmatprep.subr.mxu0 0.0
        %2833 = vmatpush1.msra.mxu0 0.0
        %2834 = vmatprep.subr.mxu0 0.0
        %2835 = vmatpush1.msra.mxu0 0.0
        %2836 = vmatprep.subr.mxu0 0.0
        %2837 = vmatpush1.msra.mxu0 0.0
        %2838 = vmatprep.subr.mxu0 0.0
        %2839 = vmatpush1.msra.mxu0 0.0
        %2840 = vmatprep.subr.mxu0 0.0
        %2841 = vmatpush1.msra.mxu0 0.0
        %2842 = vmatprep.subr.mxu0 0.0
        %2843 = vmatpush1.msra.mxu0 %v2813
        %2844 = vmatprep.subr.mxu0 0.0
        %2845 = vmatpush1.msra.mxu0 %v2812
        %2846 = vmatprep.subr.mxu0 0.0
        %2847 = vmatpush1.msra.mxu0 %v2811
        %2848 = vmatprep.subr.mxu0 0.0
        %2849 = vmatpush1.msra.mxu0 %v2810
        %2850 = vmatprep.subr.mxu0 0.0
        %2851 = vmatpush2.msra.mxu0 0.0
        %2852 = vmatprep.subr.mxu0 0.0
        %2853 = vmatpush2.msra.mxu0 0.0
        %2854 = vmatprep.subr.mxu0 0.0
        %2855 = vmatpush2.msra.mxu0 0.0
        %2856 = vmatprep.subr.mxu0 0.0
        %2857 = vmatpush2.msra.mxu0 0.0
        %2858 = vmatprep.subr.mxu0 0.0
        %2859 = vmatpush2.msra.mxu0 0.0
        %2860 = vmatprep.subr.mxu0 0.0
        %2861 = vmatpush2.msra.mxu0 0.0
        %2862 = vmatprep.subr.mxu0 0.0
        %2863 = vmatpush2.msra.mxu0 0.0
        %2864 = vmatprep.subr.mxu0 0.0
        %2865 = vmatpush2.msra.mxu0 0.0
        %2866 = vmatprep.subr.mxu0 0.0
        %2867 = vmatpush2.msra.mxu0 0.0
        %2868 = vmatprep.subr.mxu0 0.0
        %2869 = vmatpush2.msra.mxu0 0.0
        %2870 = vmatprep.subr.mxu0 0.0
        %2871 = vmatpush2.msra.mxu0 0.0
        %2872 = vmatprep.subr.mxu0 0.0
        %2873 = vmatpush2.msra.mxu0 0.0
        %2874 = vmatprep.subr.mxu0 0.0
        %2875 = vmatpush2.msra.mxu0 0.0
        %2876 = vmatprep.subr.mxu0 0.0
        %2877 = vmatpush2.msra.mxu0 0.0
        %2878 = vmatprep.subr.mxu0 0.0
        %2879 = vmatpush2.msra.mxu0 0.0
        %2880 = vmatprep.subr.mxu0 0.0
        %2881 = vmatpush2.msra.mxu0 0.0
        %2882 = vmatprep.mubr.f32.mxu0 0.0
        %2883 = vmatmul.mubr.f32.gmra.mxu0 %v2816
        %v2884 = vpop.f32.mrf.mxu0
        %v2885 = vadd.f32 %v2814, %v2884
        %v2886 = vpop.f32.mrf.mxu0
        %2887 = vdwg.mxu0
        %v2888 = vmul.f32 %v2885, 1.442695
        %v2889 = vpow.pop %v2888
        %v2890 = vld [vmem:[%s705] sm:$0x1]
        %v2892 = vlaneseq
        %v2893 = vshrl.u32 %v2892, 7
        %v2894 = vsub.s32 0, %v2893
        %v2895 = vrot.slane %v2890, %v2894
        %2896 = vrot.lane.b32.xlu0 %v2895, 8
        %v2897 = vpop.permute.xlu0 %2896
        %v2899 = vmul.f32 %v2889, %v2897
        %2901 = vrot.lane.b32.xlu0 %v2899, 120
        %v2902 = vpop.permute.xlu0 %2901
        %v2904 = vadd.f32 %v2885, %v2902
        %vm2905 = vcmask 57344
        %2906 = vst.msk [vmem:[%s685] sm:$0x1] %vm2905, %v2885
        %2908 = vrot.lane.b32.xlu0 %v2885, 120
        %v2909 = vpop.permute.xlu0 %2908
        %2911 = vst.msk [vmem:[%s691] sm:$0x1] %vm2905, %v2909
        %2912 = vst.msk [vmem:[%s697] sm:$0x1] %vm2905, %v2904
        %v2913 = vld [vmem:[%s10] sm:$0xff]
        %v2914 = vld [vmem:[%s11] sm:$0x1]
        %vm2915 = vcmask 64512
        %v2917 = vsel %vm2915, %v2904, 0
        %2919 = vmatprep.subr.mxu0 0.0
        %2920 = vmatpush1.msra.mxu0 0.0
        %2921 = vmatprep.subr.mxu0 0.0
        %2922 = vmatpush1.msra.mxu0 0.0
        %2923 = vmatprep.subr.mxu0 0.0
        %2924 = vmatpush1.msra.mxu0 0.0
        %2925 = vmatprep.subr.mxu0 0.0
        %2926 = vmatpush1.msra.mxu0 0.0
        %2927 = vmatprep.subr.mxu0 0.0
        %2928 = vmatpush1.msra.mxu0 0.0
        %2929 = vmatprep.subr.mxu0 0.0
        %2930 = vmatpush1.msra.mxu0 0.0
        %2931 = vmatprep.subr.mxu0 0.0
        %2932 = vmatpush1.msra.mxu0 0.0
        %2933 = vmatprep.subr.mxu0 0.0
        %2934 = vmatpush1.msra.mxu0 0.0
        %2935 = vmatprep.subr.mxu0 0.0
        %2936 = vmatpush1.msra.mxu0 0.0
        %2937 = vmatprep.subr.mxu0 0.0
        %2938 = vmatpush1.msra.mxu0 0.0
        %2939 = vmatprep.subr.mxu0 0.0
        %2940 = vmatpush1.msra.mxu0 0.0
        %2941 = vmatprep.subr.mxu0 0.0
        %2942 = vmatpush1.msra.mxu0 0.0
        %2943 = vmatprep.subr.mxu0 0.0
        %2944 = vmatpush1.msra.mxu0 0.0
        %2945 = vmatprep.subr.mxu0 0.0
        %2946 = vmatpush1.msra.mxu0 0.0
        %2947 = vmatprep.subr.mxu0 0.0
        %2948 = vmatpush1.msra.mxu0 0.0
        %2949 = vmatprep.subr.mxu0 0.0
        %2950 = vmatpush1.msra.mxu0 %v2913
        %2951 = vmatprep.subr.mxu0 0.0
        %2952 = vmatpush2.msra.mxu0 0.0
        %2953 = vmatprep.subr.mxu0 0.0
        %2954 = vmatpush2.msra.mxu0 0.0
        %2955 = vmatprep.subr.mxu0 0.0
        %2956 = vmatpush2.msra.mxu0 0.0
        %2957 = vmatprep.subr.mxu0 0.0
        %2958 = vmatpush2.msra.mxu0 0.0
        %2959 = vmatprep.subr.mxu0 0.0
        %2960 = vmatpush2.msra.mxu0 0.0
        %2961 = vmatprep.subr.mxu0 0.0
        %2962 = vmatpush2.msra.mxu0 0.0
        %2963 = vmatprep.subr.mxu0 0.0
        %2964 = vmatpush2.msra.mxu0 0.0
        %2965 = vmatprep.subr.mxu0 0.0
        %2966 = vmatpush2.msra.mxu0 0.0
        %2967 = vmatprep.subr.mxu0 0.0
        %2968 = vmatpush2.msra.mxu0 0.0
        %2969 = vmatprep.subr.mxu0 0.0
        %2970 = vmatpush2.msra.mxu0 0.0
        %2971 = vmatprep.subr.mxu0 0.0
        %2972 = vmatpush2.msra.mxu0 0.0
        %2973 = vmatprep.subr.mxu0 0.0
        %2974 = vmatpush2.msra.mxu0 0.0
        %2975 = vmatprep.subr.mxu0 0.0
        %2976 = vmatpush2.msra.mxu0 0.0
        %2977 = vmatprep.subr.mxu0 0.0
        %2978 = vmatpush2.msra.mxu0 0.0
        %2979 = vmatprep.subr.mxu0 0.0
        %2980 = vmatpush2.msra.mxu0 0.0
        %2981 = vmatprep.subr.mxu0 0.0
        %2982 = vmatpush2.msra.mxu0 0.0
        %2983 = vmatprep.mubr.f32.mxu0 0.0
        %2984 = vmatmul.mubr.f32.gmra.mxu0 %v2917
        %v2985 = vpop.f32.mrf.mxu0
        %v2986 = vadd.f32 %v2914, %v2985
        %v2987 = vpop.f32.mrf.mxu0
        %2988 = vdwg.mxu0
        %v2989 = vmax.f32 %v2986, 0.0
        %v2990 = vld [vmem:[%s12] sm:$0xff]
        %v2991 = vld [vmem:[%s12 + $0x8] sm:$0xff]
        %v2992 = vld [vmem:[%s12 + $0x10] sm:$0xff]
        %v2993 = vld [vmem:[%s12 + $0x18] sm:$0xff]
        %v2994 = vld [vmem:[%s12 + $0x20] sm:$0xff]
        %v2995 = vld [vmem:[%s12 + $0x28] sm:$0xff]
        %v2996 = vld [vmem:[%s12 + $0x30] sm:$0xff]
        %v2997 = vld [vmem:[%s12 + $0x38] sm:$0xff]
        %v2998 = vld [vmem:[%s12 + $0x40] sm:$0xff]
        %v2999 = vld [vmem:[%s12 + $0x48] sm:$0xff]
        %v3000 = vld [vmem:[%s12 + $0x50] sm:$0xff]
        %v3001 = vld [vmem:[%s12 + $0x58] sm:$0xff]
        %v3002 = vld [vmem:[%s12 + $0x60] sm:$0xff]
        %v3003 = vld [vmem:[%s12 + $0x68] sm:$0xff]
        %v3004 = vld [vmem:[%s12 + $0x70] sm:$0xff]
        %v3005 = vld [vmem:[%s12 + $0x78] sm:$0xff]
        %v3006 = vld [vmem:[%s12 + $0x80] sm:$0xff]
        %v3007 = vld [vmem:[%s12 + $0x88] sm:$0xff]
        %v3008 = vld [vmem:[%s12 + $0x90] sm:$0xff]
        %v3009 = vld [vmem:[%s12 + $0x98] sm:$0xff]
        %v3010 = vld [vmem:[%s12 + $0xa0] sm:$0xff]
        %v3011 = vld [vmem:[%s12 + $0xa8] sm:$0xff]
        %v3012 = vld [vmem:[%s12 + $0xb0] sm:$0xff]
        %v3013 = vld [vmem:[%s12 + $0xb8] sm:$0xff]
        %v3014 = vld [vmem:[%s12 + $0xc0] sm:$0xff]
        %v3015 = vld [vmem:[%s12 + $0xc8] sm:$0xff]
        %v3016 = vld [vmem:[%s12 + $0xd0] sm:$0xff]
        %v3017 = vld [vmem:[%s12 + $0xd8] sm:$0xff]
        %v3018 = vld [vmem:[%s12 + $0xe0] sm:$0xff]
        %v3019 = vld [vmem:[%s12 + $0xe8] sm:$0xff]
        %v3020 = vld [vmem:[%s12 + $0xf0] sm:$0xff]
        %v3021 = vld [vmem:[%s12 + $0xf8] sm:$0xff]
        %v3022 = vld [vmem:[%s12 + $0x100] sm:$0xff]
        %v3023 = vld [vmem:[%s12 + $0x108] sm:$0xff]
        %v3024 = vld [vmem:[%s12 + $0x110] sm:$0xff]
        %v3025 = vld [vmem:[%s12 + $0x118] sm:$0xff]
        %v3026 = vld [vmem:[%s12 + $0x120] sm:$0xff]
        %v3027 = vld [vmem:[%s12 + $0x128] sm:$0xff]
        %v3028 = vld [vmem:[%s12 + $0x130] sm:$0xff]
        %v3029 = vld [vmem:[%s12 + $0x138] sm:$0xff]
        %v3030 = vld [vmem:[%s12 + $0x140] sm:$0xff]
        %v3031 = vld [vmem:[%s12 + $0x148] sm:$0xff]
        %v3032 = vld [vmem:[%s12 + $0x150] sm:$0xff]
        %v3033 = vld [vmem:[%s12 + $0x158] sm:$0xff]
        %v3034 = vld [vmem:[%s12 + $0x160] sm:$0xff]
        %v3035 = vld [vmem:[%s12 + $0x168] sm:$0xff]
        %v3036 = vld [vmem:[%s12 + $0x170] sm:$0xff]
        %v3037 = vld [vmem:[%s12 + $0x178] sm:$0xff]
        %v3038 = vld [vmem:[%s12 + $0x180] sm:$0xff]
        %v3039 = vld [vmem:[%s12 + $0x188] sm:$0xff]
        %v3040 = vld [vmem:[%s12 + $0x190] sm:$0xff]
        %v3041 = vld [vmem:[%s12 + $0x198] sm:$0xff]
        %v3042 = vld [vmem:[%s13] sm:$0xff]
        %v3043 = vld [vmem:[%s13 + $0x8] sm:$0x1f]
        %v3046 = vlaneseq
        %v3047 = vshrl.u32 %v3046, 7
        %v3048 = vsub.s32 0, %v3047
        %v3049 = vrot.slane %v3042, %v3048
        %v3050 = vlaneseq
        %v3051 = vshrl.u32 %v3050, 7
        %v3052 = vsub.s32 1, %v3051
        %v3053 = vrot.slane %v3042, %v3052
        %v3054 = vlaneseq
        %v3055 = vshrl.u32 %v3054, 7
        %v3056 = vsub.s32 2, %v3055
        %v3057 = vrot.slane %v3042, %v3056
        %v3058 = vlaneseq
        %v3059 = vshrl.u32 %v3058, 7
        %v3060 = vsub.s32 3, %v3059
        %v3061 = vrot.slane %v3042, %v3060
        %v3062 = vlaneseq
        %v3063 = vshrl.u32 %v3062, 7
        %v3064 = vsub.s32 4, %v3063
        %v3065 = vrot.slane %v3042, %v3064
        %v3066 = vlaneseq
        %v3067 = vshrl.u32 %v3066, 7
        %v3068 = vsub.s32 5, %v3067
        %v3069 = vrot.slane %v3042, %v3068
        %v3070 = vlaneseq
        %v3071 = vshrl.u32 %v3070, 7
        %v3072 = vsub.s32 6, %v3071
        %v3073 = vrot.slane %v3042, %v3072
        %v3074 = vlaneseq
        %v3075 = vshrl.u32 %v3074, 7
        %v3076 = vsub.s32 7, %v3075
        %v3077 = vrot.slane %v3042, %v3076
        %v3078 = vlaneseq
        %v3079 = vshrl.u32 %v3078, 7
        %v3080 = vsub.s32 0, %v3079
        %v3081 = vrot.slane %v3043, %v3080
        %v3082 = vlaneseq
        %v3083 = vshrl.u32 %v3082, 7
        %v3084 = vsub.s32 1, %v3083
        %v3085 = vrot.slane %v3043, %v3084
        %v3086 = vlaneseq
        %v3087 = vshrl.u32 %v3086, 7
        %v3088 = vsub.s32 2, %v3087
        %v3089 = vrot.slane %v3043, %v3088
        %v3090 = vlaneseq
        %v3091 = vshrl.u32 %v3090, 7
        %v3092 = vsub.s32 3, %v3091
        %v3093 = vrot.slane %v3043, %v3092
        %v3094 = vlaneseq
        %v3095 = vshrl.u32 %v3094, 7
        %v3096 = vsub.s32 4, %v3095
        %v3097 = vrot.slane %v3043, %v3096
        %v3112 = vsel %vm1862, %v2989, 0
        %3114 = vmatprep.subr.mxu0 0.0
        %3115 = vmatpush1.msra.mxu0 0.0
        %3116 = vmatprep.subr.mxu0 0.0
        %3117 = vmatpush1.msra.mxu0 0.0
        %3118 = vmatprep.subr.mxu0 0.0
        %3119 = vmatpush1.msra.mxu0 0.0
        %3120 = vmatprep.subr.mxu0 0.0
        %3121 = vmatpush1.msra.mxu0 0.0
        %3122 = vmatprep.subr.mxu0 0.0
        %3123 = vmatpush1.msra.mxu0 0.0
        %3124 = vmatprep.subr.mxu0 0.0
        %3125 = vmatpush1.msra.mxu0 0.0
        %3126 = vmatprep.subr.mxu0 0.0
        %3127 = vmatpush1.msra.mxu0 0.0
        %3128 = vmatprep.subr.mxu0 0.0
        %3129 = vmatpush1.msra.mxu0 0.0
        %3130 = vmatprep.subr.mxu0 0.0
        %3131 = vmatpush1.msra.mxu0 0.0
        %3132 = vmatprep.subr.mxu0 0.0
        %3133 = vmatpush1.msra.mxu0 0.0
        %3134 = vmatprep.subr.mxu0 0.0
        %3135 = vmatpush1.msra.mxu0 0.0
        %3136 = vmatprep.subr.mxu0 0.0
        %3137 = vmatpush1.msra.mxu0 0.0
        %3138 = vmatprep.subr.mxu0 %v3030
        %3139 = vmatpush1.msra.mxu0 %v3029
        %3140 = vmatprep.subr.mxu0 %v3017
        %3141 = vmatpush1.msra.mxu0 %v3016
        %3142 = vmatprep.subr.mxu0 %v3004
        %3143 = vmatpush1.msra.mxu0 %v3003
        %3144 = vmatprep.subr.mxu0 %v2991
        %3145 = vmatpush1.msra.mxu0 %v2990
        %3146 = vmatprep.subr.mxu0 0.0
        %3147 = vmatpush2.msra.mxu0 0.0
        %3148 = vmatprep.subr.mxu0 0.0
        %3149 = vmatpush2.msra.mxu0 0.0
        %3150 = vmatprep.subr.mxu0 0.0
        %3151 = vmatpush2.msra.mxu0 0.0
        %3152 = vmatprep.subr.mxu0 0.0
        %3153 = vmatpush2.msra.mxu0 0.0
        %3154 = vmatprep.subr.mxu0 0.0
        %3155 = vmatpush2.msra.mxu0 0.0
        %3156 = vmatprep.subr.mxu0 0.0
        %3157 = vmatpush2.msra.mxu0 0.0
        %3158 = vmatprep.subr.mxu0 0.0
        %3159 = vmatpush2.msra.mxu0 0.0
        %3160 = vmatprep.subr.mxu0 0.0
        %3161 = vmatpush2.msra.mxu0 0.0
        %3162 = vmatprep.subr.mxu0 0.0
        %3163 = vmatpush2.msra.mxu0 0.0
        %3164 = vmatprep.subr.mxu0 0.0
        %3165 = vmatpush2.msra.mxu0 0.0
        %3166 = vmatprep.subr.mxu0 0.0
        %3167 = vmatpush2.msra.mxu0 0.0
        %3168 = vmatprep.subr.mxu0 0.0
        %3169 = vmatpush2.msra.mxu0 0.0
        %3170 = vmatprep.subr.mxu0 0.0
        %3171 = vmatpush2.msra.mxu0 0.0
        %3172 = vmatprep.subr.mxu0 0.0
        %3173 = vmatpush2.msra.mxu0 0.0
        %3174 = vmatprep.subr.mxu0 0.0
        %3175 = vmatpush2.msra.mxu0 0.0
        %3176 = vmatprep.subr.mxu0 0.0
        %3177 = vmatpush2.msra.mxu0 0.0
        %3178 = vmatprep.mubr.f32.mxu0 0.0
        %3179 = vmatmul.mubr.f32.gmra.mxu0 %v3112
        %v3180 = vpop.f32.mrf.mxu0
        %v3181 = vadd.f32 %v3049, %v3180
        %v3182 = vpop.f32.mrf.mxu0
        %v3183 = vadd.f32 %v3053, %v3182
        %3184 = vdwg.mxu0
        %3185 = vmatprep.subr.mxu0 0.0
        %3186 = vmatpush1.msra.mxu0 0.0
        %3187 = vmatprep.subr.mxu0 0.0
        %3188 = vmatpush1.msra.mxu0 0.0
        %3189 = vmatprep.subr.mxu0 0.0
        %3190 = vmatpush1.msra.mxu0 0.0
        %3191 = vmatprep.subr.mxu0 0.0
        %3192 = vmatpush1.msra.mxu0 0.0
        %3193 = vmatprep.subr.mxu0 0.0
        %3194 = vmatpush1.msra.mxu0 0.0
        %3195 = vmatprep.subr.mxu0 0.0
        %3196 = vmatpush1.msra.mxu0 0.0
        %3197 = vmatprep.subr.mxu0 0.0
        %3198 = vmatpush1.msra.mxu0 0.0
        %3199 = vmatprep.subr.mxu0 0.0
        %3200 = vmatpush1.msra.mxu0 0.0
        %3201 = vmatprep.subr.mxu0 0.0
        %3202 = vmatpush1.msra.mxu0 0.0
        %3203 = vmatprep.subr.mxu0 0.0
        %3204 = vmatpush1.msra.mxu0 0.0
        %3205 = vmatprep.subr.mxu0 0.0
        %3206 = vmatpush1.msra.mxu0 0.0
        %3207 = vmatprep.subr.mxu0 0.0
        %3208 = vmatpush1.msra.mxu0 0.0
        %3209 = vmatprep.subr.mxu0 %v3032
        %3210 = vmatpush1.msra.mxu0 %v3031
        %3211 = vmatprep.subr.mxu0 %v3019
        %3212 = vmatpush1.msra.mxu0 %v3018
        %3213 = vmatprep.subr.mxu0 %v3006
        %3214 = vmatpush1.msra.mxu0 %v3005
        %3215 = vmatprep.subr.mxu0 %v2993
        %3216 = vmatpush1.msra.mxu0 %v2992
        %3217 = vmatprep.subr.mxu0 0.0
        %3218 = vmatpush2.msra.mxu0 0.0
        %3219 = vmatprep.subr.mxu0 0.0
        %3220 = vmatpush2.msra.mxu0 0.0
        %3221 = vmatprep.subr.mxu0 0.0
        %3222 = vmatpush2.msra.mxu0 0.0
        %3223 = vmatprep.subr.mxu0 0.0
        %3224 = vmatpush2.msra.mxu0 0.0
        %3225 = vmatprep.subr.mxu0 0.0
        %3226 = vmatpush2.msra.mxu0 0.0
        %3227 = vmatprep.subr.mxu0 0.0
        %3228 = vmatpush2.msra.mxu0 0.0
        %3229 = vmatprep.subr.mxu0 0.0
        %3230 = vmatpush2.msra.mxu0 0.0
        %3231 = vmatprep.subr.mxu0 0.0
        %3232 = vmatpush2.msra.mxu0 0.0
        %3233 = vmatprep.subr.mxu0 0.0
        %3234 = vmatpush2.msra.mxu0 0.0
        %3235 = vmatprep.subr.mxu0 0.0
        %3236 = vmatpush2.msra.mxu0 0.0
        %3237 = vmatprep.subr.mxu0 0.0
        %3238 = vmatpush2.msra.mxu0 0.0
        %3239 = vmatprep.subr.mxu0 0.0
        %3240 = vmatpush2.msra.mxu0 0.0
        %3241 = vmatprep.subr.mxu0 0.0
        %3242 = vmatpush2.msra.mxu0 0.0
        %3243 = vmatprep.subr.mxu0 0.0
        %3244 = vmatpush2.msra.mxu0 0.0
        %3245 = vmatprep.subr.mxu0 0.0
        %3246 = vmatpush2.msra.mxu0 0.0
        %3247 = vmatprep.subr.mxu0 0.0
        %3248 = vmatpush2.msra.mxu0 0.0
        %3249 = vmatprep.mubr.f32.mxu0 0.0
        %3250 = vmatmul.mubr.f32.gmra.mxu0 %v3112
        %v3251 = vpop.f32.mrf.mxu0
        %v3252 = vadd.f32 %v3057, %v3251
        %v3253 = vpop.f32.mrf.mxu0
        %v3254 = vadd.f32 %v3061, %v3253
        %3255 = vdwg.mxu0
        %3256 = vmatprep.subr.mxu0 0.0
        %3257 = vmatpush1.msra.mxu0 0.0
        %3258 = vmatprep.subr.mxu0 0.0
        %3259 = vmatpush1.msra.mxu0 0.0
        %3260 = vmatprep.subr.mxu0 0.0
        %3261 = vmatpush1.msra.mxu0 0.0
        %3262 = vmatprep.subr.mxu0 0.0
        %3263 = vmatpush1.msra.mxu0 0.0
        %3264 = vmatprep.subr.mxu0 0.0
        %3265 = vmatpush1.msra.mxu0 0.0
        %3266 = vmatprep.subr.mxu0 0.0
        %3267 = vmatpush1.msra.mxu0 0.0
        %3268 = vmatprep.subr.mxu0 0.0
        %3269 = vmatpush1.msra.mxu0 0.0
        %3270 = vmatprep.subr.mxu0 0.0
        %3271 = vmatpush1.msra.mxu0 0.0
        %3272 = vmatprep.subr.mxu0 0.0
        %3273 = vmatpush1.msra.mxu0 0.0
        %3274 = vmatprep.subr.mxu0 0.0
        %3275 = vmatpush1.msra.mxu0 0.0
        %3276 = vmatprep.subr.mxu0 0.0
        %3277 = vmatpush1.msra.mxu0 0.0
        %3278 = vmatprep.subr.mxu0 0.0
        %3279 = vmatpush1.msra.mxu0 0.0
        %3280 = vmatprep.subr.mxu0 %v3034
        %3281 = vmatpush1.msra.mxu0 %v3033
        %3282 = vmatprep.subr.mxu0 %v3021
        %3283 = vmatpush1.msra.mxu0 %v3020
        %3284 = vmatprep.subr.mxu0 %v3008
        %3285 = vmatpush1.msra.mxu0 %v3007
        %3286 = vmatprep.subr.mxu0 %v2995
        %3287 = vmatpush1.msra.mxu0 %v2994
        %3288 = vmatprep.subr.mxu0 0.0
        %3289 = vmatpush2.msra.mxu0 0.0
        %3290 = vmatprep.subr.mxu0 0.0
        %3291 = vmatpush2.msra.mxu0 0.0
        %3292 = vmatprep.subr.mxu0 0.0
        %3293 = vmatpush2.msra.mxu0 0.0
        %3294 = vmatprep.subr.mxu0 0.0
        %3295 = vmatpush2.msra.mxu0 0.0
        %3296 = vmatprep.subr.mxu0 0.0
        %3297 = vmatpush2.msra.mxu0 0.0
        %3298 = vmatprep.subr.mxu0 0.0
        %3299 = vmatpush2.msra.mxu0 0.0
        %3300 = vmatprep.subr.mxu0 0.0
        %3301 = vmatpush2.msra.mxu0 0.0
        %3302 = vmatprep.subr.mxu0 0.0
        %3303 = vmatpush2.msra.mxu0 0.0
        %3304 = vmatprep.subr.mxu0 0.0
        %3305 = vmatpush2.msra.mxu0 0.0
        %3306 = vmatprep.subr.mxu0 0.0
        %3307 = vmatpush2.msra.mxu0 0.0
        %3308 = vmatprep.subr.mxu0 0.0
        %3309 = vmatpush2.msra.mxu0 0.0
        %3310 = vmatprep.subr.mxu0 0.0
        %3311 = vmatpush2.msra.mxu0 0.0
        %3312 = vmatprep.subr.mxu0 0.0
        %3313 = vmatpush2.msra.mxu0 0.0
        %3314 = vmatprep.subr.mxu0 0.0
        %3315 = vmatpush2.msra.mxu0 0.0
        %3316 = vmatprep.subr.mxu0 0.0
        %3317 = vmatpush2.msra.mxu0 0.0
        %3318 = vmatprep.subr.mxu0 0.0
        %3319 = vmatpush2.msra.mxu0 0.0
        %3320 = vmatprep.mubr.f32.mxu0 0.0
        %3321 = vmatmul.mubr.f32.gmra.mxu0 %v3112
        %v3322 = vpop.f32.mrf.mxu0
        %v3323 = vadd.f32 %v3065, %v3322
        %v3324 = vpop.f32.mrf.mxu0
        %v3325 = vadd.f32 %v3069, %v3324
        %3326 = vdwg.mxu0
        %3327 = vmatprep.subr.mxu0 0.0
        %3328 = vmatpush1.msra.mxu0 0.0
        %3329 = vmatprep.subr.mxu0 0.0
        %3330 = vmatpush1.msra.mxu0 0.0
        %3331 = vmatprep.subr.mxu0 0.0
        %3332 = vmatpush1.msra.mxu0 0.0
        %3333 = vmatprep.subr.mxu0 0.0
        %3334 = vmatpush1.msra.mxu0 0.0
        %3335 = vmatprep.subr.mxu0 0.0
        %3336 = vmatpush1.msra.mxu0 0.0
        %3337 = vmatprep.subr.mxu0 0.0
        %3338 = vmatpush1.msra.mxu0 0.0
        %3339 = vmatprep.subr.mxu0 0.0
        %3340 = vmatpush1.msra.mxu0 0.0
        %3341 = vmatprep.subr.mxu0 0.0
        %3342 = vmatpush1.msra.mxu0 0.0
        %3343 = vmatprep.subr.mxu0 0.0
        %3344 = vmatpush1.msra.mxu0 0.0
        %3345 = vmatprep.subr.mxu0 0.0
        %3346 = vmatpush1.msra.mxu0 0.0
        %3347 = vmatprep.subr.mxu0 0.0
        %3348 = vmatpush1.msra.mxu0 0.0
        %3349 = vmatprep.subr.mxu0 0.0
        %3350 = vmatpush1.msra.mxu0 0.0
        %3351 = vmatprep.subr.mxu0 %v3036
        %3352 = vmatpush1.msra.mxu0 %v3035
        %3353 = vmatprep.subr.mxu0 %v3023
        %3354 = vmatpush1.msra.mxu0 %v3022
        %3355 = vmatprep.subr.mxu0 %v3010
        %3356 = vmatpush1.msra.mxu0 %v3009
        %3357 = vmatprep.subr.mxu0 %v2997
        %3358 = vmatpush1.msra.mxu0 %v2996
        %3359 = vmatprep.subr.mxu0 0.0
        %3360 = vmatpush2.msra.mxu0 0.0
        %3361 = vmatprep.subr.mxu0 0.0
        %3362 = vmatpush2.msra.mxu0 0.0
        %3363 = vmatprep.subr.mxu0 0.0
        %3364 = vmatpush2.msra.mxu0 0.0
        %3365 = vmatprep.subr.mxu0 0.0
        %3366 = vmatpush2.msra.mxu0 0.0
        %3367 = vmatprep.subr.mxu0 0.0
        %3368 = vmatpush2.msra.mxu0 0.0
        %3369 = vmatprep.subr.mxu0 0.0
        %3370 = vmatpush2.msra.mxu0 0.0
        %3371 = vmatprep.subr.mxu0 0.0
        %3372 = vmatpush2.msra.mxu0 0.0
        %3373 = vmatprep.subr.mxu0 0.0
        %3374 = vmatpush2.msra.mxu0 0.0
        %3375 = vmatprep.subr.mxu0 0.0
        %3376 = vmatpush2.msra.mxu0 0.0
        %3377 = vmatprep.subr.mxu0 0.0
        %3378 = vmatpush2.msra.mxu0 0.0
        %3379 = vmatprep.subr.mxu0 0.0
        %3380 = vmatpush2.msra.mxu0 0.0
        %3381 = vmatprep.subr.mxu0 0.0
        %3382 = vmatpush2.msra.mxu0 0.0
        %3383 = vmatprep.subr.mxu0 0.0
        %3384 = vmatpush2.msra.mxu0 0.0
        %3385 = vmatprep.subr.mxu0 0.0
        %3386 = vmatpush2.msra.mxu0 0.0
        %3387 = vmatprep.subr.mxu0 0.0
        %3388 = vmatpush2.msra.mxu0 0.0
        %3389 = vmatprep.subr.mxu0 0.0
        %3390 = vmatpush2.msra.mxu0 0.0
        %3391 = vmatprep.mubr.f32.mxu0 0.0
        %3392 = vmatmul.mubr.f32.gmra.mxu0 %v3112
        %v3393 = vpop.f32.mrf.mxu0
        %v3394 = vadd.f32 %v3073, %v3393
        %v3395 = vpop.f32.mrf.mxu0
        %v3396 = vadd.f32 %v3077, %v3395
        %3397 = vdwg.mxu0
        %3398 = vmatprep.subr.mxu0 0.0
        %3399 = vmatpush1.msra.mxu0 0.0
        %3400 = vmatprep.subr.mxu0 0.0
        %3401 = vmatpush1.msra.mxu0 0.0
        %3402 = vmatprep.subr.mxu0 0.0
        %3403 = vmatpush1.msra.mxu0 0.0
        %3404 = vmatprep.subr.mxu0 0.0
        %3405 = vmatpush1.msra.mxu0 0.0
        %3406 = vmatprep.subr.mxu0 0.0
        %3407 = vmatpush1.msra.mxu0 0.0
        %3408 = vmatprep.subr.mxu0 0.0
        %3409 = vmatpush1.msra.mxu0 0.0
        %3410 = vmatprep.subr.mxu0 0.0
        %3411 = vmatpush1.msra.mxu0 0.0
        %3412 = vmatprep.subr.mxu0 0.0
        %3413 = vmatpush1.msra.mxu0 0.0
        %3414 = vmatprep.subr.mxu0 0.0
        %3415 = vmatpush1.msra.mxu0 0.0
        %3416 = vmatprep.subr.mxu0 0.0
        %3417 = vmatpush1.msra.mxu0 0.0
        %3418 = vmatprep.subr.mxu0 0.0
        %3419 = vmatpush1.msra.mxu0 0.0
        %3420 = vmatprep.subr.mxu0 0.0
        %3421 = vmatpush1.msra.mxu0 0.0
        %3422 = vmatprep.subr.mxu0 %v3038
        %3423 = vmatpush1.msra.mxu0 %v3037
        %3424 = vmatprep.subr.mxu0 %v3025
        %3425 = vmatpush1.msra.mxu0 %v3024
        %3426 = vmatprep.subr.mxu0 %v3012
        %3427 = vmatpush1.msra.mxu0 %v3011
        %3428 = vmatprep.subr.mxu0 %v2999
        %3429 = vmatpush1.msra.mxu0 %v2998
        %3430 = vmatprep.subr.mxu0 0.0
        %3431 = vmatpush2.msra.mxu0 0.0
        %3432 = vmatprep.subr.mxu0 0.0
        %3433 = vmatpush2.msra.mxu0 0.0
        %3434 = vmatprep.subr.mxu0 0.0
        %3435 = vmatpush2.msra.mxu0 0.0
        %3436 = vmatprep.subr.mxu0 0.0
        %3437 = vmatpush2.msra.mxu0 0.0
        %3438 = vmatprep.subr.mxu0 0.0
        %3439 = vmatpush2.msra.mxu0 0.0
        %3440 = vmatprep.subr.mxu0 0.0
        %3441 = vmatpush2.msra.mxu0 0.0
        %3442 = vmatprep.subr.mxu0 0.0
        %3443 = vmatpush2.msra.mxu0 0.0
        %3444 = vmatprep.subr.mxu0 0.0
        %3445 = vmatpush2.msra.mxu0 0.0
        %3446 = vmatprep.subr.mxu0 0.0
        %3447 = vmatpush2.msra.mxu0 0.0
        %3448 = vmatprep.subr.mxu0 0.0
        %3449 = vmatpush2.msra.mxu0 0.0
        %3450 = vmatprep.subr.mxu0 0.0
        %3451 = vmatpush2.msra.mxu0 0.0
        %3452 = vmatprep.subr.mxu0 0.0
        %3453 = vmatpush2.msra.mxu0 0.0
        %3454 = vmatprep.subr.mxu0 0.0
        %3455 = vmatpush2.msra.mxu0 0.0
        %3456 = vmatprep.subr.mxu0 0.0
        %3457 = vmatpush2.msra.mxu0 0.0
        %3458 = vmatprep.subr.mxu0 0.0
        %3459 = vmatpush2.msra.mxu0 0.0
        %3460 = vmatprep.subr.mxu0 0.0
        %3461 = vmatpush2.msra.mxu0 0.0
        %3462 = vmatprep.mubr.f32.mxu0 0.0
        %3463 = vmatmul.mubr.f32.gmra.mxu0 %v3112
        %v3464 = vpop.f32.mrf.mxu0
        %v3465 = vadd.f32 %v3081, %v3464
        %v3466 = vpop.f32.mrf.mxu0
        %v3467 = vadd.f32 %v3085, %v3466
        %3468 = vdwg.mxu0
        %3469 = vmatprep.subr.mxu0 0.0
        %3470 = vmatpush1.msra.mxu0 0.0
        %3471 = vmatprep.subr.mxu0 0.0
        %3472 = vmatpush1.msra.mxu0 0.0
        %3473 = vmatprep.subr.mxu0 0.0
        %3474 = vmatpush1.msra.mxu0 0.0
        %3475 = vmatprep.subr.mxu0 0.0
        %3476 = vmatpush1.msra.mxu0 0.0
        %3477 = vmatprep.subr.mxu0 0.0
        %3478 = vmatpush1.msra.mxu0 0.0
        %3479 = vmatprep.subr.mxu0 0.0
        %3480 = vmatpush1.msra.mxu0 0.0
        %3481 = vmatprep.subr.mxu0 0.0
        %3482 = vmatpush1.msra.mxu0 0.0
        %3483 = vmatprep.subr.mxu0 0.0
        %3484 = vmatpush1.msra.mxu0 0.0
        %3485 = vmatprep.subr.mxu0 0.0
        %3486 = vmatpush1.msra.mxu0 0.0
        %3487 = vmatprep.subr.mxu0 0.0
        %3488 = vmatpush1.msra.mxu0 0.0
        %3489 = vmatprep.subr.mxu0 0.0
        %3490 = vmatpush1.msra.mxu0 0.0
        %3491 = vmatprep.subr.mxu0 0.0
        %3492 = vmatpush1.msra.mxu0 0.0
        %3493 = vmatprep.subr.mxu0 %v3040
        %3494 = vmatpush1.msra.mxu0 %v3039
        %3495 = vmatprep.subr.mxu0 %v3027
        %3496 = vmatpush1.msra.mxu0 %v3026
        %3497 = vmatprep.subr.mxu0 %v3014
        %3498 = vmatpush1.msra.mxu0 %v3013
        %3499 = vmatprep.subr.mxu0 %v3001
        %3500 = vmatpush1.msra.mxu0 %v3000
        %3501 = vmatprep.subr.mxu0 0.0
        %3502 = vmatpush2.msra.mxu0 0.0
        %3503 = vmatprep.subr.mxu0 0.0
        %3504 = vmatpush2.msra.mxu0 0.0
        %3505 = vmatprep.subr.mxu0 0.0
        %3506 = vmatpush2.msra.mxu0 0.0
        %3507 = vmatprep.subr.mxu0 0.0
        %3508 = vmatpush2.msra.mxu0 0.0
        %3509 = vmatprep.subr.mxu0 0.0
        %3510 = vmatpush2.msra.mxu0 0.0
        %3511 = vmatprep.subr.mxu0 0.0
        %3512 = vmatpush2.msra.mxu0 0.0
        %3513 = vmatprep.subr.mxu0 0.0
        %3514 = vmatpush2.msra.mxu0 0.0
        %3515 = vmatprep.subr.mxu0 0.0
        %3516 = vmatpush2.msra.mxu0 0.0
        %3517 = vmatprep.subr.mxu0 0.0
        %3518 = vmatpush2.msra.mxu0 0.0
        %3519 = vmatprep.subr.mxu0 0.0
        %3520 = vmatpush2.msra.mxu0 0.0
        %3521 = vmatprep.subr.mxu0 0.0
        %3522 = vmatpush2.msra.mxu0 0.0
        %3523 = vmatprep.subr.mxu0 0.0
        %3524 = vmatpush2.msra.mxu0 0.0
        %3525 = vmatprep.subr.mxu0 0.0
        %3526 = vmatpush2.msra.mxu0 0.0
        %3527 = vmatprep.subr.mxu0 0.0
        %3528 = vmatpush2.msra.mxu0 0.0
        %3529 = vmatprep.subr.mxu0 0.0
        %3530 = vmatpush2.msra.mxu0 0.0
        %3531 = vmatprep.subr.mxu0 0.0
        %3532 = vmatpush2.msra.mxu0 0.0
        %3533 = vmatprep.mubr.f32.mxu0 0.0
        %3534 = vmatmul.mubr.f32.gmra.mxu0 %v3112
        %v3535 = vpop.f32.mrf.mxu0
        %v3536 = vadd.f32 %v3089, %v3535
        %v3537 = vpop.f32.mrf.mxu0
        %v3538 = vadd.f32 %v3093, %v3537
        %3539 = vdwg.mxu0
        %3540 = vmatprep.subr.mxu0 0.0
        %3541 = vmatpush1.msra.mxu0 0.0
        %3542 = vmatprep.subr.mxu0 0.0
        %3543 = vmatpush1.msra.mxu0 0.0
        %3544 = vmatprep.subr.mxu0 0.0
        %3545 = vmatpush1.msra.mxu0 0.0
        %3546 = vmatprep.subr.mxu0 0.0
        %3547 = vmatpush1.msra.mxu0 0.0
        %3548 = vmatprep.subr.mxu0 0.0
        %3549 = vmatpush1.msra.mxu0 0.0
        %3550 = vmatprep.subr.mxu0 0.0
        %3551 = vmatpush1.msra.mxu0 0.0
        %3552 = vmatprep.subr.mxu0 0.0
        %3553 = vmatpush1.msra.mxu0 0.0
        %3554 = vmatprep.subr.mxu0 0.0
        %3555 = vmatpush1.msra.mxu0 0.0
        %3556 = vmatprep.subr.mxu0 0.0
        %3557 = vmatpush1.msra.mxu0 0.0
        %3558 = vmatprep.subr.mxu0 0.0
        %3559 = vmatpush1.msra.mxu0 0.0
        %3560 = vmatprep.subr.mxu0 0.0
        %3561 = vmatpush1.msra.mxu0 0.0
        %3562 = vmatprep.subr.mxu0 0.0
        %3563 = vmatpush1.msra.mxu0 0.0
        %3564 = vmatprep.subr.mxu0 0.0
        %3565 = vmatpush1.msra.mxu0 %v3041
        %3566 = vmatprep.subr.mxu0 0.0
        %3567 = vmatpush1.msra.mxu0 %v3028
        %3568 = vmatprep.subr.mxu0 0.0
        %3569 = vmatpush1.msra.mxu0 %v3015
        %3570 = vmatprep.subr.mxu0 0.0
        %3571 = vmatpush1.msra.mxu0 %v3002
        %3572 = vmatprep.subr.mxu0 0.0
        %3573 = vmatpush2.msra.mxu0 0.0
        %3574 = vmatprep.subr.mxu0 0.0
        %3575 = vmatpush2.msra.mxu0 0.0
        %3576 = vmatprep.subr.mxu0 0.0
        %3577 = vmatpush2.msra.mxu0 0.0
        %3578 = vmatprep.subr.mxu0 0.0
        %3579 = vmatpush2.msra.mxu0 0.0
        %3580 = vmatprep.subr.mxu0 0.0
        %3581 = vmatpush2.msra.mxu0 0.0
        %3582 = vmatprep.subr.mxu0 0.0
        %3583 = vmatpush2.msra.mxu0 0.0
        %3584 = vmatprep.subr.mxu0 0.0
        %3585 = vmatpush2.msra.mxu0 0.0
        %3586 = vmatprep.subr.mxu0 0.0
        %3587 = vmatpush2.msra.mxu0 0.0
        %3588 = vmatprep.subr.mxu0 0.0
        %3589 = vmatpush2.msra.mxu0 0.0
        %3590 = vmatprep.subr.mxu0 0.0
        %3591 = vmatpush2.msra.mxu0 0.0
        %3592 = vmatprep.subr.mxu0 0.0
        %3593 = vmatpush2.msra.mxu0 0.0
        %3594 = vmatprep.subr.mxu0 0.0
        %3595 = vmatpush2.msra.mxu0 0.0
        %3596 = vmatprep.subr.mxu0 0.0
        %3597 = vmatpush2.msra.mxu0 0.0
        %3598 = vmatprep.subr.mxu0 0.0
        %3599 = vmatpush2.msra.mxu0 0.0
        %3600 = vmatprep.subr.mxu0 0.0
        %3601 = vmatpush2.msra.mxu0 0.0
        %3602 = vmatprep.subr.mxu0 0.0
        %3603 = vmatpush2.msra.mxu0 0.0
        %3604 = vmatprep.mubr.f32.mxu0 0.0
        %3605 = vmatmul.mubr.f32.gmra.mxu0 %v3112
        %v3606 = vpop.f32.mrf.mxu0
        %v3607 = vadd.f32 %v3097, %v3606
        %v3608 = vpop.f32.mrf.mxu0
        %3609 = vdwg.mxu0
        %v3610 = vmax.f32 %v3181, 0.0
        %v3611 = vmax.f32 %v3183, 0.0
        %v3612 = vmax.f32 %v3252, 0.0
        %v3613 = vmax.f32 %v3254, 0.0
        %v3614 = vmax.f32 %v3323, 0.0
        %v3615 = vmax.f32 %v3325, 0.0
        %v3616 = vmax.f32 %v3394, 0.0
        %v3617 = vmax.f32 %v3396, 0.0
        %v3618 = vmax.f32 %v3465, 0.0
        %v3619 = vmax.f32 %v3467, 0.0
        %v3620 = vmax.f32 %v3536, 0.0
        %v3621 = vmax.f32 %v3538, 0.0
        %v3622 = vmax.f32 %v3607, 0.0
        %v3626 = vrot.slane %v3611, 7
        %v3627 = vrot.slane %v3612, 7
        %v3628 = vrot.slane %v3613, 7
        %3629 = vrot.lane.b32.xlu0 %v3626, 32
        %v3630 = vpop.permute.xlu0 %3629
        %3631 = vrot.lane.b32.xlu0 %v3627, 32
        %v3632 = vpop.permute.xlu0 %3631
        %3633 = vrot.lane.b32.xlu0 %v3628, 32
        %v3634 = vpop.permute.xlu0 %3633
        %v3635 = vsel %vm1862, %v3630, %v3632
        %v3636 = vsel %vm1862, %v3632, %v3634
        %v3641 = vrot.slane %v3613, 6
        %v3642 = vrot.slane %v3614, 6
        %v3643 = vrot.slane %v3615, 6
        %3644 = vrot.lane.b32.xlu0 %v3641, 64
        %v3645 = vpop.permute.xlu0 %3644
        %3646 = vrot.lane.b32.xlu0 %v3642, 64
        %v3647 = vpop.permute.xlu0 %3646
        %3648 = vrot.lane.b32.xlu0 %v3643, 64
        %v3649 = vpop.permute.xlu0 %3648
        %vm3650 = vcmask 523264
        %v3651 = vsel %vm3650, %v3645, %v3647
        %v3652 = vsel %vm3650, %v3647, %v3649
        %v3656 = vrot.slane %v3615, 5
        %v3657 = vrot.slane %v3616, 5
        %3658 = vrot.lane.b32.xlu0 %v3656, 96
        %v3659 = vpop.permute.xlu0 %3658
        %3660 = vrot.lane.b32.xlu0 %v3657, 96
        %v3661 = vpop.permute.xlu0 %3660
        %v3662 = vsel %vm1470, %v3659, %v3661
        %v3667 = vrot.slane %v3617, 4
        %v3668 = vrot.slane %v3618, 4
        %v3673 = vrot.slane %v3618, 3
        %v3674 = vrot.slane %v3619, 3
        %v3675 = vrot.slane %v3620, 3
        %3676 = vrot.lane.b32.xlu0 %v3673, 32
        %v3677 = vpop.permute.xlu0 %3676
        %3678 = vrot.lane.b32.xlu0 %v3674, 32
        %v3679 = vpop.permute.xlu0 %3678
        %3680 = vrot.lane.b32.xlu0 %v3675, 32
        %v3681 = vpop.permute.xlu0 %3680
        %v3682 = vsel %vm1862, %v3677, %v3679
        %v3683 = vsel %vm1862, %v3679, %v3681
        %v3688 = vrot.slane %v3620, 2
        %v3689 = vrot.slane %v3621, 2
        %v3690 = vrot.slane %v3622, 2
        %3691 = vrot.lane.b32.xlu0 %v3688, 64
        %v3692 = vpop.permute.xlu0 %3691
        %3693 = vrot.lane.b32.xlu0 %v3689, 64
        %v3694 = vpop.permute.xlu0 %3693
        %3695 = vrot.lane.b32.xlu0 %v3690, 64
        %v3696 = vpop.permute.xlu0 %3695
        %v3697 = vsel %vm3650, %v3692, %v3694
        %v3698 = vsel %vm3650, %v3694, %v3696
        %v3701 = vsel %vm1426, %v3610, %v3635
        %v3702 = vsel %vm1426, %v3611, %v3636
        %vm3703 = vcmask 1041408
        %v3704 = vsel %vm3703, %v3701, %v3651
        %v3705 = vsel %vm3703, %v3702, %v3652
        %vm3706 = vcmask 1042432
        %v3707 = vsel %vm3706, %v3704, %v3662
        %v3708 = vsel %vm3706, %v3705, %v3661
        %v3709 = vsel %vm732, %v3707, %v3667
        %v3710 = vsel %vm732, %v3708, %v3668
        %vm3711 = vcmask 1044480
        %v3712 = vsel %vm3711, %v3709, %v3682
        %v3713 = vsel %vm3711, %v3710, %v3683
        %v3714 = vsel %vm1453, %v3712, %v3697
        %v3715 = vsel %vm1453, %v3713, %v3698
        %v3716 = vld [vmem:[#allocation2] sm:$0xff]
        %v3717 = vld [vmem:[#allocation2 + $0x8] sm:$0xff]
        %v3718 = vld [vmem:[#allocation2 + $0x10] sm:$0xff]
        %v3719 = vld [vmem:[#allocation2 + $0x18] sm:$0xff]
        %v3720 = vld [vmem:[#allocation2 + $0x20] sm:$0xff]
        %v3721 = vld [vmem:[#allocation2 + $0x28] sm:$0xff]
        %v3722 = vld [vmem:[#allocation2 + $0x30] sm:$0xff]
        %v3723 = vld [vmem:[#allocation2 + $0x38] sm:$0xff]
        %v3724 = vld [vmem:[#allocation2 + $0x40] sm:$0xff]
        %v3725 = vld [vmem:[#allocation2 + $0x48] sm:$0xff]
        %v3726 = vld [vmem:[#allocation2 + $0x50] sm:$0xff]
        %v3727 = vld [vmem:[#allocation2 + $0x58] sm:$0xff]
        %v3728 = vld [vmem:[#allocation2 + $0x60] sm:$0xff]
        %v3729 = vld [vmem:[#allocation2 + $0x68] sm:$0xff]
        %v3730 = vld [vmem:[#allocation2 + $0x70] sm:$0xff]
        %v3731 = vld [vmem:[#allocation2 + $0x78] sm:$0xff]
        %v3732 = vld [vmem:[#allocation2 + $0x80] sm:$0xff]
        %v3733 = vld [vmem:[#allocation2 + $0x88] sm:$0xff]
        %v3734 = vld [vmem:[#allocation2 + $0x90] sm:$0xff]
        %v3735 = vld [vmem:[#allocation2 + $0x98] sm:$0xff]
        %v3736 = vld [vmem:[#allocation2 + $0xa0] sm:$0xff]
        %v3737 = vld [vmem:[#allocation2 + $0xa8] sm:$0xff]
        %v3738 = vld [vmem:[#allocation2 + $0xb0] sm:$0xff]
        %v3739 = vld [vmem:[#allocation2 + $0xb8] sm:$0xff]
        %v3740 = vld [vmem:[#allocation2 + $0xc0] sm:$0xff]
        %v3741 = vld [vmem:[#allocation2 + $0xc8] sm:$0xff]
        %v3742 = vld [vmem:[#allocation2 + $0xd0] sm:$0xff]
        %v3743 = vld [vmem:[#allocation2 + $0xd8] sm:$0xff]
        %v3744 = vld [vmem:[#allocation2 + $0xe0] sm:$0xff]
        %v3745 = vld [vmem:[#allocation2 + $0xe8] sm:$0xff]
        %v3746 = vld [vmem:[#allocation2 + $0xf0] sm:$0xff]
        %v3747 = vld [vmem:[#allocation2 + $0xf8] sm:$0xff]
        %v3748 = vld [vmem:[#allocation2 + $0x100] sm:$0xff]
        %v3749 = vld [vmem:[#allocation2 + $0x108] sm:$0xff]
        %v3750 = vld [vmem:[#allocation2 + $0x110] sm:$0xff]
        %v3751 = vld [vmem:[#allocation2 + $0x118] sm:$0xff]
        %v3752 = vld [vmem:[#allocation2 + $0x120] sm:$0xff]
        %v3753 = vld [vmem:[#allocation2 + $0x128] sm:$0xff]
        %v3754 = vld [vmem:[#allocation2 + $0x130] sm:$0xff]
        %v3755 = vld [vmem:[#allocation2 + $0x138] sm:$0xff]
        %v3756 = vld [vmem:[#allocation2 + $0x140] sm:$0xff]
        %v3757 = vld [vmem:[#allocation2 + $0x148] sm:$0xff]
        %v3758 = vld [vmem:[#allocation2 + $0x150] sm:$0xff]
        %v3759 = vld [vmem:[#allocation2 + $0x158] sm:$0xff]
        %v3760 = vld [vmem:[#allocation2 + $0x160] sm:$0xff]
        %v3761 = vld [vmem:[#allocation2 + $0x168] sm:$0xff]
        %v3762 = vld [vmem:[#allocation2 + $0x170] sm:$0xff]
        %v3763 = vld [vmem:[#allocation2 + $0x178] sm:$0xff]
        %v3764 = vld [vmem:[#allocation2 + $0x180] sm:$0xff]
        %v3765 = vld [vmem:[#allocation2 + $0x188] sm:$0xff]
        %v3766 = vld [vmem:[#allocation2 + $0x190] sm:$0xff]
        %v3767 = vld [vmem:[#allocation2 + $0x198] sm:$0xff]
        %v3768 = vld [vmem:[#allocation2 + $0x1a0] sm:$0xff]
        %v3769 = vld [vmem:[#allocation2 + $0x1a8] sm:$0xff]
        %v3770 = vld [vmem:[#allocation2 + $0x1b0] sm:$0xff]
        %v3771 = vld [vmem:[#allocation2 + $0x1b8] sm:$0xff]
        %v3772 = vld [vmem:[#allocation2 + $0x1c0] sm:$0xff]
        %v3773 = vld [vmem:[#allocation2 + $0x1c8] sm:$0xff]
        %v3774 = vld [vmem:[#allocation2 + $0x1d0] sm:$0xff]
        %v3775 = vld [vmem:[#allocation2 + $0x1d8] sm:$0xff]
        %v3776 = vld [vmem:[#allocation2 + $0x1e0] sm:$0xff]
        %v3777 = vld [vmem:[#allocation2 + $0x1e8] sm:$0xff]
        %v3778 = vld [vmem:[#allocation2 + $0x1f0] sm:$0xff]
        %v3779 = vld [vmem:[#allocation2 + $0x1f8] sm:$0xff]
        %v3780 = vld [vmem:[#allocation2 + $0x200] sm:$0xff]
        %v3781 = vld [vmem:[#allocation2 + $0x208] sm:$0xff]
        %v3782 = vld [vmem:[#allocation2 + $0x210] sm:$0xff]
        %v3783 = vld [vmem:[#allocation2 + $0x218] sm:$0xff]
        %v3784 = vld [vmem:[#allocation2 + $0x220] sm:$0xff]
        %v3785 = vld [vmem:[#allocation2 + $0x228] sm:$0xff]
        %v3786 = vld [vmem:[#allocation2 + $0x230] sm:$0xff]
        %v3787 = vld [vmem:[#allocation2 + $0x238] sm:$0xff]
        %v3788 = vld [vmem:[#allocation2 + $0x240] sm:$0xff]
        %v3789 = vld [vmem:[#allocation2 + $0x248] sm:$0xff]
        %v3790 = vld [vmem:[#allocation2 + $0x250] sm:$0xff]
        %v3791 = vld [vmem:[#allocation2 + $0x258] sm:$0xff]
        %v3792 = vld [vmem:[#allocation2 + $0x260] sm:$0xff]
        %v3793 = vld [vmem:[#allocation2 + $0x268] sm:$0xff]
        %v3794 = vld [vmem:[#allocation2 + $0x270] sm:$0xff]
        %v3795 = vld [vmem:[#allocation2 + $0x278] sm:$0xff]
        %v3796 = vld [vmem:[#allocation2 + $0x280] sm:$0xff]
        %v3797 = vld [vmem:[#allocation2 + $0x288] sm:$0xff]
        %v3798 = vld [vmem:[#allocation2 + $0x290] sm:$0xff]
        %v3799 = vld [vmem:[#allocation2 + $0x298] sm:$0xff]
        %v3800 = vld [vmem:[#allocation2 + $0x2a0] sm:$0xff]
        %v3801 = vld [vmem:[#allocation2 + $0x2a8] sm:$0xff]
        %v3802 = vld [vmem:[#allocation2 + $0x2b0] sm:$0xff]
        %v3803 = vld [vmem:[#allocation2 + $0x2b8] sm:$0xff]
        %v3804 = vld [vmem:[#allocation2 + $0x2c0] sm:$0xff]
        %v3805 = vld [vmem:[#allocation2 + $0x2c8] sm:$0xff]
        %v3806 = vld [vmem:[#allocation2 + $0x2d0] sm:$0xff]
        %v3807 = vld [vmem:[#allocation2 + $0x2d8] sm:$0xff]
        %v3808 = vld [vmem:[#allocation2 + $0x2e0] sm:$0xff]
        %v3809 = vld [vmem:[#allocation2 + $0x2e8] sm:$0xff]
        %v3810 = vld [vmem:[#allocation2 + $0x2f0] sm:$0xff]
        %v3811 = vld [vmem:[#allocation2 + $0x2f8] sm:$0xff]
        %v3812 = vld [vmem:[#allocation2 + $0x300] sm:$0xff]
        %v3813 = vld [vmem:[#allocation2 + $0x308] sm:$0xff]
        %v3814 = vld [vmem:[#allocation2 + $0x310] sm:$0xff]
        %v3815 = vld [vmem:[#allocation2 + $0x318] sm:$0xff]
        %v3816 = vld [vmem:[#allocation2 + $0x320] sm:$0xff]
        %v3817 = vld [vmem:[#allocation2 + $0x328] sm:$0xff]
        %v3818 = vld [vmem:[#allocation2 + $0x330] sm:$0xff]
        %v3819 = vld [vmem:[#allocation2 + $0x338] sm:$0xff]
        %v3820 = vld [vmem:[#allocation2 + $0x340] sm:$0xff]
        %v3821 = vld [vmem:[#allocation2 + $0x348] sm:$0xff]
        %v3822 = vld [vmem:[#allocation2 + $0x350] sm:$0xff]
        %v3823 = vld [vmem:[#allocation2 + $0x358] sm:$0xff]
        %v3824 = vld [vmem:[#allocation2 + $0x360] sm:$0xff]
        %v3825 = vld [vmem:[#allocation2 + $0x368] sm:$0xff]
        %v3826 = vld [vmem:[#allocation2 + $0x370] sm:$0xff]
        %v3827 = vld [vmem:[#allocation2 + $0x378] sm:$0xff]
        %v3828 = vld [vmem:[#allocation2 + $0x380] sm:$0xff]
        %v3829 = vld [vmem:[#allocation2 + $0x388] sm:$0xff]
        %v3830 = vld [vmem:[#allocation2 + $0x390] sm:$0xff]
        %v3831 = vld [vmem:[#allocation2 + $0x398] sm:$0xff]
        %v3832 = vld [vmem:[#allocation2 + $0x3a0] sm:$0xff]
        %v3833 = vld [vmem:[#allocation2 + $0x3a8] sm:$0xff]
        %v3834 = vld [vmem:[#allocation2 + $0x3b0] sm:$0xff]
        %v3835 = vld [vmem:[#allocation2 + $0x3b8] sm:$0xff]
        %v3836 = vld [vmem:[#allocation2 + $0x3c0] sm:$0xff]
        %v3837 = vld [vmem:[#allocation2 + $0x3c8] sm:$0xff]
        %v3838 = vld [vmem:[#allocation2 + $0x3d0] sm:$0xff]
        %v3839 = vld [vmem:[#allocation2 + $0x3d8] sm:$0xff]
        %v3840 = vld [vmem:[#allocation2 + $0x3e0] sm:$0xff]
        %v3841 = vld [vmem:[#allocation2 + $0x3e8] sm:$0xff]
        %v3842 = vld [vmem:[#allocation2 + $0x3f0] sm:$0xff]
        %v3843 = vld [vmem:[#allocation2 + $0x3f8] sm:$0xff]
        %v3844 = vld [vmem:[#allocation2 + $0x400] sm:$0xff]
        %v3845 = vld [vmem:[#allocation2 + $0x408] sm:$0xff]
        %v3846 = vld [vmem:[#allocation2 + $0x410] sm:$0xff]
        %v3847 = vld [vmem:[#allocation2 + $0x418] sm:$0xff]
        %v3848 = vld [vmem:[#allocation2 + $0x420] sm:$0xff]
        %v3849 = vld [vmem:[#allocation2 + $0x428] sm:$0xff]
        %v3850 = vld [vmem:[#allocation2 + $0x430] sm:$0xff]
        %v3851 = vld [vmem:[#allocation2 + $0x438] sm:$0xff]
        %v3852 = vld [vmem:[#allocation2 + $0x440] sm:$0xff]
        %v3853 = vld [vmem:[#allocation2 + $0x448] sm:$0xff]
        %v3854 = vld [vmem:[#allocation2 + $0x450] sm:$0xff]
        %v3855 = vld [vmem:[#allocation2 + $0x458] sm:$0xff]
        %v3856 = vld [vmem:[#allocation2 + $0x460] sm:$0xff]
        %v3857 = vld [vmem:[#allocation2 + $0x468] sm:$0xff]
        %v3858 = vld [vmem:[#allocation2 + $0x470] sm:$0xff]
        %v3859 = vld [vmem:[#allocation2 + $0x478] sm:$0xff]
        %v3860 = vld [vmem:[#allocation2 + $0x480] sm:$0xff]
        %v3861 = vld [vmem:[#allocation2 + $0x488] sm:$0xff]
        %v3862 = vld [vmem:[#allocation2 + $0x490] sm:$0xff]
        %v3863 = vld [vmem:[#allocation2 + $0x498] sm:$0xff]
        %v3864 = vld [vmem:[#allocation2 + $0x4a0] sm:$0xff]
        %v3865 = vld [vmem:[#allocation2 + $0x4a8] sm:$0xff]
        %v3866 = vld [vmem:[#allocation2 + $0x4b0] sm:$0xff]
        %v3867 = vld [vmem:[#allocation2 + $0x4b8] sm:$0xff]
        %v3868 = vld [vmem:[#allocation2 + $0x4c0] sm:$0xff]
        %v3869 = vld [vmem:[#allocation2 + $0x4c8] sm:$0xff]
        %v3870 = vld [vmem:[#allocation2 + $0x4d0] sm:$0xff]
        %v3871 = vld [vmem:[#allocation2 + $0x4d8] sm:$0xff]
        %v3872 = vld [vmem:[#allocation2 + $0x4e0] sm:$0xff]
        %v3873 = vld [vmem:[#allocation2 + $0x4e8] sm:$0xff]
        %v3874 = vld [vmem:[#allocation2 + $0x4f0] sm:$0xff]
        %v3875 = vld [vmem:[#allocation2 + $0x4f8] sm:$0xff]
        %v3876 = vld [vmem:[#allocation2 + $0x500] sm:$0xff]
        %v3877 = vld [vmem:[#allocation2 + $0x508] sm:$0xff]
        %v3878 = vld [vmem:[#allocation2 + $0x510] sm:$0xff]
        %v3879 = vld [vmem:[#allocation2 + $0x518] sm:$0xff]
        %v3880 = vld [vmem:[#allocation2 + $0x520] sm:$0xff]
        %v3881 = vld [vmem:[#allocation2 + $0x528] sm:$0xff]
        %v3882 = vld [vmem:[#allocation2 + $0x530] sm:$0xff]
        %v3883 = vld [vmem:[#allocation2 + $0x538] sm:$0xff]
        %v3884 = vld [vmem:[#allocation2 + $0x540] sm:$0xff]
        %v3885 = vld [vmem:[#allocation2 + $0x548] sm:$0xff]
        %v3886 = vld [vmem:[#allocation2 + $0x550] sm:$0xff]
        %v3887 = vld [vmem:[#allocation2 + $0x558] sm:$0xff]
        %v3888 = vld [vmem:[#allocation2 + $0x560] sm:$0xff]
        %v3889 = vld [vmem:[#allocation2 + $0x568] sm:$0xff]
        %v3890 = vld [vmem:[#allocation2 + $0x570] sm:$0xff]
        %v3891 = vld [vmem:[#allocation2 + $0x578] sm:$0xff]
        %v3892 = vld [vmem:[#allocation2 + $0x580] sm:$0xff]
        %v3893 = vld [vmem:[#allocation2 + $0x588] sm:$0xff]
        %v3894 = vld [vmem:[#allocation2 + $0x590] sm:$0xff]
        %v3895 = vld [vmem:[#allocation2 + $0x598] sm:$0xff]
        %v3896 = vld [vmem:[#allocation2 + $0x5a0] sm:$0xff]
        %v3897 = vld [vmem:[#allocation2 + $0x5a8] sm:$0xff]
        %v3898 = vld [vmem:[#allocation2 + $0x5b0] sm:$0xff]
        %v3899 = vld [vmem:[#allocation2 + $0x5b8] sm:$0xff]
        %v3900 = vld [vmem:[#allocation2 + $0x5c0] sm:$0xff]
        %v3901 = vld [vmem:[#allocation2 + $0x5c8] sm:$0xff]
        %v3902 = vld [vmem:[#allocation2 + $0x5d0] sm:$0xff]
        %v3903 = vld [vmem:[#allocation2 + $0x5d8] sm:$0xff]
        %v3904 = vld [vmem:[#allocation2 + $0x5e0] sm:$0xff]
        %v3905 = vld [vmem:[#allocation2 + $0x5e8] sm:$0xff]
        %v3906 = vld [vmem:[#allocation2 + $0x5f0] sm:$0xff]
        %v3907 = vld [vmem:[#allocation2 + $0x5f8] sm:$0xff]
        %v3908 = vld [vmem:[#allocation2 + $0x600] sm:$0xff]
        %v3909 = vld [vmem:[#allocation2 + $0x608] sm:$0xff]
        %v3910 = vld [vmem:[#allocation2 + $0x610] sm:$0xff]
        %v3911 = vld [vmem:[#allocation2 + $0x618] sm:$0xff]
        %v3913 = vsel %vm1470, %v3715, 0
        %3915 = vmatprep.subr.mxu0 %v3822
        %3916 = vmatpush1.msra.mxu0 %v3821
        %3917 = vmatprep.subr.mxu0 %v3815
        %3918 = vmatpush1.msra.mxu0 %v3814
        %3919 = vmatprep.subr.mxu0 %v3808
        %3920 = vmatpush1.msra.mxu0 %v3807
        %3921 = vmatprep.subr.mxu0 %v3801
        %3922 = vmatpush1.msra.mxu0 %v3800
        %3923 = vmatprep.subr.mxu0 %v3794
        %3924 = vmatpush1.msra.mxu0 %v3793
        %3925 = vmatprep.subr.mxu0 %v3787
        %3926 = vmatpush1.msra.mxu0 %v3786
        %3927 = vmatprep.subr.mxu0 %v3780
        %3928 = vmatpush1.msra.mxu0 %v3779
        %3929 = vmatprep.subr.mxu0 %v3773
        %3930 = vmatpush1.msra.mxu0 %v3772
        %3931 = vmatprep.subr.mxu0 %v3766
        %3932 = vmatpush1.msra.mxu0 %v3765
        %3933 = vmatprep.subr.mxu0 %v3759
        %3934 = vmatpush1.msra.mxu0 %v3758
        %3935 = vmatprep.subr.mxu0 %v3752
        %3936 = vmatpush1.msra.mxu0 %v3751
        %3937 = vmatprep.subr.mxu0 %v3745
        %3938 = vmatpush1.msra.mxu0 %v3744
        %3939 = vmatprep.subr.mxu0 %v3738
        %3940 = vmatpush1.msra.mxu0 %v3737
        %3941 = vmatprep.subr.mxu0 %v3731
        %3942 = vmatpush1.msra.mxu0 %v3730
        %3943 = vmatprep.subr.mxu0 %v3724
        %3944 = vmatpush1.msra.mxu0 %v3723
        %3945 = vmatprep.subr.mxu0 %v3717
        %3946 = vmatpush1.msra.mxu0 %v3716
        %3947 = vmatprep.subr.mxu0 0.0
        %3948 = vmatpush2.msra.mxu0 0.0
        %3949 = vmatprep.subr.mxu0 0.0
        %3950 = vmatpush2.msra.mxu0 0.0
        %3951 = vmatprep.subr.mxu0 0.0
        %3952 = vmatpush2.msra.mxu0 0.0
        %3953 = vmatprep.subr.mxu0 0.0
        %3954 = vmatpush2.msra.mxu0 0.0
        %3955 = vmatprep.subr.mxu0 %v3906
        %3956 = vmatpush2.msra.mxu0 %v3905
        %3957 = vmatprep.subr.mxu0 %v3899
        %3958 = vmatpush2.msra.mxu0 %v3898
        %3959 = vmatprep.subr.mxu0 %v3892
        %3960 = vmatpush2.msra.mxu0 %v3891
        %3961 = vmatprep.subr.mxu0 %v3885
        %3962 = vmatpush2.msra.mxu0 %v3884
        %3963 = vmatprep.subr.mxu0 %v3878
        %3964 = vmatpush2.msra.mxu0 %v3877
        %3965 = vmatprep.subr.mxu0 %v3871
        %3966 = vmatpush2.msra.mxu0 %v3870
        %3967 = vmatprep.subr.mxu0 %v3864
        %3968 = vmatpush2.msra.mxu0 %v3863
        %3969 = vmatprep.subr.mxu0 %v3857
        %3970 = vmatpush2.msra.mxu0 %v3856
        %3971 = vmatprep.subr.mxu0 %v3850
        %3972 = vmatpush2.msra.mxu0 %v3849
        %3973 = vmatprep.subr.mxu0 %v3843
        %3974 = vmatpush2.msra.mxu0 %v3842
        %3975 = vmatprep.subr.mxu0 %v3836
        %3976 = vmatpush2.msra.mxu0 %v3835
        %3977 = vmatprep.subr.mxu0 %v3829
        %3978 = vmatpush2.msra.mxu0 %v3828
        %3979 = vmatprep.mubr.f32.mxu0 %v3913
        %3980 = vmatmul.mubr.f32.gmra.mxu0 %v3714
        %v3981 = vpop.f32.mrf.mxu0
        %v3982 = vadd.f32 0.0, %v3981
        %v3983 = vpop.f32.mrf.mxu0
        %v3984 = vadd.f32 0.0, %v3983
        %3985 = vdwg.mxu0
        %3986 = vmatprep.subr.mxu0 %v3824
        %3987 = vmatpush1.msra.mxu0 %v3823
        %3988 = vmatprep.subr.mxu0 %v3817
        %3989 = vmatpush1.msra.mxu0 %v3816
        %3990 = vmatprep.subr.mxu0 %v3810
        %3991 = vmatpush1.msra.mxu0 %v3809
        %3992 = vmatprep.subr.mxu0 %v3803
        %3993 = vmatpush1.msra.mxu0 %v3802
        %3994 = vmatprep.subr.mxu0 %v3796
        %3995 = vmatpush1.msra.mxu0 %v3795
        %3996 = vmatprep.subr.mxu0 %v3789
        %3997 = vmatpush1.msra.mxu0 %v3788
        %3998 = vmatprep.subr.mxu0 %v3782
        %3999 = vmatpush1.msra.mxu0 %v3781
        %4000 = vmatprep.subr.mxu0 %v3775
        %4001 = vmatpush1.msra.mxu0 %v3774
        %4002 = vmatprep.subr.mxu0 %v3768
        %4003 = vmatpush1.msra.mxu0 %v3767
        %4004 = vmatprep.subr.mxu0 %v3761
        %4005 = vmatpush1.msra.mxu0 %v3760
        %4006 = vmatprep.subr.mxu0 %v3754
        %4007 = vmatpush1.msra.mxu0 %v3753
        %4008 = vmatprep.subr.mxu0 %v3747
        %4009 = vmatpush1.msra.mxu0 %v3746
        %4010 = vmatprep.subr.mxu0 %v3740
        %4011 = vmatpush1.msra.mxu0 %v3739
        %4012 = vmatprep.subr.mxu0 %v3733
        %4013 = vmatpush1.msra.mxu0 %v3732
        %4014 = vmatprep.subr.mxu0 %v3726
        %4015 = vmatpush1.msra.mxu0 %v3725
        %4016 = vmatprep.subr.mxu0 %v3719
        %4017 = vmatpush1.msra.mxu0 %v3718
        %4018 = vmatprep.subr.mxu0 0.0
        %4019 = vmatpush2.msra.mxu0 0.0
        %4020 = vmatprep.subr.mxu0 0.0
        %4021 = vmatpush2.msra.mxu0 0.0
        %4022 = vmatprep.subr.mxu0 0.0
        %4023 = vmatpush2.msra.mxu0 0.0
        %4024 = vmatprep.subr.mxu0 0.0
        %4025 = vmatpush2.msra.mxu0 0.0
        %4026 = vmatprep.subr.mxu0 %v3908
        %4027 = vmatpush2.msra.mxu0 %v3907
        %4028 = vmatprep.subr.mxu0 %v3901
        %4029 = vmatpush2.msra.mxu0 %v3900
        %4030 = vmatprep.subr.mxu0 %v3894
        %4031 = vmatpush2.msra.mxu0 %v3893
        %4032 = vmatprep.subr.mxu0 %v3887
        %4033 = vmatpush2.msra.mxu0 %v3886
        %4034 = vmatprep.subr.mxu0 %v3880
        %4035 = vmatpush2.msra.mxu0 %v3879
        %4036 = vmatprep.subr.mxu0 %v3873
        %4037 = vmatpush2.msra.mxu0 %v3872
        %4038 = vmatprep.subr.mxu0 %v3866
        %4039 = vmatpush2.msra.mxu0 %v3865
        %4040 = vmatprep.subr.mxu0 %v3859
        %4041 = vmatpush2.msra.mxu0 %v3858
        %4042 = vmatprep.subr.mxu0 %v3852
        %4043 = vmatpush2.msra.mxu0 %v3851
        %4044 = vmatprep.subr.mxu0 %v3845
        %4045 = vmatpush2.msra.mxu0 %v3844
        %4046 = vmatprep.subr.mxu0 %v3838
        %4047 = vmatpush2.msra.mxu0 %v3837
        %4048 = vmatprep.subr.mxu0 %v3831
        %4049 = vmatpush2.msra.mxu0 %v3830
        %4050 = vmatprep.mubr.f32.mxu0 %v3913
        %4051 = vmatmul.mubr.f32.gmra.mxu0 %v3714
        %v4052 = vpop.f32.mrf.mxu0
        %v4053 = vadd.f32 0.0, %v4052
        %v4054 = vpop.f32.mrf.mxu0
        %v4055 = vadd.f32 0.0, %v4054
        %4056 = vdwg.mxu0
        %4057 = vmatprep.subr.mxu0 %v3826
        %4058 = vmatpush1.msra.mxu0 %v3825
        %4059 = vmatprep.subr.mxu0 %v3819
        %4060 = vmatpush1.msra.mxu0 %v3818
        %4061 = vmatprep.subr.mxu0 %v3812
        %4062 = vmatpush1.msra.mxu0 %v3811
        %4063 = vmatprep.subr.mxu0 %v3805
        %4064 = vmatpush1.msra.mxu0 %v3804
        %4065 = vmatprep.subr.mxu0 %v3798
        %4066 = vmatpush1.msra.mxu0 %v3797
        %4067 = vmatprep.subr.mxu0 %v3791
        %4068 = vmatpush1.msra.mxu0 %v3790
        %4069 = vmatprep.subr.mxu0 %v3784
        %4070 = vmatpush1.msra.mxu0 %v3783
        %4071 = vmatprep.subr.mxu0 %v3777
        %4072 = vmatpush1.msra.mxu0 %v3776
        %4073 = vmatprep.subr.mxu0 %v3770
        %4074 = vmatpush1.msra.mxu0 %v3769
        %4075 = vmatprep.subr.mxu0 %v3763
        %4076 = vmatpush1.msra.mxu0 %v3762
        %4077 = vmatprep.subr.mxu0 %v3756
        %4078 = vmatpush1.msra.mxu0 %v3755
        %4079 = vmatprep.subr.mxu0 %v3749
        %4080 = vmatpush1.msra.mxu0 %v3748
        %4081 = vmatprep.subr.mxu0 %v3742
        %4082 = vmatpush1.msra.mxu0 %v3741
        %4083 = vmatprep.subr.mxu0 %v3735
        %4084 = vmatpush1.msra.mxu0 %v3734
        %4085 = vmatprep.subr.mxu0 %v3728
        %4086 = vmatpush1.msra.mxu0 %v3727
        %4087 = vmatprep.subr.mxu0 %v3721
        %4088 = vmatpush1.msra.mxu0 %v3720
        %4089 = vmatprep.subr.mxu0 0.0
        %4090 = vmatpush2.msra.mxu0 0.0
        %4091 = vmatprep.subr.mxu0 0.0
        %4092 = vmatpush2.msra.mxu0 0.0
        %4093 = vmatprep.subr.mxu0 0.0
        %4094 = vmatpush2.msra.mxu0 0.0
        %4095 = vmatprep.subr.mxu0 0.0
        %4096 = vmatpush2.msra.mxu0 0.0
        %4097 = vmatprep.subr.mxu0 %v3910
        %4098 = vmatpush2.msra.mxu0 %v3909
        %4099 = vmatprep.subr.mxu0 %v3903
        %4100 = vmatpush2.msra.mxu0 %v3902
        %4101 = vmatprep.subr.mxu0 %v3896
        %4102 = vmatpush2.msra.mxu0 %v3895
        %4103 = vmatprep.subr.mxu0 %v3889
        %4104 = vmatpush2.msra.mxu0 %v3888
        %4105 = vmatprep.subr.mxu0 %v3882
        %4106 = vmatpush2.msra.mxu0 %v3881
        %4107 = vmatprep.subr.mxu0 %v3875
        %4108 = vmatpush2.msra.mxu0 %v3874
        %4109 = vmatprep.subr.mxu0 %v3868
        %4110 = vmatpush2.msra.mxu0 %v3867
        %4111 = vmatprep.subr.mxu0 %v3861
        %4112 = vmatpush2.msra.mxu0 %v3860
        %4113 = vmatprep.subr.mxu0 %v3854
        %4114 = vmatpush2.msra.mxu0 %v3853
        %4115 = vmatprep.subr.mxu0 %v3847
        %4116 = vmatpush2.msra.mxu0 %v3846
        %4117 = vmatprep.subr.mxu0 %v3840
        %4118 = vmatpush2.msra.mxu0 %v3839
        %4119 = vmatprep.subr.mxu0 %v3833
        %4120 = vmatpush2.msra.mxu0 %v3832
        %4121 = vmatprep.mubr.f32.mxu0 %v3913
        %4122 = vmatmul.mubr.f32.gmra.mxu0 %v3714
        %v4123 = vpop.f32.mrf.mxu0
        %v4124 = vadd.f32 0.0, %v4123
        %v4125 = vpop.f32.mrf.mxu0
        %v4126 = vadd.f32 0.0, %v4125
        %4127 = vdwg.mxu0
        %4128 = vmatprep.subr.mxu0 0.0
        %4129 = vmatpush1.msra.mxu0 %v3827
        %4130 = vmatprep.subr.mxu0 0.0
        %4131 = vmatpush1.msra.mxu0 %v3820
        %4132 = vmatprep.subr.mxu0 0.0
        %4133 = vmatpush1.msra.mxu0 %v3813
        %4134 = vmatprep.subr.mxu0 0.0
        %4135 = vmatpush1.msra.mxu0 %v3806
        %4136 = vmatprep.subr.mxu0 0.0
        %4137 = vmatpush1.msra.mxu0 %v3799
        %4138 = vmatprep.subr.mxu0 0.0
        %4139 = vmatpush1.msra.mxu0 %v3792
        %4140 = vmatprep.subr.mxu0 0.0
        %4141 = vmatpush1.msra.mxu0 %v3785
        %4142 = vmatprep.subr.mxu0 0.0
        %4143 = vmatpush1.msra.mxu0 %v3778
        %4144 = vmatprep.subr.mxu0 0.0
        %4145 = vmatpush1.msra.mxu0 %v3771
        %4146 = vmatprep.subr.mxu0 0.0
        %4147 = vmatpush1.msra.mxu0 %v3764
        %4148 = vmatprep.subr.mxu0 0.0
        %4149 = vmatpush1.msra.mxu0 %v3757
        %4150 = vmatprep.subr.mxu0 0.0
        %4151 = vmatpush1.msra.mxu0 %v3750
        %4152 = vmatprep.subr.mxu0 0.0
        %4153 = vmatpush1.msra.mxu0 %v3743
        %4154 = vmatprep.subr.mxu0 0.0
        %4155 = vmatpush1.msra.mxu0 %v3736
        %4156 = vmatprep.subr.mxu0 0.0
        %4157 = vmatpush1.msra.mxu0 %v3729
        %4158 = vmatprep.subr.mxu0 0.0
        %4159 = vmatpush1.msra.mxu0 %v3722
        %4160 = vmatprep.subr.mxu0 0.0
        %4161 = vmatpush2.msra.mxu0 0.0
        %4162 = vmatprep.subr.mxu0 0.0
        %4163 = vmatpush2.msra.mxu0 0.0
        %4164 = vmatprep.subr.mxu0 0.0
        %4165 = vmatpush2.msra.mxu0 0.0
        %4166 = vmatprep.subr.mxu0 0.0
        %4167 = vmatpush2.msra.mxu0 0.0
        %4168 = vmatprep.subr.mxu0 0.0
        %4169 = vmatpush2.msra.mxu0 %v3911
        %4170 = vmatprep.subr.mxu0 0.0
        %4171 = vmatpush2.msra.mxu0 %v3904
        %4172 = vmatprep.subr.mxu0 0.0
        %4173 = vmatpush2.msra.mxu0 %v3897
        %4174 = vmatprep.subr.mxu0 0.0
        %4175 = vmatpush2.msra.mxu0 %v3890
        %4176 = vmatprep.subr.mxu0 0.0
        %4177 = vmatpush2.msra.mxu0 %v3883
        %4178 = vmatprep.subr.mxu0 0.0
        %4179 = vmatpush2.msra.mxu0 %v3876
        %4180 = vmatprep.subr.mxu0 0.0
        %4181 = vmatpush2.msra.mxu0 %v3869
        %4182 = vmatprep.subr.mxu0 0.0
        %4183 = vmatpush2.msra.mxu0 %v3862
        %4184 = vmatprep.subr.mxu0 0.0
        %4185 = vmatpush2.msra.mxu0 %v3855
        %4186 = vmatprep.subr.mxu0 0.0
        %4187 = vmatpush2.msra.mxu0 %v3848
        %4188 = vmatprep.subr.mxu0 0.0
        %4189 = vmatpush2.msra.mxu0 %v3841
        %4190 = vmatprep.subr.mxu0 0.0
        %4191 = vmatpush2.msra.mxu0 %v3834
        %4192 = vmatprep.mubr.f32.mxu0 %v3913
        %4193 = vmatmul.mubr.f32.gmra.mxu0 %v3714
        %v4194 = vpop.f32.mrf.mxu0
        %v4195 = vadd.f32 0.0, %v4194
        %v4196 = vpop.f32.mrf.mxu0
        %4197 = vdwg.mxu0
        %v4200 = vrot.slane %v4126, 7
        %v4201 = vrot.slane %v4195, 7
        %4202 = vrot.lane.b32.xlu0 %v4200, 96
        %v4203 = vpop.permute.xlu0 %4202
        %4204 = vrot.lane.b32.xlu0 %v4201, 96
        %v4205 = vpop.permute.xlu0 %4204
        %v4206 = vsel %vm1470, %v4203, %v4205
        %v4209 = vsel %vm1426, 0.0, %v4206
        %v4210 = vsel %vm1426, 0.0, %v4205
        %4213 = vrot.lane.b32.xlu0 %v4209, 96
        %v4214 = vpop.permute.xlu0 %4213
        %4215 = vrot.lane.b32.xlu0 %v4210, 96
        %v4216 = vpop.permute.xlu0 %4215
        %v4217 = vsel %vm1470, %v4214, %v4216
        %v4221 = vadd.f32 %v3984, %v4214
        %v4222 = vadd.f32 %v4053, %v4217
        %v4223 = vadd.f32 %v4055, %v4216
        %v4224 = vld [vmem:[%s15] sm:$0x3]
        %v4226 = vlaneseq
        %v4227 = vshrl.u32 %v4226, 7
        %v4228 = vsub.s32 0, %v4227
        %v4229 = vrot.slane %v4224, %v4228
        %v4230 = vlaneseq
        %v4231 = vshrl.u32 %v4230, 7
        %v4232 = vsub.s32 1, %v4231
        %v4233 = vrot.slane %v4224, %v4232
        %4236 = vrot.lane.b32.xlu0 %v4229, 96
        %v4237 = vpop.permute.xlu0 %4236
        %4238 = vrot.lane.b32.xlu0 %v4233, 96
        %v4239 = vpop.permute.xlu0 %4238
        %v4240 = vsel %vm1470, %v4237, %v4239
        %v4244 = vadd.f32 %v4221, %v4237
        %v4245 = vadd.f32 %v4222, %v4240
        %v4246 = vadd.f32 %v4223, %v4239
        %v4249 = vrot.slane %v3982, 1
        %v4250 = vrot.slane %v3984, 1
        %v4253 = vsel %vm1453, %v4249, 0.0
        %v4254 = vsel %vm1453, %v4250, 0.0
        %4257 = vrot.lane.b32.xlu0 %v4055, 64
        %v4258 = vpop.permute.xlu0 %4257
        %4259 = vrot.lane.b32.xlu0 %v4124, 64
        %v4260 = vpop.permute.xlu0 %4259
        %4261 = vrot.lane.b32.xlu0 %v4126, 64
        %v4262 = vpop.permute.xlu0 %4261
        %v4263 = vsel %vm3650, %v4258, %v4260
        %v4264 = vsel %vm3650, %v4260, %v4262
        %v4267 = vadd.f32 %v4253, %v4263
        %v4268 = vadd.f32 %v4254, %v4264
        %v4269 = vadd.f32 %v4267, %v4229
        %v4270 = vadd.f32 %v4268, %v4233
        %v4271 = vmax.f32 %v4244, 0.0
        %v4272 = vmax.f32 %v4245, 0.0
        %v4273 = vmax.f32 %v4246, 0.0
        %v4274 = vmax.f32 %v4269, 0.0
        %v4275 = vmax.f32 %v4270, 0.0
        %v4276 = vld [vmem:[%s16] sm:$0xff]
        %v4277 = vld [vmem:[%s16 + $0x8] sm:$0xff]
        %v4278 = vld [vmem:[%s16 + $0x10] sm:$0xff]
        %v4279 = vld [vmem:[%s16 + $0x18] sm:$0xff]
        %v4280 = vld [vmem:[%s16 + $0x20] sm:$0xff]
        %v4281 = vld [vmem:[%s16 + $0x28] sm:$0xff]
        %v4282 = vld [vmem:[%s16 + $0x30] sm:$0xff]
        %v4283 = vld [vmem:[%s16 + $0x38] sm:$0xff]
        %v4284 = vld [vmem:[%s16 + $0x40] sm:$0xff]
        %v4285 = vld [vmem:[%s16 + $0x48] sm:$0xff]
        %v4286 = vld [vmem:[%s16 + $0x50] sm:$0xff]
        %v4287 = vld [vmem:[%s16 + $0x58] sm:$0xff]
        %v4288 = vld [vmem:[%s16 + $0x60] sm:$0xff]
        %v4289 = vld [vmem:[%s16 + $0x68] sm:$0xff]
        %v4290 = vld [vmem:[%s16 + $0x70] sm:$0xff]
        %v4291 = vld [vmem:[%s16 + $0x78] sm:$0xff]
        %v4292 = vld [vmem:[%s16 + $0x80] sm:$0xff]
        %v4293 = vld [vmem:[%s16 + $0x88] sm:$0xff]
        %v4294 = vld [vmem:[%s16 + $0x90] sm:$0xff]
        %v4295 = vld [vmem:[%s16 + $0x98] sm:$0xff]
        %v4296 = vld [vmem:[%s16 + $0xa0] sm:$0xff]
        %v4297 = vld [vmem:[%s16 + $0xa8] sm:$0xff]
        %v4298 = vld [vmem:[%s16 + $0xb0] sm:$0xff]
        %v4299 = vld [vmem:[%s16 + $0xb8] sm:$0xff]
        %v4300 = vld [vmem:[%s16 + $0xc0] sm:$0xff]
        %v4301 = vld [vmem:[%s16 + $0xc8] sm:$0xff]
        %v4302 = vld [vmem:[%s16 + $0xd0] sm:$0xff]
        %v4303 = vld [vmem:[%s16 + $0xd8] sm:$0xff]
        %4307 = vrot.lane.b32.xlu0 %v4271, 32
        %v4308 = vpop.permute.xlu0 %4307
        %4309 = vrot.lane.b32.xlu0 %v4272, 32
        %v4310 = vpop.permute.xlu0 %4309
        %4311 = vrot.lane.b32.xlu0 %v4273, 32
        %v4312 = vpop.permute.xlu0 %4311
        %v4313 = vsel %vm1862, %v4308, %v4310
        %v4314 = vsel %vm1862, %v4310, %v4312
        %v4316 = vsel %vm1470, %v4314, 0
        %4318 = vmatprep.subr.mxu0 0.0
        %4319 = vmatpush1.msra.mxu0 %v4291
        %4320 = vmatprep.subr.mxu0 0.0
        %4321 = vmatpush1.msra.mxu0 %v4290
        %4322 = vmatprep.subr.mxu0 0.0
        %4323 = vmatpush1.msra.mxu0 %v4289
        %4324 = vmatprep.subr.mxu0 0.0
        %4325 = vmatpush1.msra.mxu0 %v4288
        %4326 = vmatprep.subr.mxu0 0.0
        %4327 = vmatpush1.msra.mxu0 %v4287
        %4328 = vmatprep.subr.mxu0 0.0
        %4329 = vmatpush1.msra.mxu0 %v4286
        %4330 = vmatprep.subr.mxu0 0.0
        %4331 = vmatpush1.msra.mxu0 %v4285
        %4332 = vmatprep.subr.mxu0 0.0
        %4333 = vmatpush1.msra.mxu0 %v4284
        %4334 = vmatprep.subr.mxu0 0.0
        %4335 = vmatpush1.msra.mxu0 %v4283
        %4336 = vmatprep.subr.mxu0 0.0
        %4337 = vmatpush1.msra.mxu0 %v4282
        %4338 = vmatprep.subr.mxu0 0.0
        %4339 = vmatpush1.msra.mxu0 %v4281
        %4340 = vmatprep.subr.mxu0 0.0
        %4341 = vmatpush1.msra.mxu0 %v4280
        %4342 = vmatprep.subr.mxu0 0.0
        %4343 = vmatpush1.msra.mxu0 %v4279
        %4344 = vmatprep.subr.mxu0 0.0
        %4345 = vmatpush1.msra.mxu0 %v4278
        %4346 = vmatprep.subr.mxu0 0.0
        %4347 = vmatpush1.msra.mxu0 %v4277
        %4348 = vmatprep.subr.mxu0 0.0
        %4349 = vmatpush1.msra.mxu0 %v4276
        %4350 = vmatprep.subr.mxu0 0.0
        %4351 = vmatpush2.msra.mxu0 0.0
        %4352 = vmatprep.subr.mxu0 0.0
        %4353 = vmatpush2.msra.mxu0 0.0
        %4354 = vmatprep.subr.mxu0 0.0
        %4355 = vmatpush2.msra.mxu0 0.0
        %4356 = vmatprep.subr.mxu0 0.0
        %4357 = vmatpush2.msra.mxu0 0.0
        %4358 = vmatprep.subr.mxu0 0.0
        %4359 = vmatpush2.msra.mxu0 %v4303
        %4360 = vmatprep.subr.mxu0 0.0
        %4361 = vmatpush2.msra.mxu0 %v4302
        %4362 = vmatprep.subr.mxu0 0.0
        %4363 = vmatpush2.msra.mxu0 %v4301
        %4364 = vmatprep.subr.mxu0 0.0
        %4365 = vmatpush2.msra.mxu0 %v4300
        %4366 = vmatprep.subr.mxu0 0.0
        %4367 = vmatpush2.msra.mxu0 %v4299
        %4368 = vmatprep.subr.mxu0 0.0
        %4369 = vmatpush2.msra.mxu0 %v4298
        %4370 = vmatprep.subr.mxu0 0.0
        %4371 = vmatpush2.msra.mxu0 %v4297
        %4372 = vmatprep.subr.mxu0 0.0
        %4373 = vmatpush2.msra.mxu0 %v4296
        %4374 = vmatprep.subr.mxu0 0.0
        %4375 = vmatpush2.msra.mxu0 %v4295
        %4376 = vmatprep.subr.mxu0 0.0
        %4377 = vmatpush2.msra.mxu0 %v4294
        %4378 = vmatprep.subr.mxu0 0.0
        %4379 = vmatpush2.msra.mxu0 %v4293
        %4380 = vmatprep.subr.mxu0 0.0
        %4381 = vmatpush2.msra.mxu0 %v4292
        %4382 = vmatprep.mubr.f32.mxu0 %v4316
        %4383 = vmatmul.mubr.f32.gmra.mxu0 %v4313
        %v4384 = vpop.f32.mrf.mxu0
        %v4385 = vadd.f32 0.0, %v4384
        %v4386 = vpop.f32.mrf.mxu0
        %4387 = vdwg.mxu0
        %s4388 = scalar_lea.vmem %s16, 224
        %v4389 = vld [vmem:[%s4388] sm:$0xff]
        %v4390 = vld [vmem:[%s4388 + $0x8] sm:$0xff]
        %v4391 = vld [vmem:[%s4388 + $0x10] sm:$0xff]
        %v4392 = vld [vmem:[%s4388 + $0x18] sm:$0xff]
        %v4393 = vld [vmem:[%s4388 + $0x20] sm:$0xff]
        %v4394 = vld [vmem:[%s4388 + $0x28] sm:$0xff]
        %v4395 = vld [vmem:[%s4388 + $0x30] sm:$0xff]
        %v4396 = vld [vmem:[%s4388 + $0x38] sm:$0xff]
        %v4397 = vld [vmem:[%s4388 + $0x40] sm:$0xff]
        %v4398 = vld [vmem:[%s4388 + $0x48] sm:$0xff]
        %v4399 = vld [vmem:[%s4388 + $0x50] sm:$0xff]
        %v4400 = vld [vmem:[%s4388 + $0x58] sm:$0xff]
        %v4401 = vld [vmem:[%s4388 + $0x60] sm:$0xff]
        %v4402 = vld [vmem:[%s4388 + $0x68] sm:$0xff]
        %v4403 = vld [vmem:[%s4388 + $0x70] sm:$0xff]
        %v4404 = vld [vmem:[%s4388 + $0x78] sm:$0xff]
        %v4405 = vld [vmem:[%s4388 + $0x80] sm:$0xff]
        %v4406 = vld [vmem:[%s4388 + $0x88] sm:$0xff]
        %v4407 = vld [vmem:[%s4388 + $0x90] sm:$0xff]
        %v4408 = vld [vmem:[%s4388 + $0x98] sm:$0xff]
        %v4409 = vld [vmem:[%s4388 + $0xa0] sm:$0xff]
        %v4410 = vld [vmem:[%s4388 + $0xa8] sm:$0xff]
        %v4411 = vld [vmem:[%s4388 + $0xb0] sm:$0xff]
        %v4412 = vld [vmem:[%s4388 + $0xb8] sm:$0xff]
        %v4413 = vld [vmem:[%s4388 + $0xc0] sm:$0xff]
        %v4414 = vld [vmem:[%s4388 + $0xc8] sm:$0xff]
        %v4415 = vld [vmem:[%s4388 + $0xd0] sm:$0xff]
        %v4416 = vld [vmem:[%s4388 + $0xd8] sm:$0xff]
        %v4418 = vsel %vm1470, %v4275, 0
        %4420 = vmatprep.subr.mxu0 0.0
        %4421 = vmatpush1.msra.mxu0 %v4404
        %4422 = vmatprep.subr.mxu0 0.0
        %4423 = vmatpush1.msra.mxu0 %v4403
        %4424 = vmatprep.subr.mxu0 0.0
        %4425 = vmatpush1.msra.mxu0 %v4402
        %4426 = vmatprep.subr.mxu0 0.0
        %4427 = vmatpush1.msra.mxu0 %v4401
        %4428 = vmatprep.subr.mxu0 0.0
        %4429 = vmatpush1.msra.mxu0 %v4400
        %4430 = vmatprep.subr.mxu0 0.0
        %4431 = vmatpush1.msra.mxu0 %v4399
        %4432 = vmatprep.subr.mxu0 0.0
        %4433 = vmatpush1.msra.mxu0 %v4398
        %4434 = vmatprep.subr.mxu0 0.0
        %4435 = vmatpush1.msra.mxu0 %v4397
        %4436 = vmatprep.subr.mxu0 0.0
        %4437 = vmatpush1.msra.mxu0 %v4396
        %4438 = vmatprep.subr.mxu0 0.0
        %4439 = vmatpush1.msra.mxu0 %v4395
        %4440 = vmatprep.subr.mxu0 0.0
        %4441 = vmatpush1.msra.mxu0 %v4394
        %4442 = vmatprep.subr.mxu0 0.0
        %4443 = vmatpush1.msra.mxu0 %v4393
        %4444 = vmatprep.subr.mxu0 0.0
        %4445 = vmatpush1.msra.mxu0 %v4392
        %4446 = vmatprep.subr.mxu0 0.0
        %4447 = vmatpush1.msra.mxu0 %v4391
        %4448 = vmatprep.subr.mxu0 0.0
        %4449 = vmatpush1.msra.mxu0 %v4390
        %4450 = vmatprep.subr.mxu0 0.0
        %4451 = vmatpush1.msra.mxu0 %v4389
        %4452 = vmatprep.subr.mxu0 0.0
        %4453 = vmatpush2.msra.mxu0 0.0
        %4454 = vmatprep.subr.mxu0 0.0
        %4455 = vmatpush2.msra.mxu0 0.0
        %4456 = vmatprep.subr.mxu0 0.0
        %4457 = vmatpush2.msra.mxu0 0.0
        %4458 = vmatprep.subr.mxu0 0.0
        %4459 = vmatpush2.msra.mxu0 0.0
        %4460 = vmatprep.subr.mxu0 0.0
        %4461 = vmatpush2.msra.mxu0 %v4416
        %4462 = vmatprep.subr.mxu0 0.0
        %4463 = vmatpush2.msra.mxu0 %v4415
        %4464 = vmatprep.subr.mxu0 0.0
        %4465 = vmatpush2.msra.mxu0 %v4414
        %4466 = vmatprep.subr.mxu0 0.0
        %4467 = vmatpush2.msra.mxu0 %v4413
        %4468 = vmatprep.subr.mxu0 0.0
        %4469 = vmatpush2.msra.mxu0 %v4412
        %4470 = vmatprep.subr.mxu0 0.0
        %4471 = vmatpush2.msra.mxu0 %v4411
        %4472 = vmatprep.subr.mxu0 0.0
        %4473 = vmatpush2.msra.mxu0 %v4410
        %4474 = vmatprep.subr.mxu0 0.0
        %4475 = vmatpush2.msra.mxu0 %v4409
        %4476 = vmatprep.subr.mxu0 0.0
        %4477 = vmatpush2.msra.mxu0 %v4408
        %4478 = vmatprep.subr.mxu0 0.0
        %4479 = vmatpush2.msra.mxu0 %v4407
        %4480 = vmatprep.subr.mxu0 0.0
        %4481 = vmatpush2.msra.mxu0 %v4406
        %4482 = vmatprep.subr.mxu0 0.0
        %4483 = vmatpush2.msra.mxu0 %v4405
        %4484 = vmatprep.mubr.f32.mxu0 %v4418
        %4485 = vmatmul.mubr.f32.gmra.mxu0 %v4274
        %v4486 = vpop.f32.mrf.mxu0
        %v4487 = vadd.f32 0.0, %v4486
        %v4488 = vpop.f32.mrf.mxu0
        %4489 = vdwg.mxu0
        %v4490 = vld [vmem:[%s17] sm:$0x1]
        %v4492 = vrot.slane %v4487, 7
        %v4494 = vsel %vm1426, 0.0, %v4492
        %v4495 = vadd.f32 %v4385, %v4494
        %v4497 = vlaneseq
        %v4498 = vshrl.u32 %v4497, 7
        %v4499 = vsub.s32 0, %v4498
        %v4500 = vrot.slane %v4490, %v4499
        %v4502 = vadd.f32 %v4495, %v4500
        %vm4503 = vcmask 227328
        %4504 = vst.msk [vmem:[%s710] sm:$0x7f] %vm4503, %v4502
        %v4505 = vadd.f32 %v4385, %v4487
        %4506 = vrot.lane.b32.xlu0 %v4500, 28
        %v4507 = vpop.permute.xlu0 %4506
        %v4509 = vadd.f32 %v4505, %v4507
        %4511 = vrot.lane.b32.xlu0 %v4509, 100
        %v4512 = vpop.permute.xlu0 %4511
        %s4514 = scalar_lea.vmem %s710, 8
        %4515 = vst.msk [vmem:[%s4514] sm:$0x7f] %vm4503, %v4512
        %4516 = vrot.lane.b32.xlu0 %v4500, 56
        %v4517 = vpop.permute.xlu0 %4516
        %v4519 = vadd.f32 %v4505, %v4517
        %4521 = vrot.lane.b32.xlu0 %v4519, 72
        %v4522 = vpop.permute.xlu0 %4521
        %s4524 = scalar_lea.vmem %s710, 16
        %4525 = vst.msk [vmem:[%s4524] sm:$0x7f] %vm4503, %v4522
        %v4527 = vrot.slane %v4385, 1
        %v4529 = vsel %vm1453, %v4527, 0.0
        %v4530 = vadd.f32 %v4529, %v4487
        %4531 = vrot.lane.b32.xlu0 %v4500, 84
        %v4532 = vpop.permute.xlu0 %4531
        %v4534 = vadd.f32 %v4530, %v4532
        %4536 = vrot.lane.b32.xlu0 %v4534, 44
        %v4537 = vpop.permute.xlu0 %4536
        %s4539 = scalar_lea.vmem %s710, 24
        %4540 = vst.msk [vmem:[%s4539] sm:$0x7f] %vm4503, %v4537
        %p4541 = scmp.lt.s32.totalorder %s40, 1
        %s4542 = scalar_select %p4541, %s40, 1
        %s4543 = smul.addr %s4542, 4
        %s4544 = smul.addr %s4543, 8
        %s4545 = scalar_lea.vmem %s18, %s4544
        %s4546 = sand.u32 %s462, 1
        %s4547 = scalar_lea.sflag [#allocation4], %s4546
        %s4548 = sand.u32 %s462, 1
        %s4549 = scalar_lea.vmem [#allocation5], %s4548
        %s4550 = sand.u32 %s40, 1
        %s4551 = scalar_lea.sflag [#allocation7], %s4550
        %s4552 = sand.u32 %s488, 1
        %s4553 = scalar_lea.vmem [#allocation6], %s4552
        %s4554 = sand.u32 %s40, 1
        %s4555 = scalar_lea.sflag [#allocation7], %s4554
        %s4556 = sand.u32 %s514, 1
        %s4557 = scalar_lea.vmem [#allocation8], %s4556
        // Predicated region
        $region97: #{vae_forward.1} parent=91 // pred_check
          %p4558 = pneg %p446
        $region98: #{vae_forward.1} parent=91 // pred_check_branch
          %4560 = sbr.rel (%p4558) target = $region100
        $region99: #{vae_forward.1} parent=91 // pred_region
          _
        $region100: #{vae_forward.1} parent=91 // pred_fallthru
          _
        // Predicated region
        $region101: #{vae_forward.1} parent=91 // pred_check
          %p4561 = pneg %p472
        $region102: #{vae_forward.1} parent=91 // pred_check_branch
          %4563 = sbr.rel (%p4561) target = $region104
        $region103: #{vae_forward.1} parent=91 // pred_region
          %s4565 = ssub.s32 16, 16
          %4566 = vsyncadd %s4547, %s4565
          %s4567 = smul.addr %s40, 16
          %s4568 = scalar_lea.hbm %s19, %s4567
          %s4570 = sshll.u32 %s4549, 4
          %s4571 = int_to_ptr.vmem [resolvable:$true] %s4570
          %4573 = dma.vmem_to_hbm [thread:$0]  %s4571, 16, %s4568, %s4547
        $region104: #{vae_forward.1} parent=91 // pred_fallthru
          _
        // Predicated region
        $region105: #{vae_forward.1} parent=91 // pred_check
          %p4574 = pneg %p498
        $region106: #{vae_forward.1} parent=91 // pred_check_branch
          %4576 = sbr.rel (%p4574) target = $region108
        $region107: #{vae_forward.1} parent=91 // pred_region
          %s4578 = ssub.s32 16, 16
          %4579 = vsyncadd %s4551, %s4578
          %s4580 = smul.addr %s40, 16
          %s4581 = scalar_lea.hbm %s20, %s4580
          %s4583 = sshll.u32 %s4553, 4
          %s4584 = int_to_ptr.vmem [resolvable:$true] %s4583
          %4586 = dma.vmem_to_hbm [thread:$0]  %s4584, 16, %s4581, %s4551
        $region108: #{vae_forward.1} parent=91 // pred_fallthru
          _
        // Predicated region
        $region109: #{vae_forward.1} parent=91 // pred_check
          %p4587 = pneg %p524
        $region110: #{vae_forward.1} parent=91 // pred_check_branch
          %4589 = sbr.rel (%p4587) target = $region112
        $region111: #{vae_forward.1} parent=91 // pred_region
          %s4591 = ssub.s32 16, 16
          %4592 = vsyncadd %s4555, %s4591
          %s4593 = smul.addr %s40, 16
          %s4594 = scalar_lea.hbm %s21, %s4593
          %s4596 = sshll.u32 %s4557, 4
          %s4597 = int_to_ptr.vmem [resolvable:$true] %s4596
          %4599 = dma.vmem_to_hbm [thread:$0]  %s4597, 16, %s4594, %s4555
        $region112: #{vae_forward.1} parent=91 // pred_fallthru
          _
      $region92: #{vae_forward.1} parent=5 // pred_fallthru
        _
      %p4600 = scmp.le.s32.totalorder 2, %s35
      // Predicated region
      $region113: #{vae_forward.1} parent=5 // pred_check
        %p4601 = pneg %p4600
      $region114: #{vae_forward.1} parent=5 // pred_check_branch
        %4603 = sbr.rel (%p4601) target = $region116
      $region115: #{vae_forward.1} parent=5 // pred_region
        %s4604 = ssub.s32 %s35, 2
        // Predicated region
        $region117: #{vae_forward.1} parent=115 // pred_check
          %p4605 = pneg %p452
        $region118: #{vae_forward.1} parent=115 // pred_check_branch
          %4607 = sbr.rel (%p4605) target = $region120
        $region119: #{vae_forward.1} parent=115 // pred_region
          %p4608 = scmp.lt.s32.totalorder %s41, 1
          %s4609 = scalar_select %p4608, %s41, 1
          %s4610 = smul.addr %s4609, 4
          %s4611 = smul.addr %s4610, 8
          %s4612 = scalar_lea.vmem %s18, %s4611
        $region120: #{vae_forward.1} parent=115 // pred_fallthru
          _
        // Predicated region
        $region121: #{vae_forward.1} parent=115 // pred_check
          %p4613 = pneg %p478
        $region122: #{vae_forward.1} parent=115 // pred_check_branch
          %4615 = sbr.rel (%p4613) target = $region124
        $region123: #{vae_forward.1} parent=115 // pred_region
          %s4616 = sand.u32 %s463, 1
          %s4617 = scalar_lea.sflag [#allocation4], %s4616
          %s4618 = sand.u32 %s463, 1
          %s4619 = scalar_lea.vmem [#allocation5], %s4618
          %4620 = dma.done %s4617, 16
        $region124: #{vae_forward.1} parent=115 // pred_fallthru
          _
        // Predicated region
        $region125: #{vae_forward.1} parent=115 // pred_check
          %p4621 = pneg %p504
        $region126: #{vae_forward.1} parent=115 // pred_check_branch
          %4623 = sbr.rel (%p4621) target = $region128
        $region127: #{vae_forward.1} parent=115 // pred_region
          %s4624 = sand.u32 %s41, 1
          %s4625 = scalar_lea.sflag [#allocation7], %s4624
          %s4626 = sand.u32 %s489, 1
          %s4627 = scalar_lea.vmem [#allocation6], %s4626
          %4628 = dma.done %s4625, 16
        $region128: #{vae_forward.1} parent=115 // pred_fallthru
          _
        // Predicated region
        $region129: #{vae_forward.1} parent=115 // pred_check
          %p4629 = pneg %p530
        $region130: #{vae_forward.1} parent=115 // pred_check_branch
          %4631 = sbr.rel (%p4629) target = $region132
        $region131: #{vae_forward.1} parent=115 // pred_region
          %s4632 = sand.u32 %s41, 1
          %s4633 = scalar_lea.sflag [#allocation7], %s4632
          %s4634 = sand.u32 %s515, 1
          %s4635 = scalar_lea.vmem [#allocation8], %s4634
          %4636 = dma.done %s4633, 16
        $region132: #{vae_forward.1} parent=115 // pred_fallthru
          _
      $region116: #{vae_forward.1} parent=5 // pred_fallthru
        _
    $region6: #{vae_forward.1} parent=1 // loop_footer
      %s39 = sadd.s32 1, %s35
    $region7: #{vae_forward.1} parent=1 // loop_footer_branch
      %34 = sbr.rel target = $region3
    $region8: #{vae_forward.1} parent=1 // loop_exit
      _
    %4637 = vsyncpa [#allocation3], 1
    %s4638 = scalar_lea.sflag [#allocation3], 1
    %4639 = vsyncpa %s4638, 1
    %4640 = vsyncpa [#allocation4], 1
    %s4641 = scalar_lea.sflag [#allocation4], 1
    %4642 = vsyncpa %s4641, 1
    %4643 = vsyncpa [#allocation7], 1
    %s4644 = scalar_lea.sflag [#allocation7], 1
    %4645 = vsyncpa %s4644, 1

</llo_original>
